<compile_context>
chip_gen: v5e
topology: v5e:2x2
jax: 0.10.0
libtpu: 0.0.40
codegen_flags: <defaults>
</compile_context>

<pallas_src>
import functools

import jax
import jax.numpy as jnp
from jax.experimental import pallas as pl
from jax.experimental.pallas import tpu as pltpu


def _round_up(x, m):
    return x + (-x) % m


def _point_texture_gather_kernel(ids_ref, tex_ref, out_ref, *, size, k_chunk,
                                 num_chunks, num_planes, activation):
    """One grid step: gather TILE pixels from the texture table.

    ids_ref : (1, TILE)                          float32   raw point ids for this tile
    tex_ref : (PLANES*CHUNKS, C_PAD, K_CHUNK)    bfloat16  hi/(mid/)lo texture planes, chunked
    out_ref : (C_PAD, TILE)                      float32   gathered samples (pixels on lanes)
    """
    tile = ids_ref.shape[1]
    c_pad = out_ref.shape[0]

    # float -> int truncation toward zero matches torch .long(); floor-mod by `size`
    # matches indexing into the (C, B*size) expanded-flat texture of the reference.
    idx = jnp.mod(ids_ref[...].astype(jnp.int32), size)                  # (1, TILE)
    idx_min = jnp.min(idx)
    idx_max = jnp.max(idx)

    # Hoisted out of the chunk loop (JAX does not CSE broadcast_in_dim per iteration).
    rows_base = jax.lax.broadcasted_iota(jnp.int32, (k_chunk, tile), 0)  # (K_CHUNK, TILE)

    def chunk_body(kc, acc):
        k0 = kc * k_chunk

        def hit_branch(acc):
            # One-hot selector built directly in bf16 (0/1 is exact in bf16); the
            # fori_loop bounds the live set to a single (K_CHUNK, TILE) bf16 chunk.
            onehot = (rows_base == (idx - k0)).astype(jnp.bfloat16)      # (K_CHUNK, TILE)
            # One DEFAULT-precision bf16 MXU pass per texture plane; each pass is an
            # exact lookup of that bf16 plane, planes are summed in f32.
            for p in range(num_planes):                                  # tiny static unroll
                tex_chunk = tex_ref[p * num_chunks + kc]                 # (C_PAD, K_CHUNK) bf16
                acc = acc + jnp.dot(tex_chunk, onehot,
                                    preferred_element_type=jnp.float32)
            return acc

        # Per-tile chunk skipping: skip chunks that cannot contain any id of this tile.
        hit = jnp.logical_and(k0 <= idx_max, idx_min < k0 + k_chunk)
        return jax.lax.cond(hit, hit_branch, lambda a: a, acc)

    acc = jax.lax.fori_loop(0, num_chunks, chunk_body,
                            jnp.zeros((c_pad, tile), jnp.float32),
                            unroll=num_chunks <= 4)

    if activation == "sigmoid":
        acc = jax.nn.sigmoid(acc)
    elif activation == "tanh":
        acc = jnp.tanh(acc)
    # activation == 'none' -> identity

    out_ref[...] = acc.astype(out_ref.dtype)


def point_texture_forward(texture_, inputs, activation="none", *,
                          tile=512, k_chunk=128, num_planes=2):
    """JAX/Pallas equivalent of PointTexture.forward for tensor (non-dict) inputs.

    texture_  : (1, num_channels, size) float32
    inputs    : (B, C_in, H, W) float -- channel 0 carries the point ids
    num_planes: bf16 texture planes; 2 ~ 16 mantissa bits, 3 ~ full f32 mantissa.
    tile      : pixels per grid step (sweep: 256 on v5e, 512 default, 1024 on v6e).
    k_chunk   : texture points per MXU pass (128 fills a v5e MXU; keeps one-hot small).
    returns   : (B, num_channels, H, W) float32
    """
    assert texture_.ndim == 3 and texture_.shape[0] == 1
    assert tile % 128 == 0 and k_chunk % 128 == 0, "lane alignment"
    assert num_planes in (1, 2, 3)
    num_channels, size = texture_.shape[1], texture_.shape[2]

    ids = inputs[:, 0]
    B, H, W = ids.shape
    n = B * H * W

    # Pixel axis: flatten, pad to the tile, lay out as one lane-major row so the
    # per-step ids block is a single dense lane vector. Cast/mod happen in-kernel.
    n_total = _round_up(n, tile)
    ids_p = jnp.pad(ids.reshape(-1).astype(jnp.float32), (0, n_total - n)).reshape(1, n_total)

    # Texture: channels on sublanes (pad to 8), points on lanes (pad to k_chunk).
    # Split once into bf16 hi/(mid/)lo planes, then pre-chunk along the point axis so
    # the kernel picks a chunk with a dynamic leading-axis index.
    c_pad = _round_up(num_channels, 8)
    size_pad = _round_up(size, k_chunk)
    num_chunks = size_pad // k_chunk
    tex = jnp.pad(texture_[0].astype(jnp.float32),
                  ((0, c_pad - num_channels), (0, size_pad - size)))
    planes = []
    resid = tex
    for _ in range(num_planes):
        p = resid.astype(jnp.bfloat16)
        planes.append(p)
        resid = resid - p.astype(jnp.float32)
    tex_planes = jnp.stack(planes, axis=0)                               # (P, C_PAD, SIZE_PAD)
    tex_chunks = tex_planes.reshape(num_planes, c_pad, num_chunks, k_chunk)
    tex_chunks = jnp.transpose(tex_chunks, (0, 2, 1, 3)).reshape(
        num_planes * num_chunks, c_pad, k_chunk)                         # (P*CH, C_PAD, K_CHUNK)

    grid = (n_total // tile,)
    kernel = functools.partial(_point_texture_gather_kernel, size=size, k_chunk=k_chunk,
                               num_chunks=num_chunks, num_planes=num_planes,
                               activation=activation)

    # Advisory cost for XLA scheduling around the kernel (upper bound: no chunk skipping).
    tex_bytes = int(tex_chunks.size) * 2
    flops = 2 * n_total * size_pad * c_pad * num_planes
    transcendentals = n_total * c_pad if activation in ("sigmoid", "tanh") else 0
    bytes_accessed = 4 * n_total + tex_bytes + 4 * c_pad * n_total

    def run(single_buffer_texture):
        tex_spec_kwargs = {}
        if single_buffer_texture:
            # Grid-invariant block: one buffer is enough (matters on v7x's 64 MiB/TC).
            tex_spec_kwargs["pipeline_mode"] = pl.Buffered(1)
        tex_spec = pl.BlockSpec((num_planes * num_chunks, c_pad, k_chunk),
                                lambda i: (0, 0, 0), **tex_spec_kwargs)

        # Explicit VMEM budget: double-buffered ids/out blocks, the texture block
        # (single- or double-buffered), plus the live bf16 one-hot chunk and the f32
        # accumulator, with headroom.  Never below the smallest scoped default
        # (16 MiB) and capped well under v7x's 64 MiB per TensorCore.
        vmem_bytes = (2 * tile * 4
                      + (1 if single_buffer_texture else 2) * tex_bytes
                      + 2 * c_pad * tile * 4
                      + k_chunk * tile * 2
                      + c_pad * tile * 4)
        vmem_limit = min(max(2 * vmem_bytes + (4 << 20), 16 << 20), 48 << 20)

        return pl.pallas_call(
            kernel,
            out_shape=jax.ShapeDtypeStruct((c_pad, n_total), jnp.float32),
            grid_spec=pltpu.PrefetchScalarGridSpec(
                num_scalar_prefetch=0,
                grid=grid,
                in_specs=[
                    pl.BlockSpec((1, tile), lambda i: (0, i)),           # ids lane vector
                    tex_spec,                                            # whole texture, grid-invariant
                ],
                out_specs=pl.BlockSpec((c_pad, tile), lambda i: (0, i)),  # lane-dense (C, TILE)
            ),
            compiler_params=pltpu.CompilerParams(
                dimension_semantics=("parallel",),
                vmem_limit_bytes=vmem_limit,
            ),
            cost_estimate=pl.CostEstimate(flops=flops,
                                          transcendentals=transcendentals,
                                          bytes_accessed=bytes_accessed),
        )(ids_p, tex_chunks)

    try:
        out = run(single_buffer_texture=True)
    except Exception:
        # Fallback for jax/Mosaic versions that reject a 1-deep pipeline buffer; the
        # only cost is double-buffering the (grid-invariant) texture block.
        out = run(single_buffer_texture=False)

    # (C, N) result is already channel-major: slice off padding, then a cheap
    # leading-axis permute back to NCHW.
    sample = out[:num_channels, :n].reshape(num_channels, B, H, W)
    return jnp.transpose(sample, (1, 0, 2, 3))


def make_point_texture_params(key, num_channels, size, init_method="rand"):
    """Deterministic parameter init mirroring PointTexture.__init__ (no checkpoint)."""
    shape = (1, num_channels, size)
    if init_method == "rand":
        return jax.random.uniform(key, shape, dtype=jnp.float32)
    elif init_method == "zeros":
        return jnp.zeros(shape, dtype=jnp.float32)
    else:
        raise ValueError(init_method)


if __name__ == "__main__":
    key = jax.random.PRNGKey(0)
    k_tex, k_ids, k_rest = jax.random.split(key, 3)

    num_channels, size = 8, 512
    B, C_in, H, W = 2, 4, 16, 16

    # Parameter: 'rand' init so the output is non-trivial (module also supports 'zeros').
    texture_ = make_point_texture_params(k_tex, num_channels, size, init_method="rand")

    # Inputs: channel 0 carries point ids in [0, B*size) stored as float (like PyTorch);
    # remaining channels are arbitrary features that forward() ignores.
    ids_int = jax.random.randint(k_ids, (B, 1, H, W), 0, B * size)
    other = jax.random.normal(k_rest, (B, C_in - 1, H, W), dtype=jnp.float32)
    inputs = jnp.concatenate([ids_int.astype(jnp.float32), other], axis=1)

    # Pure-JAX reference of the PyTorch forward.
    ind_ref = jnp.mod(inputs[:, 0].astype(jnp.int32).reshape(-1), size)
    gathered = jnp.take(texture_[0], ind_ref, axis=1)                    # (C, B*H*W)
    gathered = gathered.reshape(num_channels, B, H, W).transpose(1, 0, 2, 3)

    refs = {"none": gathered,
            "sigmoid": jax.nn.sigmoid(gathered),
            "tanh": jnp.tanh(gathered)}

    # Default config: 2 bf16 planes (~16 mantissa bits of the stored f32 parameter).
    for activation, ref in refs.items():
        out = jax.block_until_ready(
            point_texture_forward(texture_, inputs, activation=activation))
        assert out.shape == (B, num_channels, H, W), out.shape
        assert out.dtype == jnp.float32
        err = float(jnp.max(jnp.abs(out - ref)))
        assert err < 1e-4, (activation, err)

    # 3 planes recovers (near-)full f32 mantissa of the stored parameter.
    out3 = jax.block_until_ready(
        point_texture_forward(texture_, inputs, activation="none", num_planes=3))
    err3 = float(jnp.max(jnp.abs(out3 - refs["none"])))
    assert err3 < 1e-5, err3

    print("KERNEL_OK")
</pallas_src>

<mosaic_0001>
module attributes {stable_mosaic.version = 11 : i64} {
  func.func @_point_texture_gather_kernel(%arg0: i32, %arg1: memref<1x512xf32, #tpu.memory_space<vmem>>, %arg2: memref<8x8x128xbf16, #tpu.memory_space<vmem>>, %arg3: memref<8x512xf32, #tpu.memory_space<vmem>>) attributes {dimension_semantics = [#tpu.dimension_semantics<parallel>], iteration_bounds = array<i64: 1>, scalar_prefetch = 0 : i64, scratch_operands = 0 : i64, tpu.core_type = #tpu.core_type<tc>, window_params = [{transform_indices = @transform_0, window_bounds = array<i64: 1, 512>}, {pipeline_mode = #tpu.pipeline_mode<synchronous>, transform_indices = @transform_1, window_bounds = array<i64: 8, 8, 128>}, {transform_indices = @transform_2, window_bounds = array<i64: 8, 512>}]} {
    %c0 = arith.constant 0 : index
    %c0_0 = arith.constant 0 : index
    %0 = vector.load %arg1[%c0, %c0_0] : memref<1x512xf32, #tpu.memory_space<vmem>>, vector<1x512xf32>
    %1 = arith.fptosi %0 : vector<1x512xf32> to vector<1x512xi32>
    %c512_i32 = arith.constant 512 : i32
    %c0_i32 = arith.constant 0 : i32
    %2 = arith.cmpi eq, %c512_i32, %c0_i32 : i32
    %c1_i32 = arith.constant 1 : i32
    %3 = arith.select %2, %c1_i32, %c512_i32 : i32
    %4 = vector.broadcast %3 : i32 to vector<1x512xi32>
    %5 = arith.remsi %1, %4 : vector<1x512xi32>
    %c0_i32_1 = arith.constant 0 : i32
    %6 = vector.broadcast %c0_i32_1 : i32 to vector<1x512xi32>
    %7 = arith.cmpi ne, %5, %6 : vector<1x512xi32>
    %c0_i32_2 = arith.constant 0 : i32
    %8 = vector.broadcast %c0_i32_2 : i32 to vector<1x512xi32>
    %9 = arith.cmpi slt, %5, %8 : vector<1x512xi32>
    %c0_i32_3 = arith.constant 0 : i32
    %10 = arith.cmpi slt, %3, %c0_i32_3 : i32
    %11 = vector.broadcast %10 : i1 to vector<1x512xi1>
    %12 = vector.broadcast %11 : vector<1x512xi1> to vector<1x512xi1>
    %13 = arith.xori %9, %12 : vector<1x512xi1>
    %14 = arith.andi %13, %7 : vector<1x512xi1>
    %15 = vector.broadcast %3 : i32 to vector<1x512xi32>
    %16 = arith.addi %5, %15 : vector<1x512xi32>
    %17 = arith.select %14, %16, %5 : vector<1x512xi1>, vector<1x512xi32>
    %18 = vector.shape_cast %17 : vector<1x512xi32> to vector<1x1x512xi32>
    %cst = arith.constant dense<2147483647> : vector<1xi32>
    %19 = vector.multi_reduction <minsi>, %18, %cst [1, 2] : vector<1x1x512xi32> to vector<1xi32>
    %20 = vector.shape_cast %19 : vector<1xi32> to vector<1x1x1xi32>
    %21 = vector.extract %20[0, 0, 0] : i32 from vector<1x1x1xi32>
    %22 = vector.shape_cast %17 : vector<1x512xi32> to vector<1x1x512xi32>
    %cst_4 = arith.constant dense<-2147483648> : vector<1xi32>
    %23 = vector.multi_reduction <maxsi>, %22, %cst_4 [1, 2] : vector<1x1x512xi32> to vector<1xi32>
    %24 = vector.shape_cast %23 : vector<1xi32> to vector<1x1x1xi32>
    %25 = vector.extract %24[0, 0, 0] : i32 from vector<1x1x1xi32>
    %26 = tpu.iota {dimensions = array<i32: 0>} : vector<128x512xi32>
    %cst_5 = arith.constant 0.000000e+00 : f32
    %27 = vector.broadcast %cst_5 : f32 to vector<8x512xf32>
    %c0_i32_6 = arith.constant 0 : i32
    %c128_i32 = arith.constant 128 : i32
    %28 = arith.muli %c0_i32_6, %c128_i32 : i32
    %29 = arith.cmpi sle, %28, %25 : i32
    %c128_i32_7 = arith.constant 128 : i32
    %30 = arith.addi %28, %c128_i32_7 : i32
    %31 = arith.cmpi slt, %21, %30 : i32
    %32 = arith.andi %29, %31 : i1
    %33 = arith.extui %32 : i1 to i32
    %c0_i32_8 = arith.constant 0 : i32
    %34 = arith.cmpi ne, %33, %c0_i32_8 : i32
    %35 = scf.if %34 -> (vector<8x512xf32>) {
      %61 = vector.broadcast %28 : i32 to vector<1x512xi32>
      %62 = arith.subi %17, %61 : vector<1x512xi32>
      %63 = vector.broadcast %62 : vector<1x512xi32> to vector<128x512xi32>
      %64 = arith.cmpi eq, %26, %63 : vector<128x512xi32>
      %65 = arith.extui %64 : vector<128x512xi1> to vector<128x512xi32>
      %66 = arith.sitofp %65 : vector<128x512xi32> to vector<128x512xf32>
      %67 = arith.truncf %66 : vector<128x512xf32> to vector<128x512xbf16>
      %c0_i32_21 = arith.constant 0 : i32
      %68 = arith.addi %c0_i32_21, %c0_i32_6 : i32
      %69 = arith.index_cast %68 : i32 to index
      %c0_22 = arith.constant 0 : index
      %c0_23 = arith.constant 0 : index
      %70 = vector.load %arg2[%69, %c0_22, %c0_23] : memref<8x8x128xbf16, #tpu.memory_space<vmem>>, vector<1x8x128xbf16>
      %71 = vector.shape_cast %70 : vector<1x8x128xbf16> to vector<8x128xbf16>
      %cst_24 = arith.constant dense<0.000000e+00> : vector<8x512xf32>
      %72 = tpu.matmul %71, %67, %cst_24 {dimension_numbers = #tpu.dot_dimension_numbers<[1], [0], [0], [1], [0, 0, 1, 1], [], []>} : vector<8x128xbf16>, vector<128x512xbf16>, vector<8x512xf32> -> vector<8x512xf32>
      %73 = arith.addf %27, %72 : vector<8x512xf32>
      %c4_i32_25 = arith.constant 4 : i32
      %74 = arith.addi %c4_i32_25, %c0_i32_6 : i32
      %75 = arith.index_cast %74 : i32 to index
      %c0_26 = arith.constant 0 : index
      %c0_27 = arith.constant 0 : index
      %76 = vector.load %arg2[%75, %c0_26, %c0_27] : memref<8x8x128xbf16, #tpu.memory_space<vmem>>, vector<1x8x128xbf16>
      %77 = vector.shape_cast %76 : vector<1x8x128xbf16> to vector<8x128xbf16>
      %cst_28 = arith.constant dense<0.000000e+00> : vector<8x512xf32>
      %78 = tpu.matmul %77, %67, %cst_28 {dimension_numbers = #tpu.dot_dimension_numbers<[1], [0], [0], [1], [0, 0, 1, 1], [], []>} : vector<8x128xbf16>, vector<128x512xbf16>, vector<8x512xf32> -> vector<8x512xf32>
      %79 = arith.addf %73, %78 : vector<8x512xf32>
      scf.yield %79 : vector<8x512xf32>
    } else {
      scf.yield %27 : vector<8x512xf32>
    }
    %c1_i32_9 = arith.constant 1 : i32
    %c128_i32_10 = arith.constant 128 : i32
    %36 = arith.muli %c1_i32_9, %c128_i32_10 : i32
    %37 = arith.cmpi sle, %36, %25 : i32
    %c128_i32_11 = arith.constant 128 : i32
    %38 = arith.addi %36, %c128_i32_11 : i32
    %39 = arith.cmpi slt, %21, %38 : i32
    %40 = arith.andi %37, %39 : i1
    %41 = arith.extui %40 : i1 to i32
    %c0_i32_12 = arith.constant 0 : i32
    %42 = arith.cmpi ne, %41, %c0_i32_12 : i32
    %43 = scf.if %42 -> (vector<8x512xf32>) {
      %61 = vector.broadcast %36 : i32 to vector<1x512xi32>
      %62 = arith.subi %17, %61 : vector<1x512xi32>
      %63 = vector.broadcast %62 : vector<1x512xi32> to vector<128x512xi32>
      %64 = arith.cmpi eq, %26, %63 : vector<128x512xi32>
      %65 = arith.extui %64 : vector<128x512xi1> to vector<128x512xi32>
      %66 = arith.sitofp %65 : vector<128x512xi32> to vector<128x512xf32>
      %67 = arith.truncf %66 : vector<128x512xf32> to vector<128x512xbf16>
      %c0_i32_21 = arith.constant 0 : i32
      %68 = arith.addi %c0_i32_21, %c1_i32_9 : i32
      %69 = arith.index_cast %68 : i32 to index
      %c0_22 = arith.constant 0 : index
      %c0_23 = arith.constant 0 : index
      %70 = vector.load %arg2[%69, %c0_22, %c0_23] : memref<8x8x128xbf16, #tpu.memory_space<vmem>>, vector<1x8x128xbf16>
      %71 = vector.shape_cast %70 : vector<1x8x128xbf16> to vector<8x128xbf16>
      %cst_24 = arith.constant dense<0.000000e+00> : vector<8x512xf32>
      %72 = tpu.matmul %71, %67, %cst_24 {dimension_numbers = #tpu.dot_dimension_numbers<[1], [0], [0], [1], [0, 0, 1, 1], [], []>} : vector<8x128xbf16>, vector<128x512xbf16>, vector<8x512xf32> -> vector<8x512xf32>
      %73 = arith.addf %35, %72 : vector<8x512xf32>
      %c4_i32_25 = arith.constant 4 : i32
      %74 = arith.addi %c4_i32_25, %c1_i32_9 : i32
      %75 = arith.index_cast %74 : i32 to index
      %c0_26 = arith.constant 0 : index
      %c0_27 = arith.constant 0 : index
      %76 = vector.load %arg2[%75, %c0_26, %c0_27] : memref<8x8x128xbf16, #tpu.memory_space<vmem>>, vector<1x8x128xbf16>
      %77 = vector.shape_cast %76 : vector<1x8x128xbf16> to vector<8x128xbf16>
      %cst_28 = arith.constant dense<0.000000e+00> : vector<8x512xf32>
      %78 = tpu.matmul %77, %67, %cst_28 {dimension_numbers = #tpu.dot_dimension_numbers<[1], [0], [0], [1], [0, 0, 1, 1], [], []>} : vector<8x128xbf16>, vector<128x512xbf16>, vector<8x512xf32> -> vector<8x512xf32>
      %79 = arith.addf %73, %78 : vector<8x512xf32>
      scf.yield %79 : vector<8x512xf32>
    } else {
      scf.yield %35 : vector<8x512xf32>
    }
    %c2_i32 = arith.constant 2 : i32
    %c128_i32_13 = arith.constant 128 : i32
    %44 = arith.muli %c2_i32, %c128_i32_13 : i32
    %45 = arith.cmpi sle, %44, %25 : i32
    %c128_i32_14 = arith.constant 128 : i32
    %46 = arith.addi %44, %c128_i32_14 : i32
    %47 = arith.cmpi slt, %21, %46 : i32
    %48 = arith.andi %45, %47 : i1
    %49 = arith.extui %48 : i1 to i32
    %c0_i32_15 = arith.constant 0 : i32
    %50 = arith.cmpi ne, %49, %c0_i32_15 : i32
    %51 = scf.if %50 -> (vector<8x512xf32>) {
      %61 = vector.broadcast %44 : i32 to vector<1x512xi32>
      %62 = arith.subi %17, %61 : vector<1x512xi32>
      %63 = vector.broadcast %62 : vector<1x512xi32> to vector<128x512xi32>
      %64 = arith.cmpi eq, %26, %63 : vector<128x512xi32>
      %65 = arith.extui %64 : vector<128x512xi1> to vector<128x512xi32>
      %66 = arith.sitofp %65 : vector<128x512xi32> to vector<128x512xf32>
      %67 = arith.truncf %66 : vector<128x512xf32> to vector<128x512xbf16>
      %c0_i32_21 = arith.constant 0 : i32
      %68 = arith.addi %c0_i32_21, %c2_i32 : i32
      %69 = arith.index_cast %68 : i32 to index
      %c0_22 = arith.constant 0 : index
      %c0_23 = arith.constant 0 : index
      %70 = vector.load %arg2[%69, %c0_22, %c0_23] : memref<8x8x128xbf16, #tpu.memory_space<vmem>>, vector<1x8x128xbf16>
      %71 = vector.shape_cast %70 : vector<1x8x128xbf16> to vector<8x128xbf16>
      %cst_24 = arith.constant dense<0.000000e+00> : vector<8x512xf32>
      %72 = tpu.matmul %71, %67, %cst_24 {dimension_numbers = #tpu.dot_dimension_numbers<[1], [0], [0], [1], [0, 0, 1, 1], [], []>} : vector<8x128xbf16>, vector<128x512xbf16>, vector<8x512xf32> -> vector<8x512xf32>
      %73 = arith.addf %43, %72 : vector<8x512xf32>
      %c4_i32_25 = arith.constant 4 : i32
      %74 = arith.addi %c4_i32_25, %c2_i32 : i32
      %75 = arith.index_cast %74 : i32 to index
      %c0_26 = arith.constant 0 : index
      %c0_27 = arith.constant 0 : index
      %76 = vector.load %arg2[%75, %c0_26, %c0_27] : memref<8x8x128xbf16, #tpu.memory_space<vmem>>, vector<1x8x128xbf16>
      %77 = vector.shape_cast %76 : vector<1x8x128xbf16> to vector<8x128xbf16>
      %cst_28 = arith.constant dense<0.000000e+00> : vector<8x512xf32>
      %78 = tpu.matmul %77, %67, %cst_28 {dimension_numbers = #tpu.dot_dimension_numbers<[1], [0], [0], [1], [0, 0, 1, 1], [], []>} : vector<8x128xbf16>, vector<128x512xbf16>, vector<8x512xf32> -> vector<8x512xf32>
      %79 = arith.addf %73, %78 : vector<8x512xf32>
      scf.yield %79 : vector<8x512xf32>
    } else {
      scf.yield %43 : vector<8x512xf32>
    }
    %c3_i32 = arith.constant 3 : i32
    %c128_i32_16 = arith.constant 128 : i32
    %52 = arith.muli %c3_i32, %c128_i32_16 : i32
    %53 = arith.cmpi sle, %52, %25 : i32
    %c128_i32_17 = arith.constant 128 : i32
    %54 = arith.addi %52, %c128_i32_17 : i32
    %55 = arith.cmpi slt, %21, %54 : i32
    %56 = arith.andi %53, %55 : i1
    %57 = arith.extui %56 : i1 to i32
    %c0_i32_18 = arith.constant 0 : i32
    %58 = arith.cmpi ne, %57, %c0_i32_18 : i32
    %59 = scf.if %58 -> (vector<8x512xf32>) {
      %61 = vector.broadcast %52 : i32 to vector<1x512xi32>
      %62 = arith.subi %17, %61 : vector<1x512xi32>
      %63 = vector.broadcast %62 : vector<1x512xi32> to vector<128x512xi32>
      %64 = arith.cmpi eq, %26, %63 : vector<128x512xi32>
      %65 = arith.extui %64 : vector<128x512xi1> to vector<128x512xi32>
      %66 = arith.sitofp %65 : vector<128x512xi32> to vector<128x512xf32>
      %67 = arith.truncf %66 : vector<128x512xf32> to vector<128x512xbf16>
      %c0_i32_21 = arith.constant 0 : i32
      %68 = arith.addi %c0_i32_21, %c3_i32 : i32
      %69 = arith.index_cast %68 : i32 to index
      %c0_22 = arith.constant 0 : index
      %c0_23 = arith.constant 0 : index
      %70 = vector.load %arg2[%69, %c0_22, %c0_23] : memref<8x8x128xbf16, #tpu.memory_space<vmem>>, vector<1x8x128xbf16>
      %71 = vector.shape_cast %70 : vector<1x8x128xbf16> to vector<8x128xbf16>
      %cst_24 = arith.constant dense<0.000000e+00> : vector<8x512xf32>
      %72 = tpu.matmul %71, %67, %cst_24 {dimension_numbers = #tpu.dot_dimension_numbers<[1], [0], [0], [1], [0, 0, 1, 1], [], []>} : vector<8x128xbf16>, vector<128x512xbf16>, vector<8x512xf32> -> vector<8x512xf32>
      %73 = arith.addf %51, %72 : vector<8x512xf32>
      %c4_i32_25 = arith.constant 4 : i32
      %74 = arith.addi %c4_i32_25, %c3_i32 : i32
      %75 = arith.index_cast %74 : i32 to index
      %c0_26 = arith.constant 0 : index
      %c0_27 = arith.constant 0 : index
      %76 = vector.load %arg2[%75, %c0_26, %c0_27] : memref<8x8x128xbf16, #tpu.memory_space<vmem>>, vector<1x8x128xbf16>
      %77 = vector.shape_cast %76 : vector<1x8x128xbf16> to vector<8x128xbf16>
      %cst_28 = arith.constant dense<0.000000e+00> : vector<8x512xf32>
      %78 = tpu.matmul %77, %67, %cst_28 {dimension_numbers = #tpu.dot_dimension_numbers<[1], [0], [0], [1], [0, 0, 1, 1], [], []>} : vector<8x128xbf16>, vector<128x512xbf16>, vector<8x512xf32> -> vector<8x512xf32>
      %79 = arith.addf %73, %78 : vector<8x512xf32>
      scf.yield %79 : vector<8x512xf32>
    } else {
      scf.yield %51 : vector<8x512xf32>
    }
    %c4_i32 = arith.constant 4 : i32
    %c0_19 = arith.constant 0 : index
    %c0_20 = arith.constant 0 : index
    %60 = vector.load %arg3[%c0_19, %c0_20] : memref<8x512xf32, #tpu.memory_space<vmem>>, vector<8x512xf32>
    tpu.vector_store %arg3[%c0_19, %c0_20], %59 {strides = array<i32>} : memref<8x512xf32, #tpu.memory_space<vmem>>, vector<8x512xf32>,
    return
  }
  func.func @transform_0(%arg0: i32) -> (i32, i32) {
    %c0_i32 = arith.constant 0 : i32
    %c0_i32_0 = arith.constant 0 : i32
    return %c0_i32, %arg0 : i32, i32
  }
  func.func @transform_1(%arg0: i32) -> (i32, i32, i32) {
    %c0_i32 = arith.constant 0 : i32
    %c0_i32_0 = arith.constant 0 : i32
    %c0_i32_1 = arith.constant 0 : i32
    %c0_i32_2 = arith.constant 0 : i32
    return %c0_i32, %c0_i32_0, %c0_i32_1 : i32, i32, i32
  }
  func.func @transform_2(%arg0: i32) -> (i32, i32) {
    %c0_i32 = arith.constant 0 : i32
    %c0_i32_0 = arith.constant 0 : i32
    return %c0_i32, %arg0 : i32, i32
  }
}

module attributes {stable_mosaic.version = 11 : i64} {
  func.func @_point_texture_gather_kernel(%arg0: i32, %arg1: memref<1x512xf32, #tpu.memory_space<vmem>>, %arg2: memref<8x8x128xbf16, #tpu.memory_space<vmem>>, %arg3: memref<8x512xf32, #tpu.memory_space<vmem>>) attributes {dimension_semantics = [#tpu.dimension_semantics<parallel>], iteration_bounds = array<i64: 1>, scalar_prefetch = 0 : i64, scratch_operands = 0 : i64, tpu.core_type = #tpu.core_type<tc>, window_params = [{transform_indices = @transform_0, window_bounds = array<i64: 1, 512>}, {pipeline_mode = #tpu.pipeline_mode<synchronous>, transform_indices = @transform_1, window_bounds = array<i64: 8, 8, 128>}, {transform_indices = @transform_2, window_bounds = array<i64: 8, 512>}]} {
    %c0 = arith.constant 0 : index
    %c0_0 = arith.constant 0 : index
    %0 = vector.load %arg1[%c0, %c0_0] : memref<1x512xf32, #tpu.memory_space<vmem>>, vector<1x512xf32>
    %1 = arith.fptosi %0 : vector<1x512xf32> to vector<1x512xi32>
    %c512_i32 = arith.constant 512 : i32
    %c0_i32 = arith.constant 0 : i32
    %2 = arith.cmpi eq, %c512_i32, %c0_i32 : i32
    %c1_i32 = arith.constant 1 : i32
    %3 = arith.select %2, %c1_i32, %c512_i32 : i32
    %4 = vector.broadcast %3 : i32 to vector<1x512xi32>
    %5 = arith.remsi %1, %4 : vector<1x512xi32>
    %c0_i32_1 = arith.constant 0 : i32
    %6 = vector.broadcast %c0_i32_1 : i32 to vector<1x512xi32>
    %7 = arith.cmpi ne, %5, %6 : vector<1x512xi32>
    %c0_i32_2 = arith.constant 0 : i32
    %8 = vector.broadcast %c0_i32_2 : i32 to vector<1x512xi32>
    %9 = arith.cmpi slt, %5, %8 : vector<1x512xi32>
    %c0_i32_3 = arith.constant 0 : i32
    %10 = arith.cmpi slt, %3, %c0_i32_3 : i32
    %11 = vector.broadcast %10 : i1 to vector<1x512xi1>
    %12 = vector.broadcast %11 : vector<1x512xi1> to vector<1x512xi1>
    %13 = arith.xori %9, %12 : vector<1x512xi1>
    %14 = arith.andi %13, %7 : vector<1x512xi1>
    %15 = vector.broadcast %3 : i32 to vector<1x512xi32>
    %16 = arith.addi %5, %15 : vector<1x512xi32>
    %17 = arith.select %14, %16, %5 : vector<1x512xi1>, vector<1x512xi32>
    %18 = vector.shape_cast %17 : vector<1x512xi32> to vector<1x1x512xi32>
    %cst = arith.constant dense<2147483647> : vector<1xi32>
    %19 = vector.multi_reduction <minsi>, %18, %cst [1, 2] : vector<1x1x512xi32> to vector<1xi32>
    %20 = vector.shape_cast %19 : vector<1xi32> to vector<1x1x1xi32>
    %21 = vector.extract %20[0, 0, 0] : i32 from vector<1x1x1xi32>
    %22 = vector.shape_cast %17 : vector<1x512xi32> to vector<1x1x512xi32>
    %cst_4 = arith.constant dense<-2147483648> : vector<1xi32>
    %23 = vector.multi_reduction <maxsi>, %22, %cst_4 [1, 2] : vector<1x1x512xi32> to vector<1xi32>
    %24 = vector.shape_cast %23 : vector<1xi32> to vector<1x1x1xi32>
    %25 = vector.extract %24[0, 0, 0] : i32 from vector<1x1x1xi32>
    %26 = tpu.iota {dimensions = array<i32: 0>} : vector<128x512xi32>
    %cst_5 = arith.constant 0.000000e+00 : f32
    %27 = vector.broadcast %cst_5 : f32 to vector<8x512xf32>
    %c0_i32_6 = arith.constant 0 : i32
    %c128_i32 = arith.constant 128 : i32
    %28 = arith.muli %c0_i32_6, %c128_i32 : i32
    %29 = arith.cmpi sle, %28, %25 : i32
    %c128_i32_7 = arith.constant 128 : i32
    %30 = arith.addi %28, %c128_i32_7 : i32
    %31 = arith.cmpi slt, %21, %30 : i32
    %32 = arith.andi %29, %31 : i1
    %33 = arith.extui %32 : i1 to i32
    %c0_i32_8 = arith.constant 0 : i32
    %34 = arith.cmpi ne, %33, %c0_i32_8 : i32
    %35 = scf.if %34 -> (vector<8x512xf32>) {
      %61 = vector.broadcast %28 : i32 to vector<1x512xi32>
      %62 = arith.subi %17, %61 : vector<1x512xi32>
      %63 = vector.broadcast %62 : vector<1x512xi32> to vector<128x512xi32>
      %64 = arith.cmpi eq, %26, %63 : vector<128x512xi32>
      %65 = arith.extui %64 : vector<128x512xi1> to vector<128x512xi32>
      %66 = arith.sitofp %65 : vector<128x512xi32> to vector<128x512xf32>
      %67 = arith.truncf %66 : vector<128x512xf32> to vector<128x512xbf16>
      %c0_i32_21 = arith.constant 0 : i32
      %68 = arith.addi %c0_i32_21, %c0_i32_6 : i32
      %69 = arith.index_cast %68 : i32 to index
      %c0_22 = arith.constant 0 : index
      %c0_23 = arith.constant 0 : index
      %70 = vector.load %arg2[%69, %c0_22, %c0_23] : memref<8x8x128xbf16, #tpu.memory_space<vmem>>, vector<1x8x128xbf16>
      %71 = vector.shape_cast %70 : vector<1x8x128xbf16> to vector<8x128xbf16>
      %cst_24 = arith.constant dense<0.000000e+00> : vector<8x512xf32>
      %72 = tpu.matmul %71, %67, %cst_24 {dimension_numbers = #tpu.dot_dimension_numbers<[1], [0], [0], [1], [0, 0, 1, 1], [], []>} : vector<8x128xbf16>, vector<128x512xbf16>, vector<8x512xf32> -> vector<8x512xf32>
      %73 = arith.addf %27, %72 : vector<8x512xf32>
      %c4_i32_25 = arith.constant 4 : i32
      %74 = arith.addi %c4_i32_25, %c0_i32_6 : i32
      %75 = arith.index_cast %74 : i32 to index
      %c0_26 = arith.constant 0 : index
      %c0_27 = arith.constant 0 : index
      %76 = vector.load %arg2[%75, %c0_26, %c0_27] : memref<8x8x128xbf16, #tpu.memory_space<vmem>>, vector<1x8x128xbf16>
      %77 = vector.shape_cast %76 : vector<1x8x128xbf16> to vector<8x128xbf16>
      %cst_28 = arith.constant dense<0.000000e+00> : vector<8x512xf32>
      %78 = tpu.matmul %77, %67, %cst_28 {dimension_numbers = #tpu.dot_dimension_numbers<[1], [0], [0], [1], [0, 0, 1, 1], [], []>} : vector<8x128xbf16>, vector<128x512xbf16>, vector<8x512xf32> -> vector<8x512xf32>
      %79 = arith.addf %73, %78 : vector<8x512xf32>
      scf.yield %79 : vector<8x512xf32>
    } else {
      scf.yield %27 : vector<8x512xf32>
    }
    %c1_i32_9 = arith.constant 1 : i32
    %c128_i32_10 = arith.constant 128 : i32
    %36 = arith.muli %c1_i32_9, %c128_i32_10 : i32
    %37 = arith.cmpi sle, %36, %25 : i32
    %c128_i32_11 = arith.constant 128 : i32
    %38 = arith.addi %36, %c128_i32_11 : i32
    %39 = arith.cmpi slt, %21, %38 : i32
    %40 = arith.andi %37, %39 : i1
    %41 = arith.extui %40 : i1 to i32
    %c0_i32_12 = arith.constant 0 : i32
    %42 = arith.cmpi ne, %41, %c0_i32_12 : i32
    %43 = scf.if %42 -> (vector<8x512xf32>) {
      %61 = vector.broadcast %36 : i32 to vector<1x512xi32>
      %62 = arith.subi %17, %61 : vector<1x512xi32>
      %63 = vector.broadcast %62 : vector<1x512xi32> to vector<128x512xi32>
      %64 = arith.cmpi eq, %26, %63 : vector<128x512xi32>
      %65 = arith.extui %64 : vector<128x512xi1> to vector<128x512xi32>
      %66 = arith.sitofp %65 : vector<128x512xi32> to vector<128x512xf32>
      %67 = arith.truncf %66 : vector<128x512xf32> to vector<128x512xbf16>
      %c0_i32_21 = arith.constant 0 : i32
      %68 = arith.addi %c0_i32_21, %c1_i32_9 : i32
      %69 = arith.index_cast %68 : i32 to index
      %c0_22 = arith.constant 0 : index
      %c0_23 = arith.constant 0 : index
      %70 = vector.load %arg2[%69, %c0_22, %c0_23] : memref<8x8x128xbf16, #tpu.memory_space<vmem>>, vector<1x8x128xbf16>
      %71 = vector.shape_cast %70 : vector<1x8x128xbf16> to vector<8x128xbf16>
      %cst_24 = arith.constant dense<0.000000e+00> : vector<8x512xf32>
      %72 = tpu.matmul %71, %67, %cst_24 {dimension_numbers = #tpu.dot_dimension_numbers<[1], [0], [0], [1], [0, 0, 1, 1], [], []>} : vector<8x128xbf16>, vector<128x512xbf16>, vector<8x512xf32> -> vector<8x512xf32>
      %73 = arith.addf %35, %72 : vector<8x512xf32>
      %c4_i32_25 = arith.constant 4 : i32
      %74 = arith.addi %c4_i32_25, %c1_i32_9 : i32
      %75 = arith.index_cast %74 : i32 to index
      %c0_26 = arith.constant 0 : index
      %c0_27 = arith.constant 0 : index
      %76 = vector.load %arg2[%75, %c0_26, %c0_27] : memref<8x8x128xbf16, #tpu.memory_space<vmem>>, vector<1x8x128xbf16>
      %77 = vector.shape_cast %76 : vector<1x8x128xbf16> to vector<8x128xbf16>
      %cst_28 = arith.constant dense<0.000000e+00> : vector<8x512xf32>
      %78 = tpu.matmul %77, %67, %cst_28 {dimension_numbers = #tpu.dot_dimension_numbers<[1], [0], [0], [1], [0, 0, 1, 1], [], []>} : vector<8x128xbf16>, vector<128x512xbf16>, vector<8x512xf32> -> vector<8x512xf32>
      %79 = arith.addf %73, %78 : vector<8x512xf32>
      scf.yield %79 : vector<8x512xf32>
    } else {
      scf.yield %35 : vector<8x512xf32>
    }
    %c2_i32 = arith.constant 2 : i32
    %c128_i32_13 = arith.constant 128 : i32
    %44 = arith.muli %c2_i32, %c128_i32_13 : i32
    %45 = arith.cmpi sle, %44, %25 : i32
    %c128_i32_14 = arith.constant 128 : i32
    %46 = arith.addi %44, %c128_i32_14 : i32
    %47 = arith.cmpi slt, %21, %46 : i32
    %48 = arith.andi %45, %47 : i1
    %49 = arith.extui %48 : i1 to i32
    %c0_i32_15 = arith.constant 0 : i32
    %50 = arith.cmpi ne, %49, %c0_i32_15 : i32
    %51 = scf.if %50 -> (vector<8x512xf32>) {
      %61 = vector.broadcast %44 : i32 to vector<1x512xi32>
      %62 = arith.subi %17, %61 : vector<1x512xi32>
      %63 = vector.broadcast %62 : vector<1x512xi32> to vector<128x512xi32>
      %64 = arith.cmpi eq, %26, %63 : vector<128x512xi32>
      %65 = arith.extui %64 : vector<128x512xi1> to vector<128x512xi32>
      %66 = arith.sitofp %65 : vector<128x512xi32> to vector<128x512xf32>
      %67 = arith.truncf %66 : vector<128x512xf32> to vector<128x512xbf16>
      %c0_i32_21 = arith.constant 0 : i32
      %68 = arith.addi %c0_i32_21, %c2_i32 : i32
      %69 = arith.index_cast %68 : i32 to index
      %c0_22 = arith.constant 0 : index
      %c0_23 = arith.constant 0 : index
      %70 = vector.load %arg2[%69, %c0_22, %c0_23] : memref<8x8x128xbf16, #tpu.memory_space<vmem>>, vector<1x8x128xbf16>
      %71 = vector.shape_cast %70 : vector<1x8x128xbf16> to vector<8x128xbf16>
      %cst_24 = arith.constant dense<0.000000e+00> : vector<8x512xf32>
      %72 = tpu.matmul %71, %67, %cst_24 {dimension_numbers = #tpu.dot_dimension_numbers<[1], [0], [0], [1], [0, 0, 1, 1], [], []>} : vector<8x128xbf16>, vector<128x512xbf16>, vector<8x512xf32> -> vector<8x512xf32>
      %73 = arith.addf %43, %72 : vector<8x512xf32>
      %c4_i32_25 = arith.constant 4 : i32
      %74 = arith.addi %c4_i32_25, %c2_i32 : i32
      %75 = arith.index_cast %74 : i32 to index
      %c0_26 = arith.constant 0 : index
      %c0_27 = arith.constant 0 : index
      %76 = vector.load %arg2[%75, %c0_26, %c0_27] : memref<8x8x128xbf16, #tpu.memory_space<vmem>>, vector<1x8x128xbf16>
      %77 = vector.shape_cast %76 : vector<1x8x128xbf16> to vector<8x128xbf16>
      %cst_28 = arith.constant dense<0.000000e+00> : vector<8x512xf32>
      %78 = tpu.matmul %77, %67, %cst_28 {dimension_numbers = #tpu.dot_dimension_numbers<[1], [0], [0], [1], [0, 0, 1, 1], [], []>} : vector<8x128xbf16>, vector<128x512xbf16>, vector<8x512xf32> -> vector<8x512xf32>
      %79 = arith.addf %73, %78 : vector<8x512xf32>
      scf.yield %79 : vector<8x512xf32>
    } else {
      scf.yield %43 : vector<8x512xf32>
    }
    %c3_i32 = arith.constant 3 : i32
    %c128_i32_16 = arith.constant 128 : i32
    %52 = arith.muli %c3_i32, %c128_i32_16 : i32
    %53 = arith.cmpi sle, %52, %25 : i32
    %c128_i32_17 = arith.constant 128 : i32
    %54 = arith.addi %52, %c128_i32_17 : i32
    %55 = arith.cmpi slt, %21, %54 : i32
    %56 = arith.andi %53, %55 : i1
    %57 = arith.extui %56 : i1 to i32
    %c0_i32_18 = arith.constant 0 : i32
    %58 = arith.cmpi ne, %57, %c0_i32_18 : i32
    %59 = scf.if %58 -> (vector<8x512xf32>) {
      %61 = vector.broadcast %52 : i32 to vector<1x512xi32>
      %62 = arith.subi %17, %61 : vector<1x512xi32>
      %63 = vector.broadcast %62 : vector<1x512xi32> to vector<128x512xi32>
      %64 = arith.cmpi eq, %26, %63 : vector<128x512xi32>
      %65 = arith.extui %64 : vector<128x512xi1> to vector<128x512xi32>
      %66 = arith.sitofp %65 : vector<128x512xi32> to vector<128x512xf32>
      %67 = arith.truncf %66 : vector<128x512xf32> to vector<128x512xbf16>
      %c0_i32_21 = arith.constant 0 : i32
      %68 = arith.addi %c0_i32_21, %c3_i32 : i32
      %69 = arith.index_cast %68 : i32 to index
      %c0_22 = arith.constant 0 : index
      %c0_23 = arith.constant 0 : index
      %70 = vector.load %arg2[%69, %c0_22, %c0_23] : memref<8x8x128xbf16, #tpu.memory_space<vmem>>, vector<1x8x128xbf16>
      %71 = vector.shape_cast %70 : vector<1x8x128xbf16> to vector<8x128xbf16>
      %cst_24 = arith.constant dense<0.000000e+00> : vector<8x512xf32>
      %72 = tpu.matmul %71, %67, %cst_24 {dimension_numbers = #tpu.dot_dimension_numbers<[1], [0], [0], [1], [0, 0, 1, 1], [], []>} : vector<8x128xbf16>, vector<128x512xbf16>, vector<8x512xf32> -> vector<8x512xf32>
      %73 = arith.addf %51, %72 : vector<8x512xf32>
      %c4_i32_25 = arith.constant 4 : i32
      %74 = arith.addi %c4_i32_25, %c3_i32 : i32
      %75 = arith.index_cast %74 : i32 to index
      %c0_26 = arith.constant 0 : index
      %c0_27 = arith.constant 0 : index
      %76 = vector.load %arg2[%75, %c0_26, %c0_27] : memref<8x8x128xbf16, #tpu.memory_space<vmem>>, vector<1x8x128xbf16>
      %77 = vector.shape_cast %76 : vector<1x8x128xbf16> to vector<8x128xbf16>
      %cst_28 = arith.constant dense<0.000000e+00> : vector<8x512xf32>
      %78 = tpu.matmul %77, %67, %cst_28 {dimension_numbers = #tpu.dot_dimension_numbers<[1], [0], [0], [1], [0, 0, 1, 1], [], []>} : vector<8x128xbf16>, vector<128x512xbf16>, vector<8x512xf32> -> vector<8x512xf32>
      %79 = arith.addf %73, %78 : vector<8x512xf32>
      scf.yield %79 : vector<8x512xf32>
    } else {
      scf.yield %51 : vector<8x512xf32>
    }
    %c4_i32 = arith.constant 4 : i32
    %c0_19 = arith.constant 0 : index
    %c0_20 = arith.constant 0 : index
    %60 = vector.load %arg3[%c0_19, %c0_20] : memref<8x512xf32, #tpu.memory_space<vmem>>, vector<8x512xf32>
    tpu.vector_store %arg3[%c0_19, %c0_20], %59 {strides = array<i32>} : memref<8x512xf32, #tpu.memory_space<vmem>>, vector<8x512xf32>,
    return
  }
  func.func @transform_0(%arg0: i32) -> (i32, i32) {
    %c0_i32 = arith.constant 0 : i32
    %c0_i32_0 = arith.constant 0 : i32
    return %c0_i32, %arg0 : i32, i32
  }
  func.func @transform_1(%arg0: i32) -> (i32, i32, i32) {
    %c0_i32 = arith.constant 0 : i32
    %c0_i32_0 = arith.constant 0 : i32
    %c0_i32_1 = arith.constant 0 : i32
    %c0_i32_2 = arith.constant 0 : i32
    return %c0_i32, %c0_i32_0, %c0_i32_1 : i32, i32, i32
  }
  func.func @transform_2(%arg0: i32) -> (i32, i32) {
    %c0_i32 = arith.constant 0 : i32
    %c0_i32_0 = arith.constant 0 : i32
    return %c0_i32, %arg0 : i32, i32
  }
}

</mosaic_0001>

<llo_original>
// kernel: tpu_custom_call.1
$region0: #{tpu_custom_call.1}
  #allocation0 [shape = 'u32[]', space=smem, size = 0x4, offset = 0x4, fixed_abs, tag = 'smem constant byte address 0x4 - core index']
  #allocation1 [shape = 'u32[72,128]{1,0:T(1,128)}', space=vmem, size = 0x9000, scoped, tag = 'internal scratch']
  %s0 = inlined_call_operand.hbm [shape: f32[1,512], index: 0, kind: input, shape index: {}]
  %s1 = inlined_call_operand.hbm [shape: bf16[8,8,128], index: 1, kind: input, shape index: {}]
  %s2 = inlined_call_operand.hbm [shape: f32[8,512], index: 2, kind: output, shape index: {}]
  %s3 = sld [smem:[#allocation0]]
  $region58: #{tpu_custom_call.1} parent=0
    _
  %s5 = ssub.s32 1, %s3
  %s6 = scalar_select 0, %s5, %s3
  $region1: #{tpu_custom_call.1} parent=0
    #allocation2 [shape = 'u8[2048]{0}', space=vmem, size = 0x800, scoped, tag = 'input window, operand 0, single buffered']
    #allocation3 [shape = 's32[1]{0}', space=sflag, size = 0x4, scoped, tag = 'scoped memory for tpu_custom_call.1']
    #allocation4 [shape = 's32[1]{0}', space=sflag, size = 0x4, scoped, tag = 'scoped memory for tpu_custom_call.1']
    #allocation5 [shape = 'u8[16384]{0}', space=vmem, size = 0x4000, scoped, tag = 'input window, operand 1, single buffered']
    #allocation6 [shape = 's32[1]{0}', space=sflag, size = 0x4, scoped, tag = 'scoped memory for tpu_custom_call.1']
    #allocation7 [shape = 'u8[16384]{0}', space=vmem, size = 0x4000, scoped, tag = 'output window, operand 0, single buffered']
    %7 = vsyncpa [#allocation3], 0
    %8 = vsyncpa [#allocation6], 0
    %9 = vsyncpa [#allocation4], 0
    // Predicated region
    $region2: #{tpu_custom_call.1} parent=1 // pred_check
      _
    $region3: #{tpu_custom_call.1} parent=1 // pred_check_branch
      %11 = sbr.rel (0) target = $region5
    $region4: #{tpu_custom_call.1} parent=1 // pred_region
      %13 = vsyncadd [#allocation3], 0
      %s15 = sshll.u32 %s0, 4
      %s16 = int_to_ptr.hbm [resolvable:$true] %s15
      %s17 = sshll.u32 [#allocation2], 4
      %s18 = int_to_ptr.vmem [resolvable:$true] %s17
      %20 = dma.hbm_to_vmem [thread:$0]  %s16, 64, %s18, [#allocation3]
    $region5: #{tpu_custom_call.1} parent=1 // pred_fallthru
      _
    // Predicated region
    $region6: #{tpu_custom_call.1} parent=1 // pred_check
      _
    $region7: #{tpu_custom_call.1} parent=1 // pred_check_branch
      %22 = sbr.rel (0) target = $region9
    $region8: #{tpu_custom_call.1} parent=1 // pred_region
      %24 = vsyncadd [#allocation6], 0
      %s25 = sshll.u32 %s1, 4
      %s26 = int_to_ptr.hbm [resolvable:$true] %s25
      %s27 = sshll.u32 [#allocation5], 4
      %s28 = int_to_ptr.vmem [resolvable:$true] %s27
      %33 = dma.hbm_to_vmem [thread:$0]  %s26, 512, %s28, [#allocation6], 64, 64, 4
    $region9: #{tpu_custom_call.1} parent=1 // pred_fallthru
      _
    // Predicated region
    $region10: #{tpu_custom_call.1} parent=1 // pred_check
      _
    $region11: #{tpu_custom_call.1} parent=1 // pred_check_branch
      %35 = sbr.rel (0) target = $region13
    $region12: #{tpu_custom_call.1} parent=1 // pred_region
      %37 = dma.done [#allocation3], 64
    $region13: #{tpu_custom_call.1} parent=1 // pred_fallthru
      _
    // Predicated region
    $region14: #{tpu_custom_call.1} parent=1 // pred_check
      _
    $region15: #{tpu_custom_call.1} parent=1 // pred_check_branch
      %39 = sbr.rel (0) target = $region17
    $region16: #{tpu_custom_call.1} parent=1 // pred_region
      %41 = dma.done [#allocation6], 512
    $region17: #{tpu_custom_call.1} parent=1 // pred_fallthru
      _
    %v42 = vld [vmem:[#allocation2] sm:$0xf]
    %v43 = vcvt.f32.s32.to.zero.pseudo %v42
    %vm44 = vcmp.lt.s32.totalorder %v43, 0
    %v45 = vsub.s32 0, %v43
    %v46 = vsel %vm44, %v45, %v43
    %v47 = vshrl.u32 %v46, 9
    %v48 = vand.u32 %v46, 511
    %v49 = vsub.s32 0, %v48
    %v50 = vsel %vm44, %v49, %v48
    %vm51 = vcmp.ne.s32.totalorder %v50, 0
    %vm52 = vcmp.lt.s32.totalorder %v50, 0
    %vm53 = vmand %vm52, %vm51
    %v54 = vadd.s32 %v50, 512
    %v55 = vsel %vm53, %v54, %v50
    %v56 = vperm.slane %v55, 0
    %v57 = vperm.slane %v55, 1
    %v58 = vperm.slane %v55, 2
    %v59 = vperm.slane %v55, 3
    %vm60 = vcmask 1040384
    %v61 = vsel %vm60, %v56, 2147483647
    %v62 = vsel %vm60, %v57, 2147483647
    %v63 = vsel %vm60, %v58, 2147483647
    %v64 = vsel %vm60, %v59, 2147483647
    %vm65 = vcmp.lt.s32.totalorder %v61, %v62
    %v66 = vsel %vm65, %v61, %v62
    %vm67 = vcmp.lt.s32.totalorder %v63, %v64
    %v68 = vsel %vm67, %v63, %v64
    %vm69 = vcmp.lt.s32.totalorder %v66, %v68
    %v70 = vsel %vm69, %v66, %v68
    %v71 = vand.u32 %v70, 65535
    %v72 = vshra.s32 %v70, 16
    %v73 = vcvt.s32.f32 %v71
    %v74 = vcvt.s32.f32 %v72
    %75 = vmin.xlane.f32.xlu0 %v74
    %v76 = vpop.xlane.xlu0 %75
    %vm77 = vcmp.eq.f32.partialorder %v74, %v76
    %v78 = vsel %vm77, %v73, inf
    %79 = vmin.xlane.f32.xlu0 %v78
    %v80 = vpop.xlane.xlu0 %79
    %v81 = vcvt.f32.s32 %v80
    %v82 = vcvt.f32.s32 %v76
    %v83 = vshll.u32 %v82, 16
    %v84 = vadd.s32 %v83, %v81
    %v85 = vrot.slane %v84, 4
    %vm86 = vcmp.lt.s32.totalorder %v84, %v85
    %v87 = vsel %vm86, %v84, %v85
    %v88 = vrot.slane %v87, 2
    %vm89 = vcmp.lt.s32.totalorder %v87, %v88
    %v90 = vsel %vm89, %v87, %v88
    %v91 = vrot.slane %v90, 1
    %vm92 = vcmp.lt.s32.totalorder %v90, %v91
    %v93 = vsel %vm92, %v90, %v91
    %s94 = vtos %v93
    %v95 = vsel %vm60, %v56, 2147483648
    %v96 = vsel %vm60, %v57, 2147483648
    %v97 = vsel %vm60, %v58, 2147483648
    %v98 = vsel %vm60, %v59, 2147483648
    %vm99 = vcmp.gt.s32.totalorder %v95, %v96
    %v100 = vsel %vm99, %v95, %v96
    %vm101 = vcmp.gt.s32.totalorder %v97, %v98
    %v102 = vsel %vm101, %v97, %v98
    %vm103 = vcmp.gt.s32.totalorder %v100, %v102
    %v104 = vsel %vm103, %v100, %v102
    %v105 = vand.u32 %v104, 65535
    %v106 = vshra.s32 %v104, 16
    %v107 = vcvt.s32.f32 %v105
    %v108 = vcvt.s32.f32 %v106
    %109 = vmax.xlane.f32.xlu0 %v108
    %v110 = vpop.xlane.xlu0 %109
    %vm111 = vcmp.eq.f32.partialorder %v108, %v110
    %v112 = vsel %vm111, %v107, -inf
    %113 = vmax.xlane.f32.xlu0 %v112
    %v114 = vpop.xlane.xlu0 %113
    %v115 = vcvt.f32.s32 %v114
    %v116 = vcvt.f32.s32 %v110
    %v117 = vshll.u32 %v116, 16
    %v118 = vadd.s32 %v117, %v115
    %v119 = vrot.slane %v118, 4
    %vm120 = vcmp.gt.s32.totalorder %v118, %v119
    %v121 = vsel %vm120, %v118, %v119
    %v122 = vrot.slane %v121, 2
    %vm123 = vcmp.gt.s32.totalorder %v121, %v122
    %v124 = vsel %vm123, %v121, %v122
    %v125 = vrot.slane %v124, 1
    %vm126 = vcmp.gt.s32.totalorder %v124, %v125
    %v127 = vsel %vm126, %v124, %v125
    %s128 = vtos %v127
    %v129 = vlaneseq
    %v130 = vshrl.u32 %v129, 7
    %v131 = vadd.s32 %v130, 8
    %v132 = vadd.s32 %v130, 16
    %v133 = vadd.s32 %v130, 24
    %v134 = vadd.s32 %v130, 32
    %v135 = vadd.s32 %v130, 40
    %v136 = vadd.s32 %v130, 48
    %v137 = vadd.s32 %v130, 56
    %v138 = vadd.s32 %v130, 64
    %v139 = vadd.s32 %v130, 72
    %v140 = vadd.s32 %v130, 80
    %v141 = vadd.s32 %v130, 88
    %v142 = vadd.s32 %v130, 96
    %v143 = vadd.s32 %v130, 104
    %v144 = vadd.s32 %v130, 112
    %v145 = vadd.s32 %v130, 120
    %p146 = scmp.ge.s32.totalorder %s128, 0
    %p147 = scmp.lt.s32.totalorder %s94, 128
    %p148 = pnand %p146, %p147
    %p149 = pneg %p148
    // Predicated region
    $region18: #{tpu_custom_call.1} parent=1 // pred_check
      _
    $region19: #{tpu_custom_call.1} parent=1 // pred_check_branch
      %151 = sbr.rel (%p148) target = $region21
    $region20: #{tpu_custom_call.1} parent=1 // pred_region
      %vm152 = vcmp.eq.s32.totalorder %v130, %v56
      %vm153 = vcmp.eq.s32.totalorder %v130, %v57
      %vm154 = vcmp.eq.s32.totalorder %v130, %v58
      %vm155 = vcmp.eq.s32.totalorder %v130, %v59
      %vm156 = vcmp.eq.s32.totalorder %v131, %v56
      %vm157 = vcmp.eq.s32.totalorder %v131, %v57
      %vm158 = vcmp.eq.s32.totalorder %v131, %v58
      %vm159 = vcmp.eq.s32.totalorder %v131, %v59
      %vm160 = vcmp.eq.s32.totalorder %v132, %v56
      %vm161 = vcmp.eq.s32.totalorder %v132, %v57
      %vm162 = vcmp.eq.s32.totalorder %v132, %v58
      %vm163 = vcmp.eq.s32.totalorder %v132, %v59
      %vm164 = vcmp.eq.s32.totalorder %v133, %v56
      %vm165 = vcmp.eq.s32.totalorder %v133, %v57
      %vm166 = vcmp.eq.s32.totalorder %v133, %v58
      %vm167 = vcmp.eq.s32.totalorder %v133, %v59
      %vm168 = vcmp.eq.s32.totalorder %v134, %v56
      %vm169 = vcmp.eq.s32.totalorder %v134, %v57
      %vm170 = vcmp.eq.s32.totalorder %v134, %v58
      %vm171 = vcmp.eq.s32.totalorder %v134, %v59
      %vm172 = vcmp.eq.s32.totalorder %v135, %v56
      %vm173 = vcmp.eq.s32.totalorder %v135, %v57
      %vm174 = vcmp.eq.s32.totalorder %v135, %v58
      %vm175 = vcmp.eq.s32.totalorder %v135, %v59
      %vm176 = vcmp.eq.s32.totalorder %v136, %v56
      %vm177 = vcmp.eq.s32.totalorder %v136, %v57
      %vm178 = vcmp.eq.s32.totalorder %v136, %v58
      %vm179 = vcmp.eq.s32.totalorder %v136, %v59
      %vm180 = vcmp.eq.s32.totalorder %v137, %v56
      %vm181 = vcmp.eq.s32.totalorder %v137, %v57
      %vm182 = vcmp.eq.s32.totalorder %v137, %v58
      %vm183 = vcmp.eq.s32.totalorder %v137, %v59
      %vm184 = vcmp.eq.s32.totalorder %v138, %v56
      %vm185 = vcmp.eq.s32.totalorder %v138, %v57
      %vm186 = vcmp.eq.s32.totalorder %v138, %v58
      %vm187 = vcmp.eq.s32.totalorder %v138, %v59
      %vm188 = vcmp.eq.s32.totalorder %v139, %v56
      %vm189 = vcmp.eq.s32.totalorder %v139, %v57
      %vm190 = vcmp.eq.s32.totalorder %v139, %v58
      %vm191 = vcmp.eq.s32.totalorder %v139, %v59
      %vm192 = vcmp.eq.s32.totalorder %v140, %v56
      %vm193 = vcmp.eq.s32.totalorder %v140, %v57
      %vm194 = vcmp.eq.s32.totalorder %v140, %v58
      %vm195 = vcmp.eq.s32.totalorder %v140, %v59
      %vm196 = vcmp.eq.s32.totalorder %v141, %v56
      %vm197 = vcmp.eq.s32.totalorder %v141, %v57
      %vm198 = vcmp.eq.s32.totalorder %v141, %v58
      %vm199 = vcmp.eq.s32.totalorder %v141, %v59
      %vm200 = vcmp.eq.s32.totalorder %v142, %v56
      %vm201 = vcmp.eq.s32.totalorder %v142, %v57
      %vm202 = vcmp.eq.s32.totalorder %v142, %v58
      %vm203 = vcmp.eq.s32.totalorder %v142, %v59
      %vm204 = vcmp.eq.s32.totalorder %v143, %v56
      %vm205 = vcmp.eq.s32.totalorder %v143, %v57
      %vm206 = vcmp.eq.s32.totalorder %v143, %v58
      %vm207 = vcmp.eq.s32.totalorder %v143, %v59
      %vm208 = vcmp.eq.s32.totalorder %v144, %v56
      %vm209 = vcmp.eq.s32.totalorder %v144, %v57
      %vm210 = vcmp.eq.s32.totalorder %v144, %v58
      %vm211 = vcmp.eq.s32.totalorder %v144, %v59
      %vm212 = vcmp.eq.s32.totalorder %v145, %v56
      %vm213 = vcmp.eq.s32.totalorder %v145, %v57
      %vm214 = vcmp.eq.s32.totalorder %v145, %v58
      %vm215 = vcmp.eq.s32.totalorder %v145, %v59
      %v216 = vsel %vm152, 1, 0
      %v217 = vsel %vm153, 1, 0
      %v218 = vsel %vm154, 1, 0
      %v219 = vsel %vm155, 1, 0
      %v220 = vsel %vm156, 1, 0
      %v221 = vsel %vm157, 1, 0
      %v222 = vsel %vm158, 1, 0
      %v223 = vsel %vm159, 1, 0
      %v224 = vsel %vm160, 1, 0
      %v225 = vsel %vm161, 1, 0
      %v226 = vsel %vm162, 1, 0
      %v227 = vsel %vm163, 1, 0
      %v228 = vsel %vm164, 1, 0
      %v229 = vsel %vm165, 1, 0
      %v230 = vsel %vm166, 1, 0
      %v231 = vsel %vm167, 1, 0
      %v232 = vsel %vm168, 1, 0
      %v233 = vsel %vm169, 1, 0
      %v234 = vsel %vm170, 1, 0
      %v235 = vsel %vm171, 1, 0
      %v236 = vsel %vm172, 1, 0
      %v237 = vsel %vm173, 1, 0
      %v238 = vsel %vm174, 1, 0
      %v239 = vsel %vm175, 1, 0
      %v240 = vsel %vm176, 1, 0
      %v241 = vsel %vm177, 1, 0
      %v242 = vsel %vm178, 1, 0
      %v243 = vsel %vm179, 1, 0
      %v244 = vsel %vm180, 1, 0
      %v245 = vsel %vm181, 1, 0
      %v246 = vsel %vm182, 1, 0
      %v247 = vsel %vm183, 1, 0
      %v248 = vsel %vm184, 1, 0
      %v249 = vsel %vm185, 1, 0
      %v250 = vsel %vm186, 1, 0
      %v251 = vsel %vm187, 1, 0
      %v252 = vsel %vm188, 1, 0
      %v253 = vsel %vm189, 1, 0
      %v254 = vsel %vm190, 1, 0
      %v255 = vsel %vm191, 1, 0
      %v256 = vsel %vm192, 1, 0
      %v257 = vsel %vm193, 1, 0
      %v258 = vsel %vm194, 1, 0
      %v259 = vsel %vm195, 1, 0
      %v260 = vsel %vm196, 1, 0
      %v261 = vsel %vm197, 1, 0
      %v262 = vsel %vm198, 1, 0
      %v263 = vsel %vm199, 1, 0
      %v264 = vsel %vm200, 1, 0
      %v265 = vsel %vm201, 1, 0
      %v266 = vsel %vm202, 1, 0
      %v267 = vsel %vm203, 1, 0
      %v268 = vsel %vm204, 1, 0
      %v269 = vsel %vm205, 1, 0
      %v270 = vsel %vm206, 1, 0
      %v271 = vsel %vm207, 1, 0
      %v272 = vsel %vm208, 1, 0
      %v273 = vsel %vm209, 1, 0
      %v274 = vsel %vm210, 1, 0
      %v275 = vsel %vm211, 1, 0
      %v276 = vsel %vm212, 1, 0
      %v277 = vsel %vm213, 1, 0
      %v278 = vsel %vm214, 1, 0
      %v279 = vsel %vm215, 1, 0
      %v280 = vcvt.s32.f32 %v216
      %v281 = vcvt.s32.f32 %v217
      %v282 = vcvt.s32.f32 %v218
      %v283 = vcvt.s32.f32 %v219
      %v284 = vcvt.s32.f32 %v220
      %v285 = vcvt.s32.f32 %v221
      %v286 = vcvt.s32.f32 %v222
      %v287 = vcvt.s32.f32 %v223
      %v288 = vcvt.s32.f32 %v224
      %v289 = vcvt.s32.f32 %v225
      %v290 = vcvt.s32.f32 %v226
      %v291 = vcvt.s32.f32 %v227
      %v292 = vcvt.s32.f32 %v228
      %v293 = vcvt.s32.f32 %v229
      %v294 = vcvt.s32.f32 %v230
      %v295 = vcvt.s32.f32 %v231
      %v296 = vcvt.s32.f32 %v232
      %v297 = vcvt.s32.f32 %v233
      %v298 = vcvt.s32.f32 %v234
      %v299 = vcvt.s32.f32 %v235
      %v300 = vcvt.s32.f32 %v236
      %v301 = vcvt.s32.f32 %v237
      %v302 = vcvt.s32.f32 %v238
      %v303 = vcvt.s32.f32 %v239
      %v304 = vcvt.s32.f32 %v240
      %v305 = vcvt.s32.f32 %v241
      %v306 = vcvt.s32.f32 %v242
      %v307 = vcvt.s32.f32 %v243
      %v308 = vcvt.s32.f32 %v244
      %v309 = vcvt.s32.f32 %v245
      %v310 = vcvt.s32.f32 %v246
      %v311 = vcvt.s32.f32 %v247
      %v312 = vcvt.s32.f32 %v248
      %v313 = vcvt.s32.f32 %v249
      %v314 = vcvt.s32.f32 %v250
      %v315 = vcvt.s32.f32 %v251
      %v316 = vcvt.s32.f32 %v252
      %v317 = vcvt.s32.f32 %v253
      %v318 = vcvt.s32.f32 %v254
      %v319 = vcvt.s32.f32 %v255
      %v320 = vcvt.s32.f32 %v256
      %v321 = vcvt.s32.f32 %v257
      %v322 = vcvt.s32.f32 %v258
      %v323 = vcvt.s32.f32 %v259
      %v324 = vcvt.s32.f32 %v260
      %v325 = vcvt.s32.f32 %v261
      %v326 = vcvt.s32.f32 %v262
      %v327 = vcvt.s32.f32 %v263
      %v328 = vcvt.s32.f32 %v264
      %v329 = vcvt.s32.f32 %v265
      %v330 = vcvt.s32.f32 %v266
      %v331 = vcvt.s32.f32 %v267
      %v332 = vcvt.s32.f32 %v268
      %v333 = vcvt.s32.f32 %v269
      %v334 = vcvt.s32.f32 %v270
      %v335 = vcvt.s32.f32 %v271
      %v336 = vcvt.s32.f32 %v272
      %v337 = vcvt.s32.f32 %v273
      %v338 = vcvt.s32.f32 %v274
      %v339 = vcvt.s32.f32 %v275
      %v340 = vcvt.s32.f32 %v276
      %v341 = vcvt.s32.f32 %v277
      %v342 = vcvt.s32.f32 %v278
      %v343 = vcvt.s32.f32 %v279
      %v344 = vpack.c.bf16 %v284, %v280
      %v345 = vpack.c.bf16 %v285, %v281
      %v346 = vpack.c.bf16 %v286, %v282
      %v347 = vpack.c.bf16 %v287, %v283
      %v348 = vpack.c.bf16 %v292, %v288
      %v349 = vpack.c.bf16 %v293, %v289
      %v350 = vpack.c.bf16 %v294, %v290
      %v351 = vpack.c.bf16 %v295, %v291
      %v352 = vpack.c.bf16 %v300, %v296
      %v353 = vpack.c.bf16 %v301, %v297
      %v354 = vpack.c.bf16 %v302, %v298
      %v355 = vpack.c.bf16 %v303, %v299
      %v356 = vpack.c.bf16 %v308, %v304
      %v357 = vpack.c.bf16 %v309, %v305
      %v358 = vpack.c.bf16 %v310, %v306
      %v359 = vpack.c.bf16 %v311, %v307
      %v360 = vpack.c.bf16 %v316, %v312
      %v361 = vpack.c.bf16 %v317, %v313
      %v362 = vpack.c.bf16 %v318, %v314
      %v363 = vpack.c.bf16 %v319, %v315
      %v364 = vpack.c.bf16 %v324, %v320
      %v365 = vpack.c.bf16 %v325, %v321
      %v366 = vpack.c.bf16 %v326, %v322
      %v367 = vpack.c.bf16 %v327, %v323
      %v368 = vpack.c.bf16 %v332, %v328
      %v369 = vpack.c.bf16 %v333, %v329
      %v370 = vpack.c.bf16 %v334, %v330
      %v371 = vpack.c.bf16 %v335, %v331
      %v372 = vpack.c.bf16 %v340, %v336
      %v373 = vpack.c.bf16 %v341, %v337
      %v374 = vpack.c.bf16 %v342, %v338
      %v375 = vpack.c.bf16 %v343, %v339
      %v376 = vld [vmem:[#allocation5] sm:$0xf]
      %s377 = scalar_lea.vmem [#allocation5], 16
      %v378 = vld [vmem:[%s377] sm:$0xf]
      %379 = vmatpush.bf16.msra.mxu0 %v372
      %380 = vmatpush.bf16.msra.mxu0 %v368
      %381 = vmatpush.bf16.msra.mxu0 %v364
      %382 = vmatpush.bf16.msra.mxu0 %v360
      %383 = vmatpush.bf16.msra.mxu0 %v356
      %384 = vmatpush.bf16.msra.mxu0 %v352
      %385 = vmatpush.bf16.msra.mxu0 %v348
      %386 = vmatpush.bf16.msra.mxu0 %v344
      %387 = vmatmul.bf16.gmra.mxu0 %v378
      %v388 = vpop.f32.mrf.mxu0
      %v389 = vadd.f32 0.0, %v388
      %v390 = vpop.f32.mrf.mxu0
      %391 = vdwg.mxu0
      %392 = vmatpush.bf16.msra.mxu0 %v373
      %393 = vmatpush.bf16.msra.mxu0 %v369
      %394 = vmatpush.bf16.msra.mxu0 %v365
      %395 = vmatpush.bf16.msra.mxu0 %v361
      %396 = vmatpush.bf16.msra.mxu0 %v357
      %397 = vmatpush.bf16.msra.mxu0 %v353
      %398 = vmatpush.bf16.msra.mxu0 %v349
      %399 = vmatpush.bf16.msra.mxu0 %v345
      %400 = vmatmul.bf16.gmra.mxu0 %v378
      %v401 = vpop.f32.mrf.mxu0
      %v402 = vadd.f32 0.0, %v401
      %v403 = vpop.f32.mrf.mxu0
      %404 = vdwg.mxu0
      %405 = vmatpush.bf16.msra.mxu0 %v374
      %406 = vmatpush.bf16.msra.mxu0 %v370
      %407 = vmatpush.bf16.msra.mxu0 %v366
      %408 = vmatpush.bf16.msra.mxu0 %v362
      %409 = vmatpush.bf16.msra.mxu0 %v358
      %410 = vmatpush.bf16.msra.mxu0 %v354
      %411 = vmatpush.bf16.msra.mxu0 %v350
      %412 = vmatpush.bf16.msra.mxu0 %v346
      %413 = vmatmul.bf16.gmra.mxu0 %v378
      %v414 = vpop.f32.mrf.mxu0
      %v415 = vadd.f32 0.0, %v414
      %v416 = vpop.f32.mrf.mxu0
      %417 = vdwg.mxu0
      %418 = vmatpush.bf16.msra.mxu0 %v375
      %419 = vmatpush.bf16.msra.mxu0 %v371
      %420 = vmatpush.bf16.msra.mxu0 %v367
      %421 = vmatpush.bf16.msra.mxu0 %v363
      %422 = vmatpush.bf16.msra.mxu0 %v359
      %423 = vmatpush.bf16.msra.mxu0 %v355
      %424 = vmatpush.bf16.msra.mxu0 %v351
      %425 = vmatpush.bf16.msra.mxu0 %v347
      %426 = vmatmul.bf16.gmra.mxu0 %v378
      %v427 = vpop.f32.mrf.mxu0
      %v428 = vadd.f32 0.0, %v427
      %v429 = vpop.f32.mrf.mxu0
      %430 = vdwg.mxu0
      %431 = vmatpush.bf16.msra.mxu0 %v372
      %432 = vmatpush.bf16.msra.mxu0 %v368
      %433 = vmatpush.bf16.msra.mxu0 %v364
      %434 = vmatpush.bf16.msra.mxu0 %v360
      %435 = vmatpush.bf16.msra.mxu0 %v356
      %436 = vmatpush.bf16.msra.mxu0 %v352
      %437 = vmatpush.bf16.msra.mxu0 %v348
      %438 = vmatpush.bf16.msra.mxu0 %v344
      %439 = vmatmul.bf16.gmra.mxu0 %v376
      %v440 = vpop.f32.mrf.mxu0
      %v441 = vadd.f32 %v389, %v440
      %v442 = vpop.f32.mrf.mxu0
      %443 = vdwg.mxu0
      %444 = vmatpush.bf16.msra.mxu0 %v373
      %445 = vmatpush.bf16.msra.mxu0 %v369
      %446 = vmatpush.bf16.msra.mxu0 %v365
      %447 = vmatpush.bf16.msra.mxu0 %v361
      %448 = vmatpush.bf16.msra.mxu0 %v357
      %449 = vmatpush.bf16.msra.mxu0 %v353
      %450 = vmatpush.bf16.msra.mxu0 %v349
      %451 = vmatpush.bf16.msra.mxu0 %v345
      %452 = vmatmul.bf16.gmra.mxu0 %v376
      %v453 = vpop.f32.mrf.mxu0
      %v454 = vadd.f32 %v402, %v453
      %v455 = vpop.f32.mrf.mxu0
      %456 = vdwg.mxu0
      %457 = vmatpush.bf16.msra.mxu0 %v374
      %458 = vmatpush.bf16.msra.mxu0 %v370
      %459 = vmatpush.bf16.msra.mxu0 %v366
      %460 = vmatpush.bf16.msra.mxu0 %v362
      %461 = vmatpush.bf16.msra.mxu0 %v358
      %462 = vmatpush.bf16.msra.mxu0 %v354
      %463 = vmatpush.bf16.msra.mxu0 %v350
      %464 = vmatpush.bf16.msra.mxu0 %v346
      %465 = vmatmul.bf16.gmra.mxu0 %v376
      %v466 = vpop.f32.mrf.mxu0
      %v467 = vadd.f32 %v415, %v466
      %v468 = vpop.f32.mrf.mxu0
      %469 = vdwg.mxu0
      %470 = vmatpush.bf16.msra.mxu0 %v375
      %471 = vmatpush.bf16.msra.mxu0 %v371
      %472 = vmatpush.bf16.msra.mxu0 %v367
      %473 = vmatpush.bf16.msra.mxu0 %v363
      %474 = vmatpush.bf16.msra.mxu0 %v359
      %475 = vmatpush.bf16.msra.mxu0 %v355
      %476 = vmatpush.bf16.msra.mxu0 %v351
      %477 = vmatpush.bf16.msra.mxu0 %v347
      %478 = vmatmul.bf16.gmra.mxu0 %v376
      %v479 = vpop.f32.mrf.mxu0
      %v480 = vadd.f32 %v428, %v479
      %v481 = vpop.f32.mrf.mxu0
      %482 = vdwg.mxu0
    $region21: #{tpu_custom_call.1} parent=1 // pred_fallthru
      %v483 = vphi 0, %v441
      %v484 = vphi 0, %v454
      %v485 = vphi 0, %v467
      %v486 = vphi 0, %v480
    // Predicated region
    $region22: #{tpu_custom_call.1} parent=1 // pred_check
      %p487 = pneg %p148
    $region23: #{tpu_custom_call.1} parent=1 // pred_check_branch
      %489 = sbr.rel (%p487) target = $region25
    $region24: #{tpu_custom_call.1} parent=1 // pred_region
      _
    $region25: #{tpu_custom_call.1} parent=1 // pred_fallthru
      %v490 = vphi %v483, 0.0
      %v491 = vphi %v484, 0.0
      %v492 = vphi %v485, 0.0
      %v493 = vphi %v486, 0.0
    %p494 = scmp.ge.s32.totalorder %s128, 128
    %p495 = scmp.lt.s32.totalorder %s94, 256
    %p496 = pnand %p494, %p495
    %p497 = pneg %p496
    // Predicated region
    $region26: #{tpu_custom_call.1} parent=1 // pred_check
      _
    $region27: #{tpu_custom_call.1} parent=1 // pred_check_branch
      %499 = sbr.rel (%p496) target = $region29
    $region28: #{tpu_custom_call.1} parent=1 // pred_region
      %v500 = vsub.s32 %v55, 128
      %v501 = vperm.slane %v500, 0
      %v502 = vperm.slane %v500, 1
      %v503 = vperm.slane %v500, 2
      %v504 = vperm.slane %v500, 3
      %vm505 = vcmp.eq.s32.totalorder %v130, %v501
      %vm506 = vcmp.eq.s32.totalorder %v130, %v502
      %vm507 = vcmp.eq.s32.totalorder %v130, %v503
      %vm508 = vcmp.eq.s32.totalorder %v130, %v504
      %vm509 = vcmp.eq.s32.totalorder %v131, %v501
      %vm510 = vcmp.eq.s32.totalorder %v131, %v502
      %vm511 = vcmp.eq.s32.totalorder %v131, %v503
      %vm512 = vcmp.eq.s32.totalorder %v131, %v504
      %vm513 = vcmp.eq.s32.totalorder %v132, %v501
      %vm514 = vcmp.eq.s32.totalorder %v132, %v502
      %vm515 = vcmp.eq.s32.totalorder %v132, %v503
      %vm516 = vcmp.eq.s32.totalorder %v132, %v504
      %vm517 = vcmp.eq.s32.totalorder %v133, %v501
      %vm518 = vcmp.eq.s32.totalorder %v133, %v502
      %vm519 = vcmp.eq.s32.totalorder %v133, %v503
      %vm520 = vcmp.eq.s32.totalorder %v133, %v504
      %vm521 = vcmp.eq.s32.totalorder %v134, %v501
      %vm522 = vcmp.eq.s32.totalorder %v134, %v502
      %vm523 = vcmp.eq.s32.totalorder %v134, %v503
      %vm524 = vcmp.eq.s32.totalorder %v134, %v504
      %vm525 = vcmp.eq.s32.totalorder %v135, %v501
      %vm526 = vcmp.eq.s32.totalorder %v135, %v502
      %vm527 = vcmp.eq.s32.totalorder %v135, %v503
      %vm528 = vcmp.eq.s32.totalorder %v135, %v504
      %vm529 = vcmp.eq.s32.totalorder %v136, %v501
      %vm530 = vcmp.eq.s32.totalorder %v136, %v502
      %vm531 = vcmp.eq.s32.totalorder %v136, %v503
      %vm532 = vcmp.eq.s32.totalorder %v136, %v504
      %vm533 = vcmp.eq.s32.totalorder %v137, %v501
      %vm534 = vcmp.eq.s32.totalorder %v137, %v502
      %vm535 = vcmp.eq.s32.totalorder %v137, %v503
      %vm536 = vcmp.eq.s32.totalorder %v137, %v504
      %vm537 = vcmp.eq.s32.totalorder %v138, %v501
      %vm538 = vcmp.eq.s32.totalorder %v138, %v502
      %vm539 = vcmp.eq.s32.totalorder %v138, %v503
      %vm540 = vcmp.eq.s32.totalorder %v138, %v504
      %vm541 = vcmp.eq.s32.totalorder %v139, %v501
      %vm542 = vcmp.eq.s32.totalorder %v139, %v502
      %vm543 = vcmp.eq.s32.totalorder %v139, %v503
      %vm544 = vcmp.eq.s32.totalorder %v139, %v504
      %vm545 = vcmp.eq.s32.totalorder %v140, %v501
      %vm546 = vcmp.eq.s32.totalorder %v140, %v502
      %vm547 = vcmp.eq.s32.totalorder %v140, %v503
      %vm548 = vcmp.eq.s32.totalorder %v140, %v504
      %vm549 = vcmp.eq.s32.totalorder %v141, %v501
      %vm550 = vcmp.eq.s32.totalorder %v141, %v502
      %vm551 = vcmp.eq.s32.totalorder %v141, %v503
      %vm552 = vcmp.eq.s32.totalorder %v141, %v504
      %vm553 = vcmp.eq.s32.totalorder %v142, %v501
      %vm554 = vcmp.eq.s32.totalorder %v142, %v502
      %vm555 = vcmp.eq.s32.totalorder %v142, %v503
      %vm556 = vcmp.eq.s32.totalorder %v142, %v504
      %vm557 = vcmp.eq.s32.totalorder %v143, %v501
      %vm558 = vcmp.eq.s32.totalorder %v143, %v502
      %vm559 = vcmp.eq.s32.totalorder %v143, %v503
      %vm560 = vcmp.eq.s32.totalorder %v143, %v504
      %vm561 = vcmp.eq.s32.totalorder %v144, %v501
      %vm562 = vcmp.eq.s32.totalorder %v144, %v502
      %vm563 = vcmp.eq.s32.totalorder %v144, %v503
      %vm564 = vcmp.eq.s32.totalorder %v144, %v504
      %vm565 = vcmp.eq.s32.totalorder %v145, %v501
      %vm566 = vcmp.eq.s32.totalorder %v145, %v502
      %vm567 = vcmp.eq.s32.totalorder %v145, %v503
      %vm568 = vcmp.eq.s32.totalorder %v145, %v504
      %v569 = vsel %vm505, 1, 0
      %v570 = vsel %vm506, 1, 0
      %v571 = vsel %vm507, 1, 0
      %v572 = vsel %vm508, 1, 0
      %v573 = vsel %vm509, 1, 0
      %v574 = vsel %vm510, 1, 0
      %v575 = vsel %vm511, 1, 0
      %v576 = vsel %vm512, 1, 0
      %v577 = vsel %vm513, 1, 0
      %v578 = vsel %vm514, 1, 0
      %v579 = vsel %vm515, 1, 0
      %v580 = vsel %vm516, 1, 0
      %v581 = vsel %vm517, 1, 0
      %v582 = vsel %vm518, 1, 0
      %v583 = vsel %vm519, 1, 0
      %v584 = vsel %vm520, 1, 0
      %v585 = vsel %vm521, 1, 0
      %v586 = vsel %vm522, 1, 0
      %v587 = vsel %vm523, 1, 0
      %v588 = vsel %vm524, 1, 0
      %v589 = vsel %vm525, 1, 0
      %v590 = vsel %vm526, 1, 0
      %v591 = vsel %vm527, 1, 0
      %v592 = vsel %vm528, 1, 0
      %v593 = vsel %vm529, 1, 0
      %v594 = vsel %vm530, 1, 0
      %v595 = vsel %vm531, 1, 0
      %v596 = vsel %vm532, 1, 0
      %v597 = vsel %vm533, 1, 0
      %v598 = vsel %vm534, 1, 0
      %v599 = vsel %vm535, 1, 0
      %v600 = vsel %vm536, 1, 0
      %v601 = vsel %vm537, 1, 0
      %v602 = vsel %vm538, 1, 0
      %v603 = vsel %vm539, 1, 0
      %v604 = vsel %vm540, 1, 0
      %v605 = vsel %vm541, 1, 0
      %v606 = vsel %vm542, 1, 0
      %v607 = vsel %vm543, 1, 0
      %v608 = vsel %vm544, 1, 0
      %v609 = vsel %vm545, 1, 0
      %v610 = vsel %vm546, 1, 0
      %v611 = vsel %vm547, 1, 0
      %v612 = vsel %vm548, 1, 0
      %v613 = vsel %vm549, 1, 0
      %v614 = vsel %vm550, 1, 0
      %v615 = vsel %vm551, 1, 0
      %v616 = vsel %vm552, 1, 0
      %v617 = vsel %vm553, 1, 0
      %v618 = vsel %vm554, 1, 0
      %v619 = vsel %vm555, 1, 0
      %v620 = vsel %vm556, 1, 0
      %v621 = vsel %vm557, 1, 0
      %v622 = vsel %vm558, 1, 0
      %v623 = vsel %vm559, 1, 0
      %v624 = vsel %vm560, 1, 0
      %v625 = vsel %vm561, 1, 0
      %v626 = vsel %vm562, 1, 0
      %v627 = vsel %vm563, 1, 0
      %v628 = vsel %vm564, 1, 0
      %v629 = vsel %vm565, 1, 0
      %v630 = vsel %vm566, 1, 0
      %v631 = vsel %vm567, 1, 0
      %v632 = vsel %vm568, 1, 0
      %v633 = vcvt.s32.f32 %v569
      %v634 = vcvt.s32.f32 %v570
      %v635 = vcvt.s32.f32 %v571
      %v636 = vcvt.s32.f32 %v572
      %v637 = vcvt.s32.f32 %v573
      %v638 = vcvt.s32.f32 %v574
      %v639 = vcvt.s32.f32 %v575
      %v640 = vcvt.s32.f32 %v576
      %v641 = vcvt.s32.f32 %v577
      %v642 = vcvt.s32.f32 %v578
      %v643 = vcvt.s32.f32 %v579
      %v644 = vcvt.s32.f32 %v580
      %v645 = vcvt.s32.f32 %v581
      %v646 = vcvt.s32.f32 %v582
      %v647 = vcvt.s32.f32 %v583
      %v648 = vcvt.s32.f32 %v584
      %v649 = vcvt.s32.f32 %v585
      %v650 = vcvt.s32.f32 %v586
      %v651 = vcvt.s32.f32 %v587
      %v652 = vcvt.s32.f32 %v588
      %v653 = vcvt.s32.f32 %v589
      %v654 = vcvt.s32.f32 %v590
      %v655 = vcvt.s32.f32 %v591
      %v656 = vcvt.s32.f32 %v592
      %v657 = vcvt.s32.f32 %v593
      %v658 = vcvt.s32.f32 %v594
      %v659 = vcvt.s32.f32 %v595
      %v660 = vcvt.s32.f32 %v596
      %v661 = vcvt.s32.f32 %v597
      %v662 = vcvt.s32.f32 %v598
      %v663 = vcvt.s32.f32 %v599
      %v664 = vcvt.s32.f32 %v600
      %v665 = vcvt.s32.f32 %v601
      %v666 = vcvt.s32.f32 %v602
      %v667 = vcvt.s32.f32 %v603
      %v668 = vcvt.s32.f32 %v604
      %v669 = vcvt.s32.f32 %v605
      %v670 = vcvt.s32.f32 %v606
      %v671 = vcvt.s32.f32 %v607
      %v672 = vcvt.s32.f32 %v608
      %v673 = vcvt.s32.f32 %v609
      %v674 = vcvt.s32.f32 %v610
      %v675 = vcvt.s32.f32 %v611
      %v676 = vcvt.s32.f32 %v612
      %v677 = vcvt.s32.f32 %v613
      %v678 = vcvt.s32.f32 %v614
      %v679 = vcvt.s32.f32 %v615
      %v680 = vcvt.s32.f32 %v616
      %v681 = vcvt.s32.f32 %v617
      %v682 = vcvt.s32.f32 %v618
      %v683 = vcvt.s32.f32 %v619
      %v684 = vcvt.s32.f32 %v620
      %v685 = vcvt.s32.f32 %v621
      %v686 = vcvt.s32.f32 %v622
      %v687 = vcvt.s32.f32 %v623
      %v688 = vcvt.s32.f32 %v624
      %v689 = vcvt.s32.f32 %v625
      %v690 = vcvt.s32.f32 %v626
      %v691 = vcvt.s32.f32 %v627
      %v692 = vcvt.s32.f32 %v628
      %v693 = vcvt.s32.f32 %v629
      %v694 = vcvt.s32.f32 %v630
      %v695 = vcvt.s32.f32 %v631
      %v696 = vcvt.s32.f32 %v632
      %v697 = vpack.c.bf16 %v637, %v633
      %v698 = vpack.c.bf16 %v638, %v634
      %v699 = vpack.c.bf16 %v639, %v635
      %v700 = vpack.c.bf16 %v640, %v636
      %v701 = vpack.c.bf16 %v645, %v641
      %v702 = vpack.c.bf16 %v646, %v642
      %v703 = vpack.c.bf16 %v647, %v643
      %v704 = vpack.c.bf16 %v648, %v644
      %v705 = vpack.c.bf16 %v653, %v649
      %v706 = vpack.c.bf16 %v654, %v650
      %v707 = vpack.c.bf16 %v655, %v651
      %v708 = vpack.c.bf16 %v656, %v652
      %v709 = vpack.c.bf16 %v661, %v657
      %v710 = vpack.c.bf16 %v662, %v658
      %v711 = vpack.c.bf16 %v663, %v659
      %v712 = vpack.c.bf16 %v664, %v660
      %v713 = vpack.c.bf16 %v669, %v665
      %v714 = vpack.c.bf16 %v670, %v666
      %v715 = vpack.c.bf16 %v671, %v667
      %v716 = vpack.c.bf16 %v672, %v668
      %v717 = vpack.c.bf16 %v677, %v673
      %v718 = vpack.c.bf16 %v678, %v674
      %v719 = vpack.c.bf16 %v679, %v675
      %v720 = vpack.c.bf16 %v680, %v676
      %v721 = vpack.c.bf16 %v685, %v681
      %v722 = vpack.c.bf16 %v686, %v682
      %v723 = vpack.c.bf16 %v687, %v683
      %v724 = vpack.c.bf16 %v688, %v684
      %v725 = vpack.c.bf16 %v693, %v689
      %v726 = vpack.c.bf16 %v694, %v690
      %v727 = vpack.c.bf16 %v695, %v691
      %v728 = vpack.c.bf16 %v696, %v692
      %s729 = scalar_lea.vmem [#allocation5], 4
      %v730 = vld [vmem:[%s729] sm:$0xf]
      %731 = vmatpush.bf16.msra.mxu0 %v725
      %732 = vmatpush.bf16.msra.mxu0 %v721
      %733 = vmatpush.bf16.msra.mxu0 %v717
      %734 = vmatpush.bf16.msra.mxu0 %v713
      %735 = vmatpush.bf16.msra.mxu0 %v709
      %736 = vmatpush.bf16.msra.mxu0 %v705
      %737 = vmatpush.bf16.msra.mxu0 %v701
      %738 = vmatpush.bf16.msra.mxu0 %v697
      %739 = vmatmul.bf16.gmra.mxu0 %v730
      %v740 = vpop.f32.mrf.mxu0
      %v741 = vadd.f32 0.0, %v740
      %v742 = vpop.f32.mrf.mxu0
      %743 = vdwg.mxu0
      %744 = vmatpush.bf16.msra.mxu0 %v726
      %745 = vmatpush.bf16.msra.mxu0 %v722
      %746 = vmatpush.bf16.msra.mxu0 %v718
      %747 = vmatpush.bf16.msra.mxu0 %v714
      %748 = vmatpush.bf16.msra.mxu0 %v710
      %749 = vmatpush.bf16.msra.mxu0 %v706
      %750 = vmatpush.bf16.msra.mxu0 %v702
      %751 = vmatpush.bf16.msra.mxu0 %v698
      %752 = vmatmul.bf16.gmra.mxu0 %v730
      %v753 = vpop.f32.mrf.mxu0
      %v754 = vadd.f32 0.0, %v753
      %v755 = vpop.f32.mrf.mxu0
      %756 = vdwg.mxu0
      %757 = vmatpush.bf16.msra.mxu0 %v727
      %758 = vmatpush.bf16.msra.mxu0 %v723
      %759 = vmatpush.bf16.msra.mxu0 %v719
      %760 = vmatpush.bf16.msra.mxu0 %v715
      %761 = vmatpush.bf16.msra.mxu0 %v711
      %762 = vmatpush.bf16.msra.mxu0 %v707
      %763 = vmatpush.bf16.msra.mxu0 %v703
      %764 = vmatpush.bf16.msra.mxu0 %v699
      %765 = vmatmul.bf16.gmra.mxu0 %v730
      %v766 = vpop.f32.mrf.mxu0
      %v767 = vadd.f32 0.0, %v766
      %v768 = vpop.f32.mrf.mxu0
      %769 = vdwg.mxu0
      %770 = vmatpush.bf16.msra.mxu0 %v728
      %771 = vmatpush.bf16.msra.mxu0 %v724
      %772 = vmatpush.bf16.msra.mxu0 %v720
      %773 = vmatpush.bf16.msra.mxu0 %v716
      %774 = vmatpush.bf16.msra.mxu0 %v712
      %775 = vmatpush.bf16.msra.mxu0 %v708
      %776 = vmatpush.bf16.msra.mxu0 %v704
      %777 = vmatpush.bf16.msra.mxu0 %v700
      %778 = vmatmul.bf16.gmra.mxu0 %v730
      %v779 = vpop.f32.mrf.mxu0
      %v780 = vadd.f32 0.0, %v779
      %v781 = vpop.f32.mrf.mxu0
      %782 = vdwg.mxu0
      %v783 = vadd.f32 %v490, %v741
      %v784 = vadd.f32 %v491, %v754
      %v785 = vadd.f32 %v492, %v767
      %v786 = vadd.f32 %v493, %v780
      %s787 = scalar_lea.vmem [#allocation5], 20
      %v788 = vld [vmem:[%s787] sm:$0xf]
      %789 = vmatpush.bf16.msra.mxu0 %v725
      %790 = vmatpush.bf16.msra.mxu0 %v721
      %791 = vmatpush.bf16.msra.mxu0 %v717
      %792 = vmatpush.bf16.msra.mxu0 %v713
      %793 = vmatpush.bf16.msra.mxu0 %v709
      %794 = vmatpush.bf16.msra.mxu0 %v705
      %795 = vmatpush.bf16.msra.mxu0 %v701
      %796 = vmatpush.bf16.msra.mxu0 %v697
      %797 = vmatmul.bf16.gmra.mxu0 %v788
      %v798 = vpop.f32.mrf.mxu0
      %v799 = vadd.f32 0.0, %v798
      %v800 = vpop.f32.mrf.mxu0
      %801 = vdwg.mxu0
      %802 = vmatpush.bf16.msra.mxu0 %v726
      %803 = vmatpush.bf16.msra.mxu0 %v722
      %804 = vmatpush.bf16.msra.mxu0 %v718
      %805 = vmatpush.bf16.msra.mxu0 %v714
      %806 = vmatpush.bf16.msra.mxu0 %v710
      %807 = vmatpush.bf16.msra.mxu0 %v706
      %808 = vmatpush.bf16.msra.mxu0 %v702
      %809 = vmatpush.bf16.msra.mxu0 %v698
      %810 = vmatmul.bf16.gmra.mxu0 %v788
      %v811 = vpop.f32.mrf.mxu0
      %v812 = vadd.f32 0.0, %v811
      %v813 = vpop.f32.mrf.mxu0
      %814 = vdwg.mxu0
      %815 = vmatpush.bf16.msra.mxu0 %v727
      %816 = vmatpush.bf16.msra.mxu0 %v723
      %817 = vmatpush.bf16.msra.mxu0 %v719
      %818 = vmatpush.bf16.msra.mxu0 %v715
      %819 = vmatpush.bf16.msra.mxu0 %v711
      %820 = vmatpush.bf16.msra.mxu0 %v707
      %821 = vmatpush.bf16.msra.mxu0 %v703
      %822 = vmatpush.bf16.msra.mxu0 %v699
      %823 = vmatmul.bf16.gmra.mxu0 %v788
      %v824 = vpop.f32.mrf.mxu0
      %v825 = vadd.f32 0.0, %v824
      %v826 = vpop.f32.mrf.mxu0
      %827 = vdwg.mxu0
      %828 = vmatpush.bf16.msra.mxu0 %v728
      %829 = vmatpush.bf16.msra.mxu0 %v724
      %830 = vmatpush.bf16.msra.mxu0 %v720
      %831 = vmatpush.bf16.msra.mxu0 %v716
      %832 = vmatpush.bf16.msra.mxu0 %v712
      %833 = vmatpush.bf16.msra.mxu0 %v708
      %834 = vmatpush.bf16.msra.mxu0 %v704
      %835 = vmatpush.bf16.msra.mxu0 %v700
      %836 = vmatmul.bf16.gmra.mxu0 %v788
      %v837 = vpop.f32.mrf.mxu0
      %v838 = vadd.f32 0.0, %v837
      %v839 = vpop.f32.mrf.mxu0
      %840 = vdwg.mxu0
      %v841 = vadd.f32 %v783, %v799
      %v842 = vadd.f32 %v784, %v812
      %v843 = vadd.f32 %v785, %v825
      %v844 = vadd.f32 %v786, %v838
    $region29: #{tpu_custom_call.1} parent=1 // pred_fallthru
      %v845 = vphi 0, %v841
      %v846 = vphi 0, %v842
      %v847 = vphi 0, %v843
      %v848 = vphi 0, %v844
    // Predicated region
    $region30: #{tpu_custom_call.1} parent=1 // pred_check
      %p849 = pneg %p496
    $region31: #{tpu_custom_call.1} parent=1 // pred_check_branch
      %851 = sbr.rel (%p849) target = $region33
    $region32: #{tpu_custom_call.1} parent=1 // pred_region
      _
    $region33: #{tpu_custom_call.1} parent=1 // pred_fallthru
      %v852 = vphi %v845, %v490
      %v853 = vphi %v846, %v491
      %v854 = vphi %v847, %v492
      %v855 = vphi %v848, %v493
    %p856 = scmp.ge.s32.totalorder %s128, 256
    %p857 = scmp.lt.s32.totalorder %s94, 384
    %p858 = pnand %p856, %p857
    %p859 = pneg %p858
    // Predicated region
    $region34: #{tpu_custom_call.1} parent=1 // pred_check
      _
    $region35: #{tpu_custom_call.1} parent=1 // pred_check_branch
      %861 = sbr.rel (%p858) target = $region37
    $region36: #{tpu_custom_call.1} parent=1 // pred_region
      %v862 = vsub.s32 %v55, 256
      %v863 = vperm.slane %v862, 0
      %v864 = vperm.slane %v862, 1
      %v865 = vperm.slane %v862, 2
      %v866 = vperm.slane %v862, 3
      %vm867 = vcmp.eq.s32.totalorder %v130, %v863
      %vm868 = vcmp.eq.s32.totalorder %v130, %v864
      %vm869 = vcmp.eq.s32.totalorder %v130, %v865
      %vm870 = vcmp.eq.s32.totalorder %v130, %v866
      %vm871 = vcmp.eq.s32.totalorder %v131, %v863
      %vm872 = vcmp.eq.s32.totalorder %v131, %v864
      %vm873 = vcmp.eq.s32.totalorder %v131, %v865
      %vm874 = vcmp.eq.s32.totalorder %v131, %v866
      %vm875 = vcmp.eq.s32.totalorder %v132, %v863
      %vm876 = vcmp.eq.s32.totalorder %v132, %v864
      %vm877 = vcmp.eq.s32.totalorder %v132, %v865
      %vm878 = vcmp.eq.s32.totalorder %v132, %v866
      %vm879 = vcmp.eq.s32.totalorder %v133, %v863
      %vm880 = vcmp.eq.s32.totalorder %v133, %v864
      %vm881 = vcmp.eq.s32.totalorder %v133, %v865
      %vm882 = vcmp.eq.s32.totalorder %v133, %v866
      %vm883 = vcmp.eq.s32.totalorder %v134, %v863
      %vm884 = vcmp.eq.s32.totalorder %v134, %v864
      %vm885 = vcmp.eq.s32.totalorder %v134, %v865
      %vm886 = vcmp.eq.s32.totalorder %v134, %v866
      %vm887 = vcmp.eq.s32.totalorder %v135, %v863
      %vm888 = vcmp.eq.s32.totalorder %v135, %v864
      %vm889 = vcmp.eq.s32.totalorder %v135, %v865
      %vm890 = vcmp.eq.s32.totalorder %v135, %v866
      %vm891 = vcmp.eq.s32.totalorder %v136, %v863
      %vm892 = vcmp.eq.s32.totalorder %v136, %v864
      %vm893 = vcmp.eq.s32.totalorder %v136, %v865
      %vm894 = vcmp.eq.s32.totalorder %v136, %v866
      %vm895 = vcmp.eq.s32.totalorder %v137, %v863
      %vm896 = vcmp.eq.s32.totalorder %v137, %v864
      %vm897 = vcmp.eq.s32.totalorder %v137, %v865
      %vm898 = vcmp.eq.s32.totalorder %v137, %v866
      %vm899 = vcmp.eq.s32.totalorder %v138, %v863
      %vm900 = vcmp.eq.s32.totalorder %v138, %v864
      %vm901 = vcmp.eq.s32.totalorder %v138, %v865
      %vm902 = vcmp.eq.s32.totalorder %v138, %v866
      %vm903 = vcmp.eq.s32.totalorder %v139, %v863
      %vm904 = vcmp.eq.s32.totalorder %v139, %v864
      %vm905 = vcmp.eq.s32.totalorder %v139, %v865
      %vm906 = vcmp.eq.s32.totalorder %v139, %v866
      %vm907 = vcmp.eq.s32.totalorder %v140, %v863
      %vm908 = vcmp.eq.s32.totalorder %v140, %v864
      %vm909 = vcmp.eq.s32.totalorder %v140, %v865
      %vm910 = vcmp.eq.s32.totalorder %v140, %v866
      %vm911 = vcmp.eq.s32.totalorder %v141, %v863
      %vm912 = vcmp.eq.s32.totalorder %v141, %v864
      %vm913 = vcmp.eq.s32.totalorder %v141, %v865
      %vm914 = vcmp.eq.s32.totalorder %v141, %v866
      %vm915 = vcmp.eq.s32.totalorder %v142, %v863
      %vm916 = vcmp.eq.s32.totalorder %v142, %v864
      %vm917 = vcmp.eq.s32.totalorder %v142, %v865
      %vm918 = vcmp.eq.s32.totalorder %v142, %v866
      %vm919 = vcmp.eq.s32.totalorder %v143, %v863
      %vm920 = vcmp.eq.s32.totalorder %v143, %v864
      %vm921 = vcmp.eq.s32.totalorder %v143, %v865
      %vm922 = vcmp.eq.s32.totalorder %v143, %v866
      %vm923 = vcmp.eq.s32.totalorder %v144, %v863
      %vm924 = vcmp.eq.s32.totalorder %v144, %v864
      %vm925 = vcmp.eq.s32.totalorder %v144, %v865
      %vm926 = vcmp.eq.s32.totalorder %v144, %v866
      %vm927 = vcmp.eq.s32.totalorder %v145, %v863
      %vm928 = vcmp.eq.s32.totalorder %v145, %v864
      %vm929 = vcmp.eq.s32.totalorder %v145, %v865
      %vm930 = vcmp.eq.s32.totalorder %v145, %v866
      %v931 = vsel %vm867, 1, 0
      %v932 = vsel %vm868, 1, 0
      %v933 = vsel %vm869, 1, 0
      %v934 = vsel %vm870, 1, 0
      %v935 = vsel %vm871, 1, 0
      %v936 = vsel %vm872, 1, 0
      %v937 = vsel %vm873, 1, 0
      %v938 = vsel %vm874, 1, 0
      %v939 = vsel %vm875, 1, 0
      %v940 = vsel %vm876, 1, 0
      %v941 = vsel %vm877, 1, 0
      %v942 = vsel %vm878, 1, 0
      %v943 = vsel %vm879, 1, 0
      %v944 = vsel %vm880, 1, 0
      %v945 = vsel %vm881, 1, 0
      %v946 = vsel %vm882, 1, 0
      %v947 = vsel %vm883, 1, 0
      %v948 = vsel %vm884, 1, 0
      %v949 = vsel %vm885, 1, 0
      %v950 = vsel %vm886, 1, 0
      %v951 = vsel %vm887, 1, 0
      %v952 = vsel %vm888, 1, 0
      %v953 = vsel %vm889, 1, 0
      %v954 = vsel %vm890, 1, 0
      %v955 = vsel %vm891, 1, 0
      %v956 = vsel %vm892, 1, 0
      %v957 = vsel %vm893, 1, 0
      %v958 = vsel %vm894, 1, 0
      %v959 = vsel %vm895, 1, 0
      %v960 = vsel %vm896, 1, 0
      %v961 = vsel %vm897, 1, 0
      %v962 = vsel %vm898, 1, 0
      %v963 = vsel %vm899, 1, 0
      %v964 = vsel %vm900, 1, 0
      %v965 = vsel %vm901, 1, 0
      %v966 = vsel %vm902, 1, 0
      %v967 = vsel %vm903, 1, 0
      %v968 = vsel %vm904, 1, 0
      %v969 = vsel %vm905, 1, 0
      %v970 = vsel %vm906, 1, 0
      %v971 = vsel %vm907, 1, 0
      %v972 = vsel %vm908, 1, 0
      %v973 = vsel %vm909, 1, 0
      %v974 = vsel %vm910, 1, 0
      %v975 = vsel %vm911, 1, 0
      %v976 = vsel %vm912, 1, 0
      %v977 = vsel %vm913, 1, 0
      %v978 = vsel %vm914, 1, 0
      %v979 = vsel %vm915, 1, 0
      %v980 = vsel %vm916, 1, 0
      %v981 = vsel %vm917, 1, 0
      %v982 = vsel %vm918, 1, 0
      %v983 = vsel %vm919, 1, 0
      %v984 = vsel %vm920, 1, 0
      %v985 = vsel %vm921, 1, 0
      %v986 = vsel %vm922, 1, 0
      %v987 = vsel %vm923, 1, 0
      %v988 = vsel %vm924, 1, 0
      %v989 = vsel %vm925, 1, 0
      %v990 = vsel %vm926, 1, 0
      %v991 = vsel %vm927, 1, 0
      %v992 = vsel %vm928, 1, 0
      %v993 = vsel %vm929, 1, 0
      %v994 = vsel %vm930, 1, 0
      %v995 = vcvt.s32.f32 %v931
      %v996 = vcvt.s32.f32 %v932
      %v997 = vcvt.s32.f32 %v933
      %v998 = vcvt.s32.f32 %v934
      %v999 = vcvt.s32.f32 %v935
      %v1000 = vcvt.s32.f32 %v936
      %v1001 = vcvt.s32.f32 %v937
      %v1002 = vcvt.s32.f32 %v938
      %v1003 = vcvt.s32.f32 %v939
      %v1004 = vcvt.s32.f32 %v940
      %v1005 = vcvt.s32.f32 %v941
      %v1006 = vcvt.s32.f32 %v942
      %v1007 = vcvt.s32.f32 %v943
      %v1008 = vcvt.s32.f32 %v944
      %v1009 = vcvt.s32.f32 %v945
      %v1010 = vcvt.s32.f32 %v946
      %v1011 = vcvt.s32.f32 %v947
      %v1012 = vcvt.s32.f32 %v948
      %v1013 = vcvt.s32.f32 %v949
      %v1014 = vcvt.s32.f32 %v950
      %v1015 = vcvt.s32.f32 %v951
      %v1016 = vcvt.s32.f32 %v952
      %v1017 = vcvt.s32.f32 %v953
      %v1018 = vcvt.s32.f32 %v954
      %v1019 = vcvt.s32.f32 %v955
      %v1020 = vcvt.s32.f32 %v956
      %v1021 = vcvt.s32.f32 %v957
      %v1022 = vcvt.s32.f32 %v958
      %v1023 = vcvt.s32.f32 %v959
      %v1024 = vcvt.s32.f32 %v960
      %v1025 = vcvt.s32.f32 %v961
      %v1026 = vcvt.s32.f32 %v962
      %v1027 = vcvt.s32.f32 %v963
      %v1028 = vcvt.s32.f32 %v964
      %v1029 = vcvt.s32.f32 %v965
      %v1030 = vcvt.s32.f32 %v966
      %v1031 = vcvt.s32.f32 %v967
      %v1032 = vcvt.s32.f32 %v968
      %v1033 = vcvt.s32.f32 %v969
      %v1034 = vcvt.s32.f32 %v970
      %v1035 = vcvt.s32.f32 %v971
      %v1036 = vcvt.s32.f32 %v972
      %v1037 = vcvt.s32.f32 %v973
      %v1038 = vcvt.s32.f32 %v974
      %v1039 = vcvt.s32.f32 %v975
      %v1040 = vcvt.s32.f32 %v976
      %v1041 = vcvt.s32.f32 %v977
      %v1042 = vcvt.s32.f32 %v978
      %v1043 = vcvt.s32.f32 %v979
      %v1044 = vcvt.s32.f32 %v980
      %v1045 = vcvt.s32.f32 %v981
      %v1046 = vcvt.s32.f32 %v982
      %v1047 = vcvt.s32.f32 %v983
      %v1048 = vcvt.s32.f32 %v984
      %v1049 = vcvt.s32.f32 %v985
      %v1050 = vcvt.s32.f32 %v986
      %v1051 = vcvt.s32.f32 %v987
      %v1052 = vcvt.s32.f32 %v988
      %v1053 = vcvt.s32.f32 %v989
      %v1054 = vcvt.s32.f32 %v990
      %v1055 = vcvt.s32.f32 %v991
      %v1056 = vcvt.s32.f32 %v992
      %v1057 = vcvt.s32.f32 %v993
      %v1058 = vcvt.s32.f32 %v994
      %v1059 = vpack.c.bf16 %v999, %v995
      %v1060 = vpack.c.bf16 %v1000, %v996
      %v1061 = vpack.c.bf16 %v1001, %v997
      %v1062 = vpack.c.bf16 %v1002, %v998
      %v1063 = vpack.c.bf16 %v1007, %v1003
      %v1064 = vpack.c.bf16 %v1008, %v1004
      %v1065 = vpack.c.bf16 %v1009, %v1005
      %v1066 = vpack.c.bf16 %v1010, %v1006
      %v1067 = vpack.c.bf16 %v1015, %v1011
      %v1068 = vpack.c.bf16 %v1016, %v1012
      %v1069 = vpack.c.bf16 %v1017, %v1013
      %v1070 = vpack.c.bf16 %v1018, %v1014
      %v1071 = vpack.c.bf16 %v1023, %v1019
      %v1072 = vpack.c.bf16 %v1024, %v1020
      %v1073 = vpack.c.bf16 %v1025, %v1021
      %v1074 = vpack.c.bf16 %v1026, %v1022
      %v1075 = vpack.c.bf16 %v1031, %v1027
      %v1076 = vpack.c.bf16 %v1032, %v1028
      %v1077 = vpack.c.bf16 %v1033, %v1029
      %v1078 = vpack.c.bf16 %v1034, %v1030
      %v1079 = vpack.c.bf16 %v1039, %v1035
      %v1080 = vpack.c.bf16 %v1040, %v1036
      %v1081 = vpack.c.bf16 %v1041, %v1037
      %v1082 = vpack.c.bf16 %v1042, %v1038
      %v1083 = vpack.c.bf16 %v1047, %v1043
      %v1084 = vpack.c.bf16 %v1048, %v1044
      %v1085 = vpack.c.bf16 %v1049, %v1045
      %v1086 = vpack.c.bf16 %v1050, %v1046
      %v1087 = vpack.c.bf16 %v1055, %v1051
      %v1088 = vpack.c.bf16 %v1056, %v1052
      %v1089 = vpack.c.bf16 %v1057, %v1053
      %v1090 = vpack.c.bf16 %v1058, %v1054
      %s1091 = scalar_lea.vmem [#allocation5], 8
      %v1092 = vld [vmem:[%s1091] sm:$0xf]
      %1093 = vmatpush.bf16.msra.mxu0 %v1087
      %1094 = vmatpush.bf16.msra.mxu0 %v1083
      %1095 = vmatpush.bf16.msra.mxu0 %v1079
      %1096 = vmatpush.bf16.msra.mxu0 %v1075
      %1097 = vmatpush.bf16.msra.mxu0 %v1071
      %1098 = vmatpush.bf16.msra.mxu0 %v1067
      %1099 = vmatpush.bf16.msra.mxu0 %v1063
      %1100 = vmatpush.bf16.msra.mxu0 %v1059
      %1101 = vmatmul.bf16.gmra.mxu0 %v1092
      %v1102 = vpop.f32.mrf.mxu0
      %v1103 = vadd.f32 0.0, %v1102
      %v1104 = vpop.f32.mrf.mxu0
      %1105 = vdwg.mxu0
      %1106 = vmatpush.bf16.msra.mxu0 %v1088
      %1107 = vmatpush.bf16.msra.mxu0 %v1084
      %1108 = vmatpush.bf16.msra.mxu0 %v1080
      %1109 = vmatpush.bf16.msra.mxu0 %v1076
      %1110 = vmatpush.bf16.msra.mxu0 %v1072
      %1111 = vmatpush.bf16.msra.mxu0 %v1068
      %1112 = vmatpush.bf16.msra.mxu0 %v1064
      %1113 = vmatpush.bf16.msra.mxu0 %v1060
      %1114 = vmatmul.bf16.gmra.mxu0 %v1092
      %v1115 = vpop.f32.mrf.mxu0
      %v1116 = vadd.f32 0.0, %v1115
      %v1117 = vpop.f32.mrf.mxu0
      %1118 = vdwg.mxu0
      %1119 = vmatpush.bf16.msra.mxu0 %v1089
      %1120 = vmatpush.bf16.msra.mxu0 %v1085
      %1121 = vmatpush.bf16.msra.mxu0 %v1081
      %1122 = vmatpush.bf16.msra.mxu0 %v1077
      %1123 = vmatpush.bf16.msra.mxu0 %v1073
      %1124 = vmatpush.bf16.msra.mxu0 %v1069
      %1125 = vmatpush.bf16.msra.mxu0 %v1065
      %1126 = vmatpush.bf16.msra.mxu0 %v1061
      %1127 = vmatmul.bf16.gmra.mxu0 %v1092
      %v1128 = vpop.f32.mrf.mxu0
      %v1129 = vadd.f32 0.0, %v1128
      %v1130 = vpop.f32.mrf.mxu0
      %1131 = vdwg.mxu0
      %1132 = vmatpush.bf16.msra.mxu0 %v1090
      %1133 = vmatpush.bf16.msra.mxu0 %v1086
      %1134 = vmatpush.bf16.msra.mxu0 %v1082
      %1135 = vmatpush.bf16.msra.mxu0 %v1078
      %1136 = vmatpush.bf16.msra.mxu0 %v1074
      %1137 = vmatpush.bf16.msra.mxu0 %v1070
      %1138 = vmatpush.bf16.msra.mxu0 %v1066
      %1139 = vmatpush.bf16.msra.mxu0 %v1062
      %1140 = vmatmul.bf16.gmra.mxu0 %v1092
      %v1141 = vpop.f32.mrf.mxu0
      %v1142 = vadd.f32 0.0, %v1141
      %v1143 = vpop.f32.mrf.mxu0
      %1144 = vdwg.mxu0
      %v1145 = vadd.f32 %v852, %v1103
      %v1146 = vadd.f32 %v853, %v1116
      %v1147 = vadd.f32 %v854, %v1129
      %v1148 = vadd.f32 %v855, %v1142
      %s1149 = scalar_lea.vmem [#allocation5], 24
      %v1150 = vld [vmem:[%s1149] sm:$0xf]
      %1151 = vmatpush.bf16.msra.mxu0 %v1087
      %1152 = vmatpush.bf16.msra.mxu0 %v1083
      %1153 = vmatpush.bf16.msra.mxu0 %v1079
      %1154 = vmatpush.bf16.msra.mxu0 %v1075
      %1155 = vmatpush.bf16.msra.mxu0 %v1071
      %1156 = vmatpush.bf16.msra.mxu0 %v1067
      %1157 = vmatpush.bf16.msra.mxu0 %v1063
      %1158 = vmatpush.bf16.msra.mxu0 %v1059
      %1159 = vmatmul.bf16.gmra.mxu0 %v1150
      %v1160 = vpop.f32.mrf.mxu0
      %v1161 = vadd.f32 0.0, %v1160
      %v1162 = vpop.f32.mrf.mxu0
      %1163 = vdwg.mxu0
      %1164 = vmatpush.bf16.msra.mxu0 %v1088
      %1165 = vmatpush.bf16.msra.mxu0 %v1084
      %1166 = vmatpush.bf16.msra.mxu0 %v1080
      %1167 = vmatpush.bf16.msra.mxu0 %v1076
      %1168 = vmatpush.bf16.msra.mxu0 %v1072
      %1169 = vmatpush.bf16.msra.mxu0 %v1068
      %1170 = vmatpush.bf16.msra.mxu0 %v1064
      %1171 = vmatpush.bf16.msra.mxu0 %v1060
      %1172 = vmatmul.bf16.gmra.mxu0 %v1150
      %v1173 = vpop.f32.mrf.mxu0
      %v1174 = vadd.f32 0.0, %v1173
      %v1175 = vpop.f32.mrf.mxu0
      %1176 = vdwg.mxu0
      %1177 = vmatpush.bf16.msra.mxu0 %v1089
      %1178 = vmatpush.bf16.msra.mxu0 %v1085
      %1179 = vmatpush.bf16.msra.mxu0 %v1081
      %1180 = vmatpush.bf16.msra.mxu0 %v1077
      %1181 = vmatpush.bf16.msra.mxu0 %v1073
      %1182 = vmatpush.bf16.msra.mxu0 %v1069
      %1183 = vmatpush.bf16.msra.mxu0 %v1065
      %1184 = vmatpush.bf16.msra.mxu0 %v1061
      %1185 = vmatmul.bf16.gmra.mxu0 %v1150
      %v1186 = vpop.f32.mrf.mxu0
      %v1187 = vadd.f32 0.0, %v1186
      %v1188 = vpop.f32.mrf.mxu0
      %1189 = vdwg.mxu0
      %1190 = vmatpush.bf16.msra.mxu0 %v1090
      %1191 = vmatpush.bf16.msra.mxu0 %v1086
      %1192 = vmatpush.bf16.msra.mxu0 %v1082
      %1193 = vmatpush.bf16.msra.mxu0 %v1078
      %1194 = vmatpush.bf16.msra.mxu0 %v1074
      %1195 = vmatpush.bf16.msra.mxu0 %v1070
      %1196 = vmatpush.bf16.msra.mxu0 %v1066
      %1197 = vmatpush.bf16.msra.mxu0 %v1062
      %1198 = vmatmul.bf16.gmra.mxu0 %v1150
      %v1199 = vpop.f32.mrf.mxu0
      %v1200 = vadd.f32 0.0, %v1199
      %v1201 = vpop.f32.mrf.mxu0
      %1202 = vdwg.mxu0
      %v1203 = vadd.f32 %v1145, %v1161
      %v1204 = vadd.f32 %v1146, %v1174
      %v1205 = vadd.f32 %v1147, %v1187
      %v1206 = vadd.f32 %v1148, %v1200
    $region37: #{tpu_custom_call.1} parent=1 // pred_fallthru
      %v1207 = vphi 0, %v1203
      %v1208 = vphi 0, %v1204
      %v1209 = vphi 0, %v1205
      %v1210 = vphi 0, %v1206
    // Predicated region
    $region38: #{tpu_custom_call.1} parent=1 // pred_check
      %p1211 = pneg %p858
    $region39: #{tpu_custom_call.1} parent=1 // pred_check_branch
      %1213 = sbr.rel (%p1211) target = $region41
    $region40: #{tpu_custom_call.1} parent=1 // pred_region
      _
    $region41: #{tpu_custom_call.1} parent=1 // pred_fallthru
      %v1214 = vphi %v1207, %v852
      %v1215 = vphi %v1208, %v853
      %v1216 = vphi %v1209, %v854
      %v1217 = vphi %v1210, %v855
    %p1218 = scmp.ge.s32.totalorder %s128, 384
    %p1219 = scmp.lt.s32.totalorder %s94, 512
    %p1220 = pnand %p1218, %p1219
    %p1221 = pneg %p1220
    // Predicated region
    $region42: #{tpu_custom_call.1} parent=1 // pred_check
      _
    $region43: #{tpu_custom_call.1} parent=1 // pred_check_branch
      %1223 = sbr.rel (%p1220) target = $region45
    $region44: #{tpu_custom_call.1} parent=1 // pred_region
      %v1224 = vsub.s32 %v55, 384
      %v1225 = vperm.slane %v1224, 0
      %v1226 = vperm.slane %v1224, 1
      %v1227 = vperm.slane %v1224, 2
      %v1228 = vperm.slane %v1224, 3
      %vm1229 = vcmp.eq.s32.totalorder %v130, %v1225
      %vm1230 = vcmp.eq.s32.totalorder %v130, %v1226
      %vm1231 = vcmp.eq.s32.totalorder %v130, %v1227
      %vm1232 = vcmp.eq.s32.totalorder %v130, %v1228
      %vm1233 = vcmp.eq.s32.totalorder %v131, %v1225
      %vm1234 = vcmp.eq.s32.totalorder %v131, %v1226
      %vm1235 = vcmp.eq.s32.totalorder %v131, %v1227
      %vm1236 = vcmp.eq.s32.totalorder %v131, %v1228
      %vm1237 = vcmp.eq.s32.totalorder %v132, %v1225
      %vm1238 = vcmp.eq.s32.totalorder %v132, %v1226
      %vm1239 = vcmp.eq.s32.totalorder %v132, %v1227
      %vm1240 = vcmp.eq.s32.totalorder %v132, %v1228
      %vm1241 = vcmp.eq.s32.totalorder %v133, %v1225
      %vm1242 = vcmp.eq.s32.totalorder %v133, %v1226
      %vm1243 = vcmp.eq.s32.totalorder %v133, %v1227
      %vm1244 = vcmp.eq.s32.totalorder %v133, %v1228
      %vm1245 = vcmp.eq.s32.totalorder %v134, %v1225
      %vm1246 = vcmp.eq.s32.totalorder %v134, %v1226
      %vm1247 = vcmp.eq.s32.totalorder %v134, %v1227
      %vm1248 = vcmp.eq.s32.totalorder %v134, %v1228
      %vm1249 = vcmp.eq.s32.totalorder %v135, %v1225
      %vm1250 = vcmp.eq.s32.totalorder %v135, %v1226
      %vm1251 = vcmp.eq.s32.totalorder %v135, %v1227
      %vm1252 = vcmp.eq.s32.totalorder %v135, %v1228
      %vm1253 = vcmp.eq.s32.totalorder %v136, %v1225
      %vm1254 = vcmp.eq.s32.totalorder %v136, %v1226
      %vm1255 = vcmp.eq.s32.totalorder %v136, %v1227
      %vm1256 = vcmp.eq.s32.totalorder %v136, %v1228
      %vm1257 = vcmp.eq.s32.totalorder %v137, %v1225
      %vm1258 = vcmp.eq.s32.totalorder %v137, %v1226
      %vm1259 = vcmp.eq.s32.totalorder %v137, %v1227
      %vm1260 = vcmp.eq.s32.totalorder %v137, %v1228
      %vm1261 = vcmp.eq.s32.totalorder %v138, %v1225
      %vm1262 = vcmp.eq.s32.totalorder %v138, %v1226
      %vm1263 = vcmp.eq.s32.totalorder %v138, %v1227
      %vm1264 = vcmp.eq.s32.totalorder %v138, %v1228
      %vm1265 = vcmp.eq.s32.totalorder %v139, %v1225
      %vm1266 = vcmp.eq.s32.totalorder %v139, %v1226
      %vm1267 = vcmp.eq.s32.totalorder %v139, %v1227
      %vm1268 = vcmp.eq.s32.totalorder %v139, %v1228
      %vm1269 = vcmp.eq.s32.totalorder %v140, %v1225
      %vm1270 = vcmp.eq.s32.totalorder %v140, %v1226
      %vm1271 = vcmp.eq.s32.totalorder %v140, %v1227
      %vm1272 = vcmp.eq.s32.totalorder %v140, %v1228
      %vm1273 = vcmp.eq.s32.totalorder %v141, %v1225
      %vm1274 = vcmp.eq.s32.totalorder %v141, %v1226
      %vm1275 = vcmp.eq.s32.totalorder %v141, %v1227
      %vm1276 = vcmp.eq.s32.totalorder %v141, %v1228
      %vm1277 = vcmp.eq.s32.totalorder %v142, %v1225
      %vm1278 = vcmp.eq.s32.totalorder %v142, %v1226
      %vm1279 = vcmp.eq.s32.totalorder %v142, %v1227
      %vm1280 = vcmp.eq.s32.totalorder %v142, %v1228
      %vm1281 = vcmp.eq.s32.totalorder %v143, %v1225
      %vm1282 = vcmp.eq.s32.totalorder %v143, %v1226
      %vm1283 = vcmp.eq.s32.totalorder %v143, %v1227
      %vm1284 = vcmp.eq.s32.totalorder %v143, %v1228
      %vm1285 = vcmp.eq.s32.totalorder %v144, %v1225
      %vm1286 = vcmp.eq.s32.totalorder %v144, %v1226
      %vm1287 = vcmp.eq.s32.totalorder %v144, %v1227
      %vm1288 = vcmp.eq.s32.totalorder %v144, %v1228
      %vm1289 = vcmp.eq.s32.totalorder %v145, %v1225
      %vm1290 = vcmp.eq.s32.totalorder %v145, %v1226
      %vm1291 = vcmp.eq.s32.totalorder %v145, %v1227
      %vm1292 = vcmp.eq.s32.totalorder %v145, %v1228
      %v1293 = vsel %vm1229, 1, 0
      %v1294 = vsel %vm1230, 1, 0
      %v1295 = vsel %vm1231, 1, 0
      %v1296 = vsel %vm1232, 1, 0
      %v1297 = vsel %vm1233, 1, 0
      %v1298 = vsel %vm1234, 1, 0
      %v1299 = vsel %vm1235, 1, 0
      %v1300 = vsel %vm1236, 1, 0
      %v1301 = vsel %vm1237, 1, 0
      %v1302 = vsel %vm1238, 1, 0
      %v1303 = vsel %vm1239, 1, 0
      %v1304 = vsel %vm1240, 1, 0
      %v1305 = vsel %vm1241, 1, 0
      %v1306 = vsel %vm1242, 1, 0
      %v1307 = vsel %vm1243, 1, 0
      %v1308 = vsel %vm1244, 1, 0
      %v1309 = vsel %vm1245, 1, 0
      %v1310 = vsel %vm1246, 1, 0
      %v1311 = vsel %vm1247, 1, 0
      %v1312 = vsel %vm1248, 1, 0
      %v1313 = vsel %vm1249, 1, 0
      %v1314 = vsel %vm1250, 1, 0
      %v1315 = vsel %vm1251, 1, 0
      %v1316 = vsel %vm1252, 1, 0
      %v1317 = vsel %vm1253, 1, 0
      %v1318 = vsel %vm1254, 1, 0
      %v1319 = vsel %vm1255, 1, 0
      %v1320 = vsel %vm1256, 1, 0
      %v1321 = vsel %vm1257, 1, 0
      %v1322 = vsel %vm1258, 1, 0
      %v1323 = vsel %vm1259, 1, 0
      %v1324 = vsel %vm1260, 1, 0
      %v1325 = vsel %vm1261, 1, 0
      %v1326 = vsel %vm1262, 1, 0
      %v1327 = vsel %vm1263, 1, 0
      %v1328 = vsel %vm1264, 1, 0
      %v1329 = vsel %vm1265, 1, 0
      %v1330 = vsel %vm1266, 1, 0
      %v1331 = vsel %vm1267, 1, 0
      %v1332 = vsel %vm1268, 1, 0
      %v1333 = vsel %vm1269, 1, 0
      %v1334 = vsel %vm1270, 1, 0
      %v1335 = vsel %vm1271, 1, 0
      %v1336 = vsel %vm1272, 1, 0
      %v1337 = vsel %vm1273, 1, 0
      %v1338 = vsel %vm1274, 1, 0
      %v1339 = vsel %vm1275, 1, 0
      %v1340 = vsel %vm1276, 1, 0
      %v1341 = vsel %vm1277, 1, 0
      %v1342 = vsel %vm1278, 1, 0
      %v1343 = vsel %vm1279, 1, 0
      %v1344 = vsel %vm1280, 1, 0
      %v1345 = vsel %vm1281, 1, 0
      %v1346 = vsel %vm1282, 1, 0
      %v1347 = vsel %vm1283, 1, 0
      %v1348 = vsel %vm1284, 1, 0
      %v1349 = vsel %vm1285, 1, 0
      %v1350 = vsel %vm1286, 1, 0
      %v1351 = vsel %vm1287, 1, 0
      %v1352 = vsel %vm1288, 1, 0
      %v1353 = vsel %vm1289, 1, 0
      %v1354 = vsel %vm1290, 1, 0
      %v1355 = vsel %vm1291, 1, 0
      %v1356 = vsel %vm1292, 1, 0
      %v1357 = vcvt.s32.f32 %v1293
      %v1358 = vcvt.s32.f32 %v1294
      %v1359 = vcvt.s32.f32 %v1295
      %v1360 = vcvt.s32.f32 %v1296
      %v1361 = vcvt.s32.f32 %v1297
      %v1362 = vcvt.s32.f32 %v1298
      %v1363 = vcvt.s32.f32 %v1299
      %v1364 = vcvt.s32.f32 %v1300
      %v1365 = vcvt.s32.f32 %v1301
      %v1366 = vcvt.s32.f32 %v1302
      %v1367 = vcvt.s32.f32 %v1303
      %v1368 = vcvt.s32.f32 %v1304
      %v1369 = vcvt.s32.f32 %v1305
      %v1370 = vcvt.s32.f32 %v1306
      %v1371 = vcvt.s32.f32 %v1307
      %v1372 = vcvt.s32.f32 %v1308
      %v1373 = vcvt.s32.f32 %v1309
      %v1374 = vcvt.s32.f32 %v1310
      %v1375 = vcvt.s32.f32 %v1311
      %v1376 = vcvt.s32.f32 %v1312
      %v1377 = vcvt.s32.f32 %v1313
      %v1378 = vcvt.s32.f32 %v1314
      %v1379 = vcvt.s32.f32 %v1315
      %v1380 = vcvt.s32.f32 %v1316
      %v1381 = vcvt.s32.f32 %v1317
      %v1382 = vcvt.s32.f32 %v1318
      %v1383 = vcvt.s32.f32 %v1319
      %v1384 = vcvt.s32.f32 %v1320
      %v1385 = vcvt.s32.f32 %v1321
      %v1386 = vcvt.s32.f32 %v1322
      %v1387 = vcvt.s32.f32 %v1323
      %v1388 = vcvt.s32.f32 %v1324
      %v1389 = vcvt.s32.f32 %v1325
      %v1390 = vcvt.s32.f32 %v1326
      %v1391 = vcvt.s32.f32 %v1327
      %v1392 = vcvt.s32.f32 %v1328
      %v1393 = vcvt.s32.f32 %v1329
      %v1394 = vcvt.s32.f32 %v1330
      %v1395 = vcvt.s32.f32 %v1331
      %v1396 = vcvt.s32.f32 %v1332
      %v1397 = vcvt.s32.f32 %v1333
      %v1398 = vcvt.s32.f32 %v1334
      %v1399 = vcvt.s32.f32 %v1335
      %v1400 = vcvt.s32.f32 %v1336
      %v1401 = vcvt.s32.f32 %v1337
      %v1402 = vcvt.s32.f32 %v1338
      %v1403 = vcvt.s32.f32 %v1339
      %v1404 = vcvt.s32.f32 %v1340
      %v1405 = vcvt.s32.f32 %v1341
      %v1406 = vcvt.s32.f32 %v1342
      %v1407 = vcvt.s32.f32 %v1343
      %v1408 = vcvt.s32.f32 %v1344
      %v1409 = vcvt.s32.f32 %v1345
      %v1410 = vcvt.s32.f32 %v1346
      %v1411 = vcvt.s32.f32 %v1347
      %v1412 = vcvt.s32.f32 %v1348
      %v1413 = vcvt.s32.f32 %v1349
      %v1414 = vcvt.s32.f32 %v1350
      %v1415 = vcvt.s32.f32 %v1351
      %v1416 = vcvt.s32.f32 %v1352
      %v1417 = vcvt.s32.f32 %v1353
      %v1418 = vcvt.s32.f32 %v1354
      %v1419 = vcvt.s32.f32 %v1355
      %v1420 = vcvt.s32.f32 %v1356
      %v1421 = vpack.c.bf16 %v1361, %v1357
      %v1422 = vpack.c.bf16 %v1362, %v1358
      %v1423 = vpack.c.bf16 %v1363, %v1359
      %v1424 = vpack.c.bf16 %v1364, %v1360
      %v1425 = vpack.c.bf16 %v1369, %v1365
      %v1426 = vpack.c.bf16 %v1370, %v1366
      %v1427 = vpack.c.bf16 %v1371, %v1367
      %v1428 = vpack.c.bf16 %v1372, %v1368
      %v1429 = vpack.c.bf16 %v1377, %v1373
      %v1430 = vpack.c.bf16 %v1378, %v1374
      %v1431 = vpack.c.bf16 %v1379, %v1375
      %v1432 = vpack.c.bf16 %v1380, %v1376
      %v1433 = vpack.c.bf16 %v1385, %v1381
      %v1434 = vpack.c.bf16 %v1386, %v1382
      %v1435 = vpack.c.bf16 %v1387, %v1383
      %v1436 = vpack.c.bf16 %v1388, %v1384
      %v1437 = vpack.c.bf16 %v1393, %v1389
      %v1438 = vpack.c.bf16 %v1394, %v1390
      %v1439 = vpack.c.bf16 %v1395, %v1391
      %v1440 = vpack.c.bf16 %v1396, %v1392
      %v1441 = vpack.c.bf16 %v1401, %v1397
      %v1442 = vpack.c.bf16 %v1402, %v1398
      %v1443 = vpack.c.bf16 %v1403, %v1399
      %v1444 = vpack.c.bf16 %v1404, %v1400
      %v1445 = vpack.c.bf16 %v1409, %v1405
      %v1446 = vpack.c.bf16 %v1410, %v1406
      %v1447 = vpack.c.bf16 %v1411, %v1407
      %v1448 = vpack.c.bf16 %v1412, %v1408
      %v1449 = vpack.c.bf16 %v1417, %v1413
      %v1450 = vpack.c.bf16 %v1418, %v1414
      %v1451 = vpack.c.bf16 %v1419, %v1415
      %v1452 = vpack.c.bf16 %v1420, %v1416
      %s1453 = scalar_lea.vmem [#allocation5], 12
      %v1454 = vld [vmem:[%s1453] sm:$0xf]
      %1455 = vmatpush.bf16.msra.mxu0 %v1449
      %1456 = vmatpush.bf16.msra.mxu0 %v1445
      %1457 = vmatpush.bf16.msra.mxu0 %v1441
      %1458 = vmatpush.bf16.msra.mxu0 %v1437
      %1459 = vmatpush.bf16.msra.mxu0 %v1433
      %1460 = vmatpush.bf16.msra.mxu0 %v1429
      %1461 = vmatpush.bf16.msra.mxu0 %v1425
      %1462 = vmatpush.bf16.msra.mxu0 %v1421
      %1463 = vmatmul.bf16.gmra.mxu0 %v1454
      %v1464 = vpop.f32.mrf.mxu0
      %v1465 = vadd.f32 0.0, %v1464
      %v1466 = vpop.f32.mrf.mxu0
      %1467 = vdwg.mxu0
      %1468 = vmatpush.bf16.msra.mxu0 %v1450
      %1469 = vmatpush.bf16.msra.mxu0 %v1446
      %1470 = vmatpush.bf16.msra.mxu0 %v1442
      %1471 = vmatpush.bf16.msra.mxu0 %v1438
      %1472 = vmatpush.bf16.msra.mxu0 %v1434
      %1473 = vmatpush.bf16.msra.mxu0 %v1430
      %1474 = vmatpush.bf16.msra.mxu0 %v1426
      %1475 = vmatpush.bf16.msra.mxu0 %v1422
      %1476 = vmatmul.bf16.gmra.mxu0 %v1454
      %v1477 = vpop.f32.mrf.mxu0
      %v1478 = vadd.f32 0.0, %v1477
      %v1479 = vpop.f32.mrf.mxu0
      %1480 = vdwg.mxu0
      %1481 = vmatpush.bf16.msra.mxu0 %v1451
      %1482 = vmatpush.bf16.msra.mxu0 %v1447
      %1483 = vmatpush.bf16.msra.mxu0 %v1443
      %1484 = vmatpush.bf16.msra.mxu0 %v1439
      %1485 = vmatpush.bf16.msra.mxu0 %v1435
      %1486 = vmatpush.bf16.msra.mxu0 %v1431
      %1487 = vmatpush.bf16.msra.mxu0 %v1427
      %1488 = vmatpush.bf16.msra.mxu0 %v1423
      %1489 = vmatmul.bf16.gmra.mxu0 %v1454
      %v1490 = vpop.f32.mrf.mxu0
      %v1491 = vadd.f32 0.0, %v1490
      %v1492 = vpop.f32.mrf.mxu0
      %1493 = vdwg.mxu0
      %1494 = vmatpush.bf16.msra.mxu0 %v1452
      %1495 = vmatpush.bf16.msra.mxu0 %v1448
      %1496 = vmatpush.bf16.msra.mxu0 %v1444
      %1497 = vmatpush.bf16.msra.mxu0 %v1440
      %1498 = vmatpush.bf16.msra.mxu0 %v1436
      %1499 = vmatpush.bf16.msra.mxu0 %v1432
      %1500 = vmatpush.bf16.msra.mxu0 %v1428
      %1501 = vmatpush.bf16.msra.mxu0 %v1424
      %1502 = vmatmul.bf16.gmra.mxu0 %v1454
      %v1503 = vpop.f32.mrf.mxu0
      %v1504 = vadd.f32 0.0, %v1503
      %v1505 = vpop.f32.mrf.mxu0
      %1506 = vdwg.mxu0
      %v1507 = vadd.f32 %v1214, %v1465
      %v1508 = vadd.f32 %v1215, %v1478
      %v1509 = vadd.f32 %v1216, %v1491
      %v1510 = vadd.f32 %v1217, %v1504
      %s1511 = scalar_lea.vmem [#allocation5], 28
      %v1512 = vld [vmem:[%s1511] sm:$0xf]
      %1513 = vmatpush.bf16.msra.mxu0 %v1449
      %1514 = vmatpush.bf16.msra.mxu0 %v1445
      %1515 = vmatpush.bf16.msra.mxu0 %v1441
      %1516 = vmatpush.bf16.msra.mxu0 %v1437
      %1517 = vmatpush.bf16.msra.mxu0 %v1433
      %1518 = vmatpush.bf16.msra.mxu0 %v1429
      %1519 = vmatpush.bf16.msra.mxu0 %v1425
      %1520 = vmatpush.bf16.msra.mxu0 %v1421
      %1521 = vmatmul.bf16.gmra.mxu0 %v1512
      %v1522 = vpop.f32.mrf.mxu0
      %v1523 = vadd.f32 0.0, %v1522
      %v1524 = vpop.f32.mrf.mxu0
      %1525 = vdwg.mxu0
      %1526 = vmatpush.bf16.msra.mxu0 %v1450
      %1527 = vmatpush.bf16.msra.mxu0 %v1446
      %1528 = vmatpush.bf16.msra.mxu0 %v1442
      %1529 = vmatpush.bf16.msra.mxu0 %v1438
      %1530 = vmatpush.bf16.msra.mxu0 %v1434
      %1531 = vmatpush.bf16.msra.mxu0 %v1430
      %1532 = vmatpush.bf16.msra.mxu0 %v1426
      %1533 = vmatpush.bf16.msra.mxu0 %v1422
      %1534 = vmatmul.bf16.gmra.mxu0 %v1512
      %v1535 = vpop.f32.mrf.mxu0
      %v1536 = vadd.f32 0.0, %v1535
      %v1537 = vpop.f32.mrf.mxu0
      %1538 = vdwg.mxu0
      %1539 = vmatpush.bf16.msra.mxu0 %v1451
      %1540 = vmatpush.bf16.msra.mxu0 %v1447
      %1541 = vmatpush.bf16.msra.mxu0 %v1443
      %1542 = vmatpush.bf16.msra.mxu0 %v1439
      %1543 = vmatpush.bf16.msra.mxu0 %v1435
      %1544 = vmatpush.bf16.msra.mxu0 %v1431
      %1545 = vmatpush.bf16.msra.mxu0 %v1427
      %1546 = vmatpush.bf16.msra.mxu0 %v1423
      %1547 = vmatmul.bf16.gmra.mxu0 %v1512
      %v1548 = vpop.f32.mrf.mxu0
      %v1549 = vadd.f32 0.0, %v1548
      %v1550 = vpop.f32.mrf.mxu0
      %1551 = vdwg.mxu0
      %1552 = vmatpush.bf16.msra.mxu0 %v1452
      %1553 = vmatpush.bf16.msra.mxu0 %v1448
      %1554 = vmatpush.bf16.msra.mxu0 %v1444
      %1555 = vmatpush.bf16.msra.mxu0 %v1440
      %1556 = vmatpush.bf16.msra.mxu0 %v1436
      %1557 = vmatpush.bf16.msra.mxu0 %v1432
      %1558 = vmatpush.bf16.msra.mxu0 %v1428
      %1559 = vmatpush.bf16.msra.mxu0 %v1424
      %1560 = vmatmul.bf16.gmra.mxu0 %v1512
      %v1561 = vpop.f32.mrf.mxu0
      %v1562 = vadd.f32 0.0, %v1561
      %v1563 = vpop.f32.mrf.mxu0
      %1564 = vdwg.mxu0
      %v1565 = vadd.f32 %v1507, %v1523
      %v1566 = vadd.f32 %v1508, %v1536
      %v1567 = vadd.f32 %v1509, %v1549
      %v1568 = vadd.f32 %v1510, %v1562
    $region45: #{tpu_custom_call.1} parent=1 // pred_fallthru
      %v1569 = vphi 0, %v1565
      %v1570 = vphi 0, %v1566
      %v1571 = vphi 0, %v1567
      %v1572 = vphi 0, %v1568
    // Predicated region
    $region46: #{tpu_custom_call.1} parent=1 // pred_check
      %p1573 = pneg %p1220
    $region47: #{tpu_custom_call.1} parent=1 // pred_check_branch
      %1575 = sbr.rel (%p1573) target = $region49
    $region48: #{tpu_custom_call.1} parent=1 // pred_region
      _
    $region49: #{tpu_custom_call.1} parent=1 // pred_fallthru
      %v1576 = vphi %v1569, %v1214
      %v1577 = vphi %v1570, %v1215
      %v1578 = vphi %v1571, %v1216
      %v1579 = vphi %v1572, %v1217
    %1580 = vst [vmem:[#allocation7] sm:$0xff] %v1576
    %1581 = vst [vmem:[#allocation7 + $0x8] sm:$0xff] %v1577
    %1582 = vst [vmem:[#allocation7 + $0x10] sm:$0xff] %v1578
    %1583 = vst [vmem:[#allocation7 + $0x18] sm:$0xff] %v1579
    // Predicated region
    $region50: #{tpu_custom_call.1} parent=1 // pred_check
      _
    $region51: #{tpu_custom_call.1} parent=1 // pred_check_branch
      %1585 = sbr.rel (0) target = $region53
    $region52: #{tpu_custom_call.1} parent=1 // pred_region
      %1587 = vsyncadd [#allocation4], 0
      %s1589 = sshll.u32 [#allocation7], 4
      %s1590 = int_to_ptr.vmem [resolvable:$true] %s1589
      %s1591 = sshll.u32 %s2, 4
      %s1592 = int_to_ptr.hbm [resolvable:$true] %s1591
      %1594 = dma.vmem_to_hbm [thread:$0]  %s1590, 512, %s1592, [#allocation4]
    $region53: #{tpu_custom_call.1} parent=1 // pred_fallthru
      _
    // Predicated region
    $region54: #{tpu_custom_call.1} parent=1 // pred_check
      _
    $region55: #{tpu_custom_call.1} parent=1 // pred_check_branch
      %1596 = sbr.rel (0) target = $region57
    $region56: #{tpu_custom_call.1} parent=1 // pred_region
      %1598 = dma.done [#allocation4], 512
    $region57: #{tpu_custom_call.1} parent=1 // pred_fallthru
      _
    %1599 = vsyncpa [#allocation3], 1
    %1600 = vsyncpa [#allocation6], 1
    %1601 = vsyncpa [#allocation4], 1

// kernel: tpu_custom_call.1
$region0: #{tpu_custom_call.1}
  #allocation0 [shape = 'u32[]', space=smem, size = 0x4, offset = 0x4, fixed_abs, tag = 'smem constant byte address 0x4 - core index']
  #allocation1 [shape = 'u32[72,128]{1,0:T(1,128)}', space=vmem, size = 0x9000, scoped, tag = 'internal scratch']
  %s0 = inlined_call_operand.hbm [shape: f32[1,512], index: 0, kind: input, shape index: {}]
  %s1 = inlined_call_operand.hbm [shape: bf16[8,8,128], index: 1, kind: input, shape index: {}]
  %s2 = inlined_call_operand.hbm [shape: f32[8,512], index: 2, kind: output, shape index: {}]
  %s3 = sld [smem:[#allocation0]]
  $region58: #{tpu_custom_call.1} parent=0
    _
  %s5 = ssub.s32 1, %s3
  %s6 = scalar_select 0, %s5, %s3
  $region1: #{tpu_custom_call.1} parent=0
    #allocation2 [shape = 'u8[2048]{0}', space=vmem, size = 0x800, scoped, tag = 'input window, operand 0, single buffered']
    #allocation3 [shape = 's32[1]{0}', space=sflag, size = 0x4, scoped, tag = 'scoped memory for tpu_custom_call.1']
    #allocation4 [shape = 's32[1]{0}', space=sflag, size = 0x4, scoped, tag = 'scoped memory for tpu_custom_call.1']
    #allocation5 [shape = 'u8[16384]{0}', space=vmem, size = 0x4000, scoped, tag = 'input window, operand 1, single buffered']
    #allocation6 [shape = 's32[1]{0}', space=sflag, size = 0x4, scoped, tag = 'scoped memory for tpu_custom_call.1']
    #allocation7 [shape = 'u8[16384]{0}', space=vmem, size = 0x4000, scoped, tag = 'output window, operand 0, single buffered']
    %7 = vsyncpa [#allocation3], 0
    %8 = vsyncpa [#allocation6], 0
    %9 = vsyncpa [#allocation4], 0
    // Predicated region
    $region2: #{tpu_custom_call.1} parent=1 // pred_check
      _
    $region3: #{tpu_custom_call.1} parent=1 // pred_check_branch
      %11 = sbr.rel (0) target = $region5
    $region4: #{tpu_custom_call.1} parent=1 // pred_region
      %13 = vsyncadd [#allocation3], 0
      %s15 = sshll.u32 %s0, 4
      %s16 = int_to_ptr.hbm [resolvable:$true] %s15
      %s17 = sshll.u32 [#allocation2], 4
      %s18 = int_to_ptr.vmem [resolvable:$true] %s17
      %20 = dma.hbm_to_vmem [thread:$0]  %s16, 64, %s18, [#allocation3]
    $region5: #{tpu_custom_call.1} parent=1 // pred_fallthru
      _
    // Predicated region
    $region6: #{tpu_custom_call.1} parent=1 // pred_check
      _
    $region7: #{tpu_custom_call.1} parent=1 // pred_check_branch
      %22 = sbr.rel (0) target = $region9
    $region8: #{tpu_custom_call.1} parent=1 // pred_region
      %24 = vsyncadd [#allocation6], 0
      %s25 = sshll.u32 %s1, 4
      %s26 = int_to_ptr.hbm [resolvable:$true] %s25
      %s27 = sshll.u32 [#allocation5], 4
      %s28 = int_to_ptr.vmem [resolvable:$true] %s27
      %33 = dma.hbm_to_vmem [thread:$0]  %s26, 512, %s28, [#allocation6], 64, 64, 4
    $region9: #{tpu_custom_call.1} parent=1 // pred_fallthru
      _
    // Predicated region
    $region10: #{tpu_custom_call.1} parent=1 // pred_check
      _
    $region11: #{tpu_custom_call.1} parent=1 // pred_check_branch
      %35 = sbr.rel (0) target = $region13
    $region12: #{tpu_custom_call.1} parent=1 // pred_region
      %37 = dma.done [#allocation3], 64
    $region13: #{tpu_custom_call.1} parent=1 // pred_fallthru
      _
    // Predicated region
    $region14: #{tpu_custom_call.1} parent=1 // pred_check
      _
    $region15: #{tpu_custom_call.1} parent=1 // pred_check_branch
      %39 = sbr.rel (0) target = $region17
    $region16: #{tpu_custom_call.1} parent=1 // pred_region
      %41 = dma.done [#allocation6], 512
    $region17: #{tpu_custom_call.1} parent=1 // pred_fallthru
      _
    %v42 = vld [vmem:[#allocation2] sm:$0xf]
    %v43 = vcvt.f32.s32.to.zero.pseudo %v42
    %vm44 = vcmp.lt.s32.totalorder %v43, 0
    %v45 = vsub.s32 0, %v43
    %v46 = vsel %vm44, %v45, %v43
    %v47 = vshrl.u32 %v46, 9
    %v48 = vand.u32 %v46, 511
    %v49 = vsub.s32 0, %v48
    %v50 = vsel %vm44, %v49, %v48
    %vm51 = vcmp.ne.s32.totalorder %v50, 0
    %vm52 = vcmp.lt.s32.totalorder %v50, 0
    %vm53 = vmand %vm52, %vm51
    %v54 = vadd.s32 %v50, 512
    %v55 = vsel %vm53, %v54, %v50
    %v56 = vperm.slane %v55, 0
    %v57 = vperm.slane %v55, 1
    %v58 = vperm.slane %v55, 2
    %v59 = vperm.slane %v55, 3
    %vm60 = vcmask 1040384
    %v61 = vsel %vm60, %v56, 2147483647
    %v62 = vsel %vm60, %v57, 2147483647
    %v63 = vsel %vm60, %v58, 2147483647
    %v64 = vsel %vm60, %v59, 2147483647
    %vm65 = vcmp.lt.s32.totalorder %v61, %v62
    %v66 = vsel %vm65, %v61, %v62
    %vm67 = vcmp.lt.s32.totalorder %v63, %v64
    %v68 = vsel %vm67, %v63, %v64
    %vm69 = vcmp.lt.s32.totalorder %v66, %v68
    %v70 = vsel %vm69, %v66, %v68
    %v71 = vand.u32 %v70, 65535
    %v72 = vshra.s32 %v70, 16
    %v73 = vcvt.s32.f32 %v71
    %v74 = vcvt.s32.f32 %v72
    %75 = vmin.xlane.f32.xlu0 %v74
    %v76 = vpop.xlane.xlu0 %75
    %vm77 = vcmp.eq.f32.partialorder %v74, %v76
    %v78 = vsel %vm77, %v73, inf
    %79 = vmin.xlane.f32.xlu0 %v78
    %v80 = vpop.xlane.xlu0 %79
    %v81 = vcvt.f32.s32 %v80
    %v82 = vcvt.f32.s32 %v76
    %v83 = vshll.u32 %v82, 16
    %v84 = vadd.s32 %v83, %v81
    %v85 = vrot.slane %v84, 4
    %vm86 = vcmp.lt.s32.totalorder %v84, %v85
    %v87 = vsel %vm86, %v84, %v85
    %v88 = vrot.slane %v87, 2
    %vm89 = vcmp.lt.s32.totalorder %v87, %v88
    %v90 = vsel %vm89, %v87, %v88
    %v91 = vrot.slane %v90, 1
    %vm92 = vcmp.lt.s32.totalorder %v90, %v91
    %v93 = vsel %vm92, %v90, %v91
    %s94 = vtos %v93
    %v95 = vsel %vm60, %v56, 2147483648
    %v96 = vsel %vm60, %v57, 2147483648
    %v97 = vsel %vm60, %v58, 2147483648
    %v98 = vsel %vm60, %v59, 2147483648
    %vm99 = vcmp.gt.s32.totalorder %v95, %v96
    %v100 = vsel %vm99, %v95, %v96
    %vm101 = vcmp.gt.s32.totalorder %v97, %v98
    %v102 = vsel %vm101, %v97, %v98
    %vm103 = vcmp.gt.s32.totalorder %v100, %v102
    %v104 = vsel %vm103, %v100, %v102
    %v105 = vand.u32 %v104, 65535
    %v106 = vshra.s32 %v104, 16
    %v107 = vcvt.s32.f32 %v105
    %v108 = vcvt.s32.f32 %v106
    %109 = vmax.xlane.f32.xlu0 %v108
    %v110 = vpop.xlane.xlu0 %109
    %vm111 = vcmp.eq.f32.partialorder %v108, %v110
    %v112 = vsel %vm111, %v107, -inf
    %113 = vmax.xlane.f32.xlu0 %v112
    %v114 = vpop.xlane.xlu0 %113
    %v115 = vcvt.f32.s32 %v114
    %v116 = vcvt.f32.s32 %v110
    %v117 = vshll.u32 %v116, 16
    %v118 = vadd.s32 %v117, %v115
    %v119 = vrot.slane %v118, 4
    %vm120 = vcmp.gt.s32.totalorder %v118, %v119
    %v121 = vsel %vm120, %v118, %v119
    %v122 = vrot.slane %v121, 2
    %vm123 = vcmp.gt.s32.totalorder %v121, %v122
    %v124 = vsel %vm123, %v121, %v122
    %v125 = vrot.slane %v124, 1
    %vm126 = vcmp.gt.s32.totalorder %v124, %v125
    %v127 = vsel %vm126, %v124, %v125
    %s128 = vtos %v127
    %v129 = vlaneseq
    %v130 = vshrl.u32 %v129, 7
    %v131 = vadd.s32 %v130, 8
    %v132 = vadd.s32 %v130, 16
    %v133 = vadd.s32 %v130, 24
    %v134 = vadd.s32 %v130, 32
    %v135 = vadd.s32 %v130, 40
    %v136 = vadd.s32 %v130, 48
    %v137 = vadd.s32 %v130, 56
    %v138 = vadd.s32 %v130, 64
    %v139 = vadd.s32 %v130, 72
    %v140 = vadd.s32 %v130, 80
    %v141 = vadd.s32 %v130, 88
    %v142 = vadd.s32 %v130, 96
    %v143 = vadd.s32 %v130, 104
    %v144 = vadd.s32 %v130, 112
    %v145 = vadd.s32 %v130, 120
    %p146 = scmp.ge.s32.totalorder %s128, 0
    %p147 = scmp.lt.s32.totalorder %s94, 128
    %p148 = pnand %p146, %p147
    %p149 = pneg %p148
    // Predicated region
    $region18: #{tpu_custom_call.1} parent=1 // pred_check
      _
    $region19: #{tpu_custom_call.1} parent=1 // pred_check_branch
      %151 = sbr.rel (%p148) target = $region21
    $region20: #{tpu_custom_call.1} parent=1 // pred_region
      %vm152 = vcmp.eq.s32.totalorder %v130, %v56
      %vm153 = vcmp.eq.s32.totalorder %v130, %v57
      %vm154 = vcmp.eq.s32.totalorder %v130, %v58
      %vm155 = vcmp.eq.s32.totalorder %v130, %v59
      %vm156 = vcmp.eq.s32.totalorder %v131, %v56
      %vm157 = vcmp.eq.s32.totalorder %v131, %v57
      %vm158 = vcmp.eq.s32.totalorder %v131, %v58
      %vm159 = vcmp.eq.s32.totalorder %v131, %v59
      %vm160 = vcmp.eq.s32.totalorder %v132, %v56
      %vm161 = vcmp.eq.s32.totalorder %v132, %v57
      %vm162 = vcmp.eq.s32.totalorder %v132, %v58
      %vm163 = vcmp.eq.s32.totalorder %v132, %v59
      %vm164 = vcmp.eq.s32.totalorder %v133, %v56
      %vm165 = vcmp.eq.s32.totalorder %v133, %v57
      %vm166 = vcmp.eq.s32.totalorder %v133, %v58
      %vm167 = vcmp.eq.s32.totalorder %v133, %v59
      %vm168 = vcmp.eq.s32.totalorder %v134, %v56
      %vm169 = vcmp.eq.s32.totalorder %v134, %v57
      %vm170 = vcmp.eq.s32.totalorder %v134, %v58
      %vm171 = vcmp.eq.s32.totalorder %v134, %v59
      %vm172 = vcmp.eq.s32.totalorder %v135, %v56
      %vm173 = vcmp.eq.s32.totalorder %v135, %v57
      %vm174 = vcmp.eq.s32.totalorder %v135, %v58
      %vm175 = vcmp.eq.s32.totalorder %v135, %v59
      %vm176 = vcmp.eq.s32.totalorder %v136, %v56
      %vm177 = vcmp.eq.s32.totalorder %v136, %v57
      %vm178 = vcmp.eq.s32.totalorder %v136, %v58
      %vm179 = vcmp.eq.s32.totalorder %v136, %v59
      %vm180 = vcmp.eq.s32.totalorder %v137, %v56
      %vm181 = vcmp.eq.s32.totalorder %v137, %v57
      %vm182 = vcmp.eq.s32.totalorder %v137, %v58
      %vm183 = vcmp.eq.s32.totalorder %v137, %v59
      %vm184 = vcmp.eq.s32.totalorder %v138, %v56
      %vm185 = vcmp.eq.s32.totalorder %v138, %v57
      %vm186 = vcmp.eq.s32.totalorder %v138, %v58
      %vm187 = vcmp.eq.s32.totalorder %v138, %v59
      %vm188 = vcmp.eq.s32.totalorder %v139, %v56
      %vm189 = vcmp.eq.s32.totalorder %v139, %v57
      %vm190 = vcmp.eq.s32.totalorder %v139, %v58
      %vm191 = vcmp.eq.s32.totalorder %v139, %v59
      %vm192 = vcmp.eq.s32.totalorder %v140, %v56
      %vm193 = vcmp.eq.s32.totalorder %v140, %v57
      %vm194 = vcmp.eq.s32.totalorder %v140, %v58
      %vm195 = vcmp.eq.s32.totalorder %v140, %v59
      %vm196 = vcmp.eq.s32.totalorder %v141, %v56
      %vm197 = vcmp.eq.s32.totalorder %v141, %v57
      %vm198 = vcmp.eq.s32.totalorder %v141, %v58
      %vm199 = vcmp.eq.s32.totalorder %v141, %v59
      %vm200 = vcmp.eq.s32.totalorder %v142, %v56
      %vm201 = vcmp.eq.s32.totalorder %v142, %v57
      %vm202 = vcmp.eq.s32.totalorder %v142, %v58
      %vm203 = vcmp.eq.s32.totalorder %v142, %v59
      %vm204 = vcmp.eq.s32.totalorder %v143, %v56
      %vm205 = vcmp.eq.s32.totalorder %v143, %v57
      %vm206 = vcmp.eq.s32.totalorder %v143, %v58
      %vm207 = vcmp.eq.s32.totalorder %v143, %v59
      %vm208 = vcmp.eq.s32.totalorder %v144, %v56
      %vm209 = vcmp.eq.s32.totalorder %v144, %v57
      %vm210 = vcmp.eq.s32.totalorder %v144, %v58
      %vm211 = vcmp.eq.s32.totalorder %v144, %v59
      %vm212 = vcmp.eq.s32.totalorder %v145, %v56
      %vm213 = vcmp.eq.s32.totalorder %v145, %v57
      %vm214 = vcmp.eq.s32.totalorder %v145, %v58
      %vm215 = vcmp.eq.s32.totalorder %v145, %v59
      %v216 = vsel %vm152, 1, 0
      %v217 = vsel %vm153, 1, 0
      %v218 = vsel %vm154, 1, 0
      %v219 = vsel %vm155, 1, 0
      %v220 = vsel %vm156, 1, 0
      %v221 = vsel %vm157, 1, 0
      %v222 = vsel %vm158, 1, 0
      %v223 = vsel %vm159, 1, 0
      %v224 = vsel %vm160, 1, 0
      %v225 = vsel %vm161, 1, 0
      %v226 = vsel %vm162, 1, 0
      %v227 = vsel %vm163, 1, 0
      %v228 = vsel %vm164, 1, 0
      %v229 = vsel %vm165, 1, 0
      %v230 = vsel %vm166, 1, 0
      %v231 = vsel %vm167, 1, 0
      %v232 = vsel %vm168, 1, 0
      %v233 = vsel %vm169, 1, 0
      %v234 = vsel %vm170, 1, 0
      %v235 = vsel %vm171, 1, 0
      %v236 = vsel %vm172, 1, 0
      %v237 = vsel %vm173, 1, 0
      %v238 = vsel %vm174, 1, 0
      %v239 = vsel %vm175, 1, 0
      %v240 = vsel %vm176, 1, 0
      %v241 = vsel %vm177, 1, 0
      %v242 = vsel %vm178, 1, 0
      %v243 = vsel %vm179, 1, 0
      %v244 = vsel %vm180, 1, 0
      %v245 = vsel %vm181, 1, 0
      %v246 = vsel %vm182, 1, 0
      %v247 = vsel %vm183, 1, 0
      %v248 = vsel %vm184, 1, 0
      %v249 = vsel %vm185, 1, 0
      %v250 = vsel %vm186, 1, 0
      %v251 = vsel %vm187, 1, 0
      %v252 = vsel %vm188, 1, 0
      %v253 = vsel %vm189, 1, 0
      %v254 = vsel %vm190, 1, 0
      %v255 = vsel %vm191, 1, 0
      %v256 = vsel %vm192, 1, 0
      %v257 = vsel %vm193, 1, 0
      %v258 = vsel %vm194, 1, 0
      %v259 = vsel %vm195, 1, 0
      %v260 = vsel %vm196, 1, 0
      %v261 = vsel %vm197, 1, 0
      %v262 = vsel %vm198, 1, 0
      %v263 = vsel %vm199, 1, 0
      %v264 = vsel %vm200, 1, 0
      %v265 = vsel %vm201, 1, 0
      %v266 = vsel %vm202, 1, 0
      %v267 = vsel %vm203, 1, 0
      %v268 = vsel %vm204, 1, 0
      %v269 = vsel %vm205, 1, 0
      %v270 = vsel %vm206, 1, 0
      %v271 = vsel %vm207, 1, 0
      %v272 = vsel %vm208, 1, 0
      %v273 = vsel %vm209, 1, 0
      %v274 = vsel %vm210, 1, 0
      %v275 = vsel %vm211, 1, 0
      %v276 = vsel %vm212, 1, 0
      %v277 = vsel %vm213, 1, 0
      %v278 = vsel %vm214, 1, 0
      %v279 = vsel %vm215, 1, 0
      %v280 = vcvt.s32.f32 %v216
      %v281 = vcvt.s32.f32 %v217
      %v282 = vcvt.s32.f32 %v218
      %v283 = vcvt.s32.f32 %v219
      %v284 = vcvt.s32.f32 %v220
      %v285 = vcvt.s32.f32 %v221
      %v286 = vcvt.s32.f32 %v222
      %v287 = vcvt.s32.f32 %v223
      %v288 = vcvt.s32.f32 %v224
      %v289 = vcvt.s32.f32 %v225
      %v290 = vcvt.s32.f32 %v226
      %v291 = vcvt.s32.f32 %v227
      %v292 = vcvt.s32.f32 %v228
      %v293 = vcvt.s32.f32 %v229
      %v294 = vcvt.s32.f32 %v230
      %v295 = vcvt.s32.f32 %v231
      %v296 = vcvt.s32.f32 %v232
      %v297 = vcvt.s32.f32 %v233
      %v298 = vcvt.s32.f32 %v234
      %v299 = vcvt.s32.f32 %v235
      %v300 = vcvt.s32.f32 %v236
      %v301 = vcvt.s32.f32 %v237
      %v302 = vcvt.s32.f32 %v238
      %v303 = vcvt.s32.f32 %v239
      %v304 = vcvt.s32.f32 %v240
      %v305 = vcvt.s32.f32 %v241
      %v306 = vcvt.s32.f32 %v242
      %v307 = vcvt.s32.f32 %v243
      %v308 = vcvt.s32.f32 %v244
      %v309 = vcvt.s32.f32 %v245
      %v310 = vcvt.s32.f32 %v246
      %v311 = vcvt.s32.f32 %v247
      %v312 = vcvt.s32.f32 %v248
      %v313 = vcvt.s32.f32 %v249
      %v314 = vcvt.s32.f32 %v250
      %v315 = vcvt.s32.f32 %v251
      %v316 = vcvt.s32.f32 %v252
      %v317 = vcvt.s32.f32 %v253
      %v318 = vcvt.s32.f32 %v254
      %v319 = vcvt.s32.f32 %v255
      %v320 = vcvt.s32.f32 %v256
      %v321 = vcvt.s32.f32 %v257
      %v322 = vcvt.s32.f32 %v258
      %v323 = vcvt.s32.f32 %v259
      %v324 = vcvt.s32.f32 %v260
      %v325 = vcvt.s32.f32 %v261
      %v326 = vcvt.s32.f32 %v262
      %v327 = vcvt.s32.f32 %v263
      %v328 = vcvt.s32.f32 %v264
      %v329 = vcvt.s32.f32 %v265
      %v330 = vcvt.s32.f32 %v266
      %v331 = vcvt.s32.f32 %v267
      %v332 = vcvt.s32.f32 %v268
      %v333 = vcvt.s32.f32 %v269
      %v334 = vcvt.s32.f32 %v270
      %v335 = vcvt.s32.f32 %v271
      %v336 = vcvt.s32.f32 %v272
      %v337 = vcvt.s32.f32 %v273
      %v338 = vcvt.s32.f32 %v274
      %v339 = vcvt.s32.f32 %v275
      %v340 = vcvt.s32.f32 %v276
      %v341 = vcvt.s32.f32 %v277
      %v342 = vcvt.s32.f32 %v278
      %v343 = vcvt.s32.f32 %v279
      %v344 = vpack.c.bf16 %v284, %v280
      %v345 = vpack.c.bf16 %v285, %v281
      %v346 = vpack.c.bf16 %v286, %v282
      %v347 = vpack.c.bf16 %v287, %v283
      %v348 = vpack.c.bf16 %v292, %v288
      %v349 = vpack.c.bf16 %v293, %v289
      %v350 = vpack.c.bf16 %v294, %v290
      %v351 = vpack.c.bf16 %v295, %v291
      %v352 = vpack.c.bf16 %v300, %v296
      %v353 = vpack.c.bf16 %v301, %v297
      %v354 = vpack.c.bf16 %v302, %v298
      %v355 = vpack.c.bf16 %v303, %v299
      %v356 = vpack.c.bf16 %v308, %v304
      %v357 = vpack.c.bf16 %v309, %v305
      %v358 = vpack.c.bf16 %v310, %v306
      %v359 = vpack.c.bf16 %v311, %v307
      %v360 = vpack.c.bf16 %v316, %v312
      %v361 = vpack.c.bf16 %v317, %v313
      %v362 = vpack.c.bf16 %v318, %v314
      %v363 = vpack.c.bf16 %v319, %v315
      %v364 = vpack.c.bf16 %v324, %v320
      %v365 = vpack.c.bf16 %v325, %v321
      %v366 = vpack.c.bf16 %v326, %v322
      %v367 = vpack.c.bf16 %v327, %v323
      %v368 = vpack.c.bf16 %v332, %v328
      %v369 = vpack.c.bf16 %v333, %v329
      %v370 = vpack.c.bf16 %v334, %v330
      %v371 = vpack.c.bf16 %v335, %v331
      %v372 = vpack.c.bf16 %v340, %v336
      %v373 = vpack.c.bf16 %v341, %v337
      %v374 = vpack.c.bf16 %v342, %v338
      %v375 = vpack.c.bf16 %v343, %v339
      %v376 = vld [vmem:[#allocation5] sm:$0xf]
      %s377 = scalar_lea.vmem [#allocation5], 16
      %v378 = vld [vmem:[%s377] sm:$0xf]
      %379 = vmatpush.bf16.msra.mxu0 %v372
      %380 = vmatpush.bf16.msra.mxu0 %v368
      %381 = vmatpush.bf16.msra.mxu0 %v364
      %382 = vmatpush.bf16.msra.mxu0 %v360
      %383 = vmatpush.bf16.msra.mxu0 %v356
      %384 = vmatpush.bf16.msra.mxu0 %v352
      %385 = vmatpush.bf16.msra.mxu0 %v348
      %386 = vmatpush.bf16.msra.mxu0 %v344
      %387 = vmatmul.bf16.gmra.mxu0 %v378
      %v388 = vpop.f32.mrf.mxu0
      %v389 = vadd.f32 0.0, %v388
      %v390 = vpop.f32.mrf.mxu0
      %391 = vdwg.mxu0
      %392 = vmatpush.bf16.msra.mxu0 %v373
      %393 = vmatpush.bf16.msra.mxu0 %v369
      %394 = vmatpush.bf16.msra.mxu0 %v365
      %395 = vmatpush.bf16.msra.mxu0 %v361
      %396 = vmatpush.bf16.msra.mxu0 %v357
      %397 = vmatpush.bf16.msra.mxu0 %v353
      %398 = vmatpush.bf16.msra.mxu0 %v349
      %399 = vmatpush.bf16.msra.mxu0 %v345
      %400 = vmatmul.bf16.gmra.mxu0 %v378
      %v401 = vpop.f32.mrf.mxu0
      %v402 = vadd.f32 0.0, %v401
      %v403 = vpop.f32.mrf.mxu0
      %404 = vdwg.mxu0
      %405 = vmatpush.bf16.msra.mxu0 %v374
      %406 = vmatpush.bf16.msra.mxu0 %v370
      %407 = vmatpush.bf16.msra.mxu0 %v366
      %408 = vmatpush.bf16.msra.mxu0 %v362
      %409 = vmatpush.bf16.msra.mxu0 %v358
      %410 = vmatpush.bf16.msra.mxu0 %v354
      %411 = vmatpush.bf16.msra.mxu0 %v350
      %412 = vmatpush.bf16.msra.mxu0 %v346
      %413 = vmatmul.bf16.gmra.mxu0 %v378
      %v414 = vpop.f32.mrf.mxu0
      %v415 = vadd.f32 0.0, %v414
      %v416 = vpop.f32.mrf.mxu0
      %417 = vdwg.mxu0
      %418 = vmatpush.bf16.msra.mxu0 %v375
      %419 = vmatpush.bf16.msra.mxu0 %v371
      %420 = vmatpush.bf16.msra.mxu0 %v367
      %421 = vmatpush.bf16.msra.mxu0 %v363
      %422 = vmatpush.bf16.msra.mxu0 %v359
      %423 = vmatpush.bf16.msra.mxu0 %v355
      %424 = vmatpush.bf16.msra.mxu0 %v351
      %425 = vmatpush.bf16.msra.mxu0 %v347
      %426 = vmatmul.bf16.gmra.mxu0 %v378
      %v427 = vpop.f32.mrf.mxu0
      %v428 = vadd.f32 0.0, %v427
      %v429 = vpop.f32.mrf.mxu0
      %430 = vdwg.mxu0
      %431 = vmatpush.bf16.msra.mxu0 %v372
      %432 = vmatpush.bf16.msra.mxu0 %v368
      %433 = vmatpush.bf16.msra.mxu0 %v364
      %434 = vmatpush.bf16.msra.mxu0 %v360
      %435 = vmatpush.bf16.msra.mxu0 %v356
      %436 = vmatpush.bf16.msra.mxu0 %v352
      %437 = vmatpush.bf16.msra.mxu0 %v348
      %438 = vmatpush.bf16.msra.mxu0 %v344
      %439 = vmatmul.bf16.gmra.mxu0 %v376
      %v440 = vpop.f32.mrf.mxu0
      %v441 = vadd.f32 %v389, %v440
      %v442 = vpop.f32.mrf.mxu0
      %443 = vdwg.mxu0
      %444 = vmatpush.bf16.msra.mxu0 %v373
      %445 = vmatpush.bf16.msra.mxu0 %v369
      %446 = vmatpush.bf16.msra.mxu0 %v365
      %447 = vmatpush.bf16.msra.mxu0 %v361
      %448 = vmatpush.bf16.msra.mxu0 %v357
      %449 = vmatpush.bf16.msra.mxu0 %v353
      %450 = vmatpush.bf16.msra.mxu0 %v349
      %451 = vmatpush.bf16.msra.mxu0 %v345
      %452 = vmatmul.bf16.gmra.mxu0 %v376
      %v453 = vpop.f32.mrf.mxu0
      %v454 = vadd.f32 %v402, %v453
      %v455 = vpop.f32.mrf.mxu0
      %456 = vdwg.mxu0
      %457 = vmatpush.bf16.msra.mxu0 %v374
      %458 = vmatpush.bf16.msra.mxu0 %v370
      %459 = vmatpush.bf16.msra.mxu0 %v366
      %460 = vmatpush.bf16.msra.mxu0 %v362
      %461 = vmatpush.bf16.msra.mxu0 %v358
      %462 = vmatpush.bf16.msra.mxu0 %v354
      %463 = vmatpush.bf16.msra.mxu0 %v350
      %464 = vmatpush.bf16.msra.mxu0 %v346
      %465 = vmatmul.bf16.gmra.mxu0 %v376
      %v466 = vpop.f32.mrf.mxu0
      %v467 = vadd.f32 %v415, %v466
      %v468 = vpop.f32.mrf.mxu0
      %469 = vdwg.mxu0
      %470 = vmatpush.bf16.msra.mxu0 %v375
      %471 = vmatpush.bf16.msra.mxu0 %v371
      %472 = vmatpush.bf16.msra.mxu0 %v367
      %473 = vmatpush.bf16.msra.mxu0 %v363
      %474 = vmatpush.bf16.msra.mxu0 %v359
      %475 = vmatpush.bf16.msra.mxu0 %v355
      %476 = vmatpush.bf16.msra.mxu0 %v351
      %477 = vmatpush.bf16.msra.mxu0 %v347
      %478 = vmatmul.bf16.gmra.mxu0 %v376
      %v479 = vpop.f32.mrf.mxu0
      %v480 = vadd.f32 %v428, %v479
      %v481 = vpop.f32.mrf.mxu0
      %482 = vdwg.mxu0
    $region21: #{tpu_custom_call.1} parent=1 // pred_fallthru
      %v483 = vphi 0, %v441
      %v484 = vphi 0, %v454
      %v485 = vphi 0, %v467
      %v486 = vphi 0, %v480
    // Predicated region
    $region22: #{tpu_custom_call.1} parent=1 // pred_check
      %p487 = pneg %p148
    $region23: #{tpu_custom_call.1} parent=1 // pred_check_branch
      %489 = sbr.rel (%p487) target = $region25
    $region24: #{tpu_custom_call.1} parent=1 // pred_region
      _
    $region25: #{tpu_custom_call.1} parent=1 // pred_fallthru
      %v490 = vphi %v483, 0.0
      %v491 = vphi %v484, 0.0
      %v492 = vphi %v485, 0.0
      %v493 = vphi %v486, 0.0
    %p494 = scmp.ge.s32.totalorder %s128, 128
    %p495 = scmp.lt.s32.totalorder %s94, 256
    %p496 = pnand %p494, %p495
    %p497 = pneg %p496
    // Predicated region
    $region26: #{tpu_custom_call.1} parent=1 // pred_check
      _
    $region27: #{tpu_custom_call.1} parent=1 // pred_check_branch
      %499 = sbr.rel (%p496) target = $region29
    $region28: #{tpu_custom_call.1} parent=1 // pred_region
      %v500 = vsub.s32 %v55, 128
      %v501 = vperm.slane %v500, 0
      %v502 = vperm.slane %v500, 1
      %v503 = vperm.slane %v500, 2
      %v504 = vperm.slane %v500, 3
      %vm505 = vcmp.eq.s32.totalorder %v130, %v501
      %vm506 = vcmp.eq.s32.totalorder %v130, %v502
      %vm507 = vcmp.eq.s32.totalorder %v130, %v503
      %vm508 = vcmp.eq.s32.totalorder %v130, %v504
      %vm509 = vcmp.eq.s32.totalorder %v131, %v501
      %vm510 = vcmp.eq.s32.totalorder %v131, %v502
      %vm511 = vcmp.eq.s32.totalorder %v131, %v503
      %vm512 = vcmp.eq.s32.totalorder %v131, %v504
      %vm513 = vcmp.eq.s32.totalorder %v132, %v501
      %vm514 = vcmp.eq.s32.totalorder %v132, %v502
      %vm515 = vcmp.eq.s32.totalorder %v132, %v503
      %vm516 = vcmp.eq.s32.totalorder %v132, %v504
      %vm517 = vcmp.eq.s32.totalorder %v133, %v501
      %vm518 = vcmp.eq.s32.totalorder %v133, %v502
      %vm519 = vcmp.eq.s32.totalorder %v133, %v503
      %vm520 = vcmp.eq.s32.totalorder %v133, %v504
      %vm521 = vcmp.eq.s32.totalorder %v134, %v501
      %vm522 = vcmp.eq.s32.totalorder %v134, %v502
      %vm523 = vcmp.eq.s32.totalorder %v134, %v503
      %vm524 = vcmp.eq.s32.totalorder %v134, %v504
      %vm525 = vcmp.eq.s32.totalorder %v135, %v501
      %vm526 = vcmp.eq.s32.totalorder %v135, %v502
      %vm527 = vcmp.eq.s32.totalorder %v135, %v503
      %vm528 = vcmp.eq.s32.totalorder %v135, %v504
      %vm529 = vcmp.eq.s32.totalorder %v136, %v501
      %vm530 = vcmp.eq.s32.totalorder %v136, %v502
      %vm531 = vcmp.eq.s32.totalorder %v136, %v503
      %vm532 = vcmp.eq.s32.totalorder %v136, %v504
      %vm533 = vcmp.eq.s32.totalorder %v137, %v501
      %vm534 = vcmp.eq.s32.totalorder %v137, %v502
      %vm535 = vcmp.eq.s32.totalorder %v137, %v503
      %vm536 = vcmp.eq.s32.totalorder %v137, %v504
      %vm537 = vcmp.eq.s32.totalorder %v138, %v501
      %vm538 = vcmp.eq.s32.totalorder %v138, %v502
      %vm539 = vcmp.eq.s32.totalorder %v138, %v503
      %vm540 = vcmp.eq.s32.totalorder %v138, %v504
      %vm541 = vcmp.eq.s32.totalorder %v139, %v501
      %vm542 = vcmp.eq.s32.totalorder %v139, %v502
      %vm543 = vcmp.eq.s32.totalorder %v139, %v503
      %vm544 = vcmp.eq.s32.totalorder %v139, %v504
      %vm545 = vcmp.eq.s32.totalorder %v140, %v501
      %vm546 = vcmp.eq.s32.totalorder %v140, %v502
      %vm547 = vcmp.eq.s32.totalorder %v140, %v503
      %vm548 = vcmp.eq.s32.totalorder %v140, %v504
      %vm549 = vcmp.eq.s32.totalorder %v141, %v501
      %vm550 = vcmp.eq.s32.totalorder %v141, %v502
      %vm551 = vcmp.eq.s32.totalorder %v141, %v503
      %vm552 = vcmp.eq.s32.totalorder %v141, %v504
      %vm553 = vcmp.eq.s32.totalorder %v142, %v501
      %vm554 = vcmp.eq.s32.totalorder %v142, %v502
      %vm555 = vcmp.eq.s32.totalorder %v142, %v503
      %vm556 = vcmp.eq.s32.totalorder %v142, %v504
      %vm557 = vcmp.eq.s32.totalorder %v143, %v501
      %vm558 = vcmp.eq.s32.totalorder %v143, %v502
      %vm559 = vcmp.eq.s32.totalorder %v143, %v503
      %vm560 = vcmp.eq.s32.totalorder %v143, %v504
      %vm561 = vcmp.eq.s32.totalorder %v144, %v501
      %vm562 = vcmp.eq.s32.totalorder %v144, %v502
      %vm563 = vcmp.eq.s32.totalorder %v144, %v503
      %vm564 = vcmp.eq.s32.totalorder %v144, %v504
      %vm565 = vcmp.eq.s32.totalorder %v145, %v501
      %vm566 = vcmp.eq.s32.totalorder %v145, %v502
      %vm567 = vcmp.eq.s32.totalorder %v145, %v503
      %vm568 = vcmp.eq.s32.totalorder %v145, %v504
      %v569 = vsel %vm505, 1, 0
      %v570 = vsel %vm506, 1, 0
      %v571 = vsel %vm507, 1, 0
      %v572 = vsel %vm508, 1, 0
      %v573 = vsel %vm509, 1, 0
      %v574 = vsel %vm510, 1, 0
      %v575 = vsel %vm511, 1, 0
      %v576 = vsel %vm512, 1, 0
      %v577 = vsel %vm513, 1, 0
      %v578 = vsel %vm514, 1, 0
      %v579 = vsel %vm515, 1, 0
      %v580 = vsel %vm516, 1, 0
      %v581 = vsel %vm517, 1, 0
      %v582 = vsel %vm518, 1, 0
      %v583 = vsel %vm519, 1, 0
      %v584 = vsel %vm520, 1, 0
      %v585 = vsel %vm521, 1, 0
      %v586 = vsel %vm522, 1, 0
      %v587 = vsel %vm523, 1, 0
      %v588 = vsel %vm524, 1, 0
      %v589 = vsel %vm525, 1, 0
      %v590 = vsel %vm526, 1, 0
      %v591 = vsel %vm527, 1, 0
      %v592 = vsel %vm528, 1, 0
      %v593 = vsel %vm529, 1, 0
      %v594 = vsel %vm530, 1, 0
      %v595 = vsel %vm531, 1, 0
      %v596 = vsel %vm532, 1, 0
      %v597 = vsel %vm533, 1, 0
      %v598 = vsel %vm534, 1, 0
      %v599 = vsel %vm535, 1, 0
      %v600 = vsel %vm536, 1, 0
      %v601 = vsel %vm537, 1, 0
      %v602 = vsel %vm538, 1, 0
      %v603 = vsel %vm539, 1, 0
      %v604 = vsel %vm540, 1, 0
      %v605 = vsel %vm541, 1, 0
      %v606 = vsel %vm542, 1, 0
      %v607 = vsel %vm543, 1, 0
      %v608 = vsel %vm544, 1, 0
      %v609 = vsel %vm545, 1, 0
      %v610 = vsel %vm546, 1, 0
      %v611 = vsel %vm547, 1, 0
      %v612 = vsel %vm548, 1, 0
      %v613 = vsel %vm549, 1, 0
      %v614 = vsel %vm550, 1, 0
      %v615 = vsel %vm551, 1, 0
      %v616 = vsel %vm552, 1, 0
      %v617 = vsel %vm553, 1, 0
      %v618 = vsel %vm554, 1, 0
      %v619 = vsel %vm555, 1, 0
      %v620 = vsel %vm556, 1, 0
      %v621 = vsel %vm557, 1, 0
      %v622 = vsel %vm558, 1, 0
      %v623 = vsel %vm559, 1, 0
      %v624 = vsel %vm560, 1, 0
      %v625 = vsel %vm561, 1, 0
      %v626 = vsel %vm562, 1, 0
      %v627 = vsel %vm563, 1, 0
      %v628 = vsel %vm564, 1, 0
      %v629 = vsel %vm565, 1, 0
      %v630 = vsel %vm566, 1, 0
      %v631 = vsel %vm567, 1, 0
      %v632 = vsel %vm568, 1, 0
      %v633 = vcvt.s32.f32 %v569
      %v634 = vcvt.s32.f32 %v570
      %v635 = vcvt.s32.f32 %v571
      %v636 = vcvt.s32.f32 %v572
      %v637 = vcvt.s32.f32 %v573
      %v638 = vcvt.s32.f32 %v574
      %v639 = vcvt.s32.f32 %v575
      %v640 = vcvt.s32.f32 %v576
      %v641 = vcvt.s32.f32 %v577
      %v642 = vcvt.s32.f32 %v578
      %v643 = vcvt.s32.f32 %v579
      %v644 = vcvt.s32.f32 %v580
      %v645 = vcvt.s32.f32 %v581
      %v646 = vcvt.s32.f32 %v582
      %v647 = vcvt.s32.f32 %v583
      %v648 = vcvt.s32.f32 %v584
      %v649 = vcvt.s32.f32 %v585
      %v650 = vcvt.s32.f32 %v586
      %v651 = vcvt.s32.f32 %v587
      %v652 = vcvt.s32.f32 %v588
      %v653 = vcvt.s32.f32 %v589
      %v654 = vcvt.s32.f32 %v590
      %v655 = vcvt.s32.f32 %v591
      %v656 = vcvt.s32.f32 %v592
      %v657 = vcvt.s32.f32 %v593
      %v658 = vcvt.s32.f32 %v594
      %v659 = vcvt.s32.f32 %v595
      %v660 = vcvt.s32.f32 %v596
      %v661 = vcvt.s32.f32 %v597
      %v662 = vcvt.s32.f32 %v598
      %v663 = vcvt.s32.f32 %v599
      %v664 = vcvt.s32.f32 %v600
      %v665 = vcvt.s32.f32 %v601
      %v666 = vcvt.s32.f32 %v602
      %v667 = vcvt.s32.f32 %v603
      %v668 = vcvt.s32.f32 %v604
      %v669 = vcvt.s32.f32 %v605
      %v670 = vcvt.s32.f32 %v606
      %v671 = vcvt.s32.f32 %v607
      %v672 = vcvt.s32.f32 %v608
      %v673 = vcvt.s32.f32 %v609
      %v674 = vcvt.s32.f32 %v610
      %v675 = vcvt.s32.f32 %v611
      %v676 = vcvt.s32.f32 %v612
      %v677 = vcvt.s32.f32 %v613
      %v678 = vcvt.s32.f32 %v614
      %v679 = vcvt.s32.f32 %v615
      %v680 = vcvt.s32.f32 %v616
      %v681 = vcvt.s32.f32 %v617
      %v682 = vcvt.s32.f32 %v618
      %v683 = vcvt.s32.f32 %v619
      %v684 = vcvt.s32.f32 %v620
      %v685 = vcvt.s32.f32 %v621
      %v686 = vcvt.s32.f32 %v622
      %v687 = vcvt.s32.f32 %v623
      %v688 = vcvt.s32.f32 %v624
      %v689 = vcvt.s32.f32 %v625
      %v690 = vcvt.s32.f32 %v626
      %v691 = vcvt.s32.f32 %v627
      %v692 = vcvt.s32.f32 %v628
      %v693 = vcvt.s32.f32 %v629
      %v694 = vcvt.s32.f32 %v630
      %v695 = vcvt.s32.f32 %v631
      %v696 = vcvt.s32.f32 %v632
      %v697 = vpack.c.bf16 %v637, %v633
      %v698 = vpack.c.bf16 %v638, %v634
      %v699 = vpack.c.bf16 %v639, %v635
      %v700 = vpack.c.bf16 %v640, %v636
      %v701 = vpack.c.bf16 %v645, %v641
      %v702 = vpack.c.bf16 %v646, %v642
      %v703 = vpack.c.bf16 %v647, %v643
      %v704 = vpack.c.bf16 %v648, %v644
      %v705 = vpack.c.bf16 %v653, %v649
      %v706 = vpack.c.bf16 %v654, %v650
      %v707 = vpack.c.bf16 %v655, %v651
      %v708 = vpack.c.bf16 %v656, %v652
      %v709 = vpack.c.bf16 %v661, %v657
      %v710 = vpack.c.bf16 %v662, %v658
      %v711 = vpack.c.bf16 %v663, %v659
      %v712 = vpack.c.bf16 %v664, %v660
      %v713 = vpack.c.bf16 %v669, %v665
      %v714 = vpack.c.bf16 %v670, %v666
      %v715 = vpack.c.bf16 %v671, %v667
      %v716 = vpack.c.bf16 %v672, %v668
      %v717 = vpack.c.bf16 %v677, %v673
      %v718 = vpack.c.bf16 %v678, %v674
      %v719 = vpack.c.bf16 %v679, %v675
      %v720 = vpack.c.bf16 %v680, %v676
      %v721 = vpack.c.bf16 %v685, %v681
      %v722 = vpack.c.bf16 %v686, %v682
      %v723 = vpack.c.bf16 %v687, %v683
      %v724 = vpack.c.bf16 %v688, %v684
      %v725 = vpack.c.bf16 %v693, %v689
      %v726 = vpack.c.bf16 %v694, %v690
      %v727 = vpack.c.bf16 %v695, %v691
      %v728 = vpack.c.bf16 %v696, %v692
      %s729 = scalar_lea.vmem [#allocation5], 4
      %v730 = vld [vmem:[%s729] sm:$0xf]
      %731 = vmatpush.bf16.msra.mxu0 %v725
      %732 = vmatpush.bf16.msra.mxu0 %v721
      %733 = vmatpush.bf16.msra.mxu0 %v717
      %734 = vmatpush.bf16.msra.mxu0 %v713
      %735 = vmatpush.bf16.msra.mxu0 %v709
      %736 = vmatpush.bf16.msra.mxu0 %v705
      %737 = vmatpush.bf16.msra.mxu0 %v701
      %738 = vmatpush.bf16.msra.mxu0 %v697
      %739 = vmatmul.bf16.gmra.mxu0 %v730
      %v740 = vpop.f32.mrf.mxu0
      %v741 = vadd.f32 0.0, %v740
      %v742 = vpop.f32.mrf.mxu0
      %743 = vdwg.mxu0
      %744 = vmatpush.bf16.msra.mxu0 %v726
      %745 = vmatpush.bf16.msra.mxu0 %v722
      %746 = vmatpush.bf16.msra.mxu0 %v718
      %747 = vmatpush.bf16.msra.mxu0 %v714
      %748 = vmatpush.bf16.msra.mxu0 %v710
      %749 = vmatpush.bf16.msra.mxu0 %v706
      %750 = vmatpush.bf16.msra.mxu0 %v702
      %751 = vmatpush.bf16.msra.mxu0 %v698
      %752 = vmatmul.bf16.gmra.mxu0 %v730
      %v753 = vpop.f32.mrf.mxu0
      %v754 = vadd.f32 0.0, %v753
      %v755 = vpop.f32.mrf.mxu0
      %756 = vdwg.mxu0
      %757 = vmatpush.bf16.msra.mxu0 %v727
      %758 = vmatpush.bf16.msra.mxu0 %v723
      %759 = vmatpush.bf16.msra.mxu0 %v719
      %760 = vmatpush.bf16.msra.mxu0 %v715
      %761 = vmatpush.bf16.msra.mxu0 %v711
      %762 = vmatpush.bf16.msra.mxu0 %v707
      %763 = vmatpush.bf16.msra.mxu0 %v703
      %764 = vmatpush.bf16.msra.mxu0 %v699
      %765 = vmatmul.bf16.gmra.mxu0 %v730
      %v766 = vpop.f32.mrf.mxu0
      %v767 = vadd.f32 0.0, %v766
      %v768 = vpop.f32.mrf.mxu0
      %769 = vdwg.mxu0
      %770 = vmatpush.bf16.msra.mxu0 %v728
      %771 = vmatpush.bf16.msra.mxu0 %v724
      %772 = vmatpush.bf16.msra.mxu0 %v720
      %773 = vmatpush.bf16.msra.mxu0 %v716
      %774 = vmatpush.bf16.msra.mxu0 %v712
      %775 = vmatpush.bf16.msra.mxu0 %v708
      %776 = vmatpush.bf16.msra.mxu0 %v704
      %777 = vmatpush.bf16.msra.mxu0 %v700
      %778 = vmatmul.bf16.gmra.mxu0 %v730
      %v779 = vpop.f32.mrf.mxu0
      %v780 = vadd.f32 0.0, %v779
      %v781 = vpop.f32.mrf.mxu0
      %782 = vdwg.mxu0
      %v783 = vadd.f32 %v490, %v741
      %v784 = vadd.f32 %v491, %v754
      %v785 = vadd.f32 %v492, %v767
      %v786 = vadd.f32 %v493, %v780
      %s787 = scalar_lea.vmem [#allocation5], 20
      %v788 = vld [vmem:[%s787] sm:$0xf]
      %789 = vmatpush.bf16.msra.mxu0 %v725
      %790 = vmatpush.bf16.msra.mxu0 %v721
      %791 = vmatpush.bf16.msra.mxu0 %v717
      %792 = vmatpush.bf16.msra.mxu0 %v713
      %793 = vmatpush.bf16.msra.mxu0 %v709
      %794 = vmatpush.bf16.msra.mxu0 %v705
      %795 = vmatpush.bf16.msra.mxu0 %v701
      %796 = vmatpush.bf16.msra.mxu0 %v697
      %797 = vmatmul.bf16.gmra.mxu0 %v788
      %v798 = vpop.f32.mrf.mxu0
      %v799 = vadd.f32 0.0, %v798
      %v800 = vpop.f32.mrf.mxu0
      %801 = vdwg.mxu0
      %802 = vmatpush.bf16.msra.mxu0 %v726
      %803 = vmatpush.bf16.msra.mxu0 %v722
      %804 = vmatpush.bf16.msra.mxu0 %v718
      %805 = vmatpush.bf16.msra.mxu0 %v714
      %806 = vmatpush.bf16.msra.mxu0 %v710
      %807 = vmatpush.bf16.msra.mxu0 %v706
      %808 = vmatpush.bf16.msra.mxu0 %v702
      %809 = vmatpush.bf16.msra.mxu0 %v698
      %810 = vmatmul.bf16.gmra.mxu0 %v788
      %v811 = vpop.f32.mrf.mxu0
      %v812 = vadd.f32 0.0, %v811
      %v813 = vpop.f32.mrf.mxu0
      %814 = vdwg.mxu0
      %815 = vmatpush.bf16.msra.mxu0 %v727
      %816 = vmatpush.bf16.msra.mxu0 %v723
      %817 = vmatpush.bf16.msra.mxu0 %v719
      %818 = vmatpush.bf16.msra.mxu0 %v715
      %819 = vmatpush.bf16.msra.mxu0 %v711
      %820 = vmatpush.bf16.msra.mxu0 %v707
      %821 = vmatpush.bf16.msra.mxu0 %v703
      %822 = vmatpush.bf16.msra.mxu0 %v699
      %823 = vmatmul.bf16.gmra.mxu0 %v788
      %v824 = vpop.f32.mrf.mxu0
      %v825 = vadd.f32 0.0, %v824
      %v826 = vpop.f32.mrf.mxu0
      %827 = vdwg.mxu0
      %828 = vmatpush.bf16.msra.mxu0 %v728
      %829 = vmatpush.bf16.msra.mxu0 %v724
      %830 = vmatpush.bf16.msra.mxu0 %v720
      %831 = vmatpush.bf16.msra.mxu0 %v716
      %832 = vmatpush.bf16.msra.mxu0 %v712
      %833 = vmatpush.bf16.msra.mxu0 %v708
      %834 = vmatpush.bf16.msra.mxu0 %v704
      %835 = vmatpush.bf16.msra.mxu0 %v700
      %836 = vmatmul.bf16.gmra.mxu0 %v788
      %v837 = vpop.f32.mrf.mxu0
      %v838 = vadd.f32 0.0, %v837
      %v839 = vpop.f32.mrf.mxu0
      %840 = vdwg.mxu0
      %v841 = vadd.f32 %v783, %v799
      %v842 = vadd.f32 %v784, %v812
      %v843 = vadd.f32 %v785, %v825
      %v844 = vadd.f32 %v786, %v838
    $region29: #{tpu_custom_call.1} parent=1 // pred_fallthru
      %v845 = vphi 0, %v841
      %v846 = vphi 0, %v842
      %v847 = vphi 0, %v843
      %v848 = vphi 0, %v844
    // Predicated region
    $region30: #{tpu_custom_call.1} parent=1 // pred_check
      %p849 = pneg %p496
    $region31: #{tpu_custom_call.1} parent=1 // pred_check_branch
      %851 = sbr.rel (%p849) target = $region33
    $region32: #{tpu_custom_call.1} parent=1 // pred_region
      _
    $region33: #{tpu_custom_call.1} parent=1 // pred_fallthru
      %v852 = vphi %v845, %v490
      %v853 = vphi %v846, %v491
      %v854 = vphi %v847, %v492
      %v855 = vphi %v848, %v493
    %p856 = scmp.ge.s32.totalorder %s128, 256
    %p857 = scmp.lt.s32.totalorder %s94, 384
    %p858 = pnand %p856, %p857
    %p859 = pneg %p858
    // Predicated region
    $region34: #{tpu_custom_call.1} parent=1 // pred_check
      _
    $region35: #{tpu_custom_call.1} parent=1 // pred_check_branch
      %861 = sbr.rel (%p858) target = $region37
    $region36: #{tpu_custom_call.1} parent=1 // pred_region
      %v862 = vsub.s32 %v55, 256
      %v863 = vperm.slane %v862, 0
      %v864 = vperm.slane %v862, 1
      %v865 = vperm.slane %v862, 2
      %v866 = vperm.slane %v862, 3
      %vm867 = vcmp.eq.s32.totalorder %v130, %v863
      %vm868 = vcmp.eq.s32.totalorder %v130, %v864
      %vm869 = vcmp.eq.s32.totalorder %v130, %v865
      %vm870 = vcmp.eq.s32.totalorder %v130, %v866
      %vm871 = vcmp.eq.s32.totalorder %v131, %v863
      %vm872 = vcmp.eq.s32.totalorder %v131, %v864
      %vm873 = vcmp.eq.s32.totalorder %v131, %v865
      %vm874 = vcmp.eq.s32.totalorder %v131, %v866
      %vm875 = vcmp.eq.s32.totalorder %v132, %v863
      %vm876 = vcmp.eq.s32.totalorder %v132, %v864
      %vm877 = vcmp.eq.s32.totalorder %v132, %v865
      %vm878 = vcmp.eq.s32.totalorder %v132, %v866
      %vm879 = vcmp.eq.s32.totalorder %v133, %v863
      %vm880 = vcmp.eq.s32.totalorder %v133, %v864
      %vm881 = vcmp.eq.s32.totalorder %v133, %v865
      %vm882 = vcmp.eq.s32.totalorder %v133, %v866
      %vm883 = vcmp.eq.s32.totalorder %v134, %v863
      %vm884 = vcmp.eq.s32.totalorder %v134, %v864
      %vm885 = vcmp.eq.s32.totalorder %v134, %v865
      %vm886 = vcmp.eq.s32.totalorder %v134, %v866
      %vm887 = vcmp.eq.s32.totalorder %v135, %v863
      %vm888 = vcmp.eq.s32.totalorder %v135, %v864
      %vm889 = vcmp.eq.s32.totalorder %v135, %v865
      %vm890 = vcmp.eq.s32.totalorder %v135, %v866
      %vm891 = vcmp.eq.s32.totalorder %v136, %v863
      %vm892 = vcmp.eq.s32.totalorder %v136, %v864
      %vm893 = vcmp.eq.s32.totalorder %v136, %v865
      %vm894 = vcmp.eq.s32.totalorder %v136, %v866
      %vm895 = vcmp.eq.s32.totalorder %v137, %v863
      %vm896 = vcmp.eq.s32.totalorder %v137, %v864
      %vm897 = vcmp.eq.s32.totalorder %v137, %v865
      %vm898 = vcmp.eq.s32.totalorder %v137, %v866
      %vm899 = vcmp.eq.s32.totalorder %v138, %v863
      %vm900 = vcmp.eq.s32.totalorder %v138, %v864
      %vm901 = vcmp.eq.s32.totalorder %v138, %v865
      %vm902 = vcmp.eq.s32.totalorder %v138, %v866
      %vm903 = vcmp.eq.s32.totalorder %v139, %v863
      %vm904 = vcmp.eq.s32.totalorder %v139, %v864
      %vm905 = vcmp.eq.s32.totalorder %v139, %v865
      %vm906 = vcmp.eq.s32.totalorder %v139, %v866
      %vm907 = vcmp.eq.s32.totalorder %v140, %v863
      %vm908 = vcmp.eq.s32.totalorder %v140, %v864
      %vm909 = vcmp.eq.s32.totalorder %v140, %v865
      %vm910 = vcmp.eq.s32.totalorder %v140, %v866
      %vm911 = vcmp.eq.s32.totalorder %v141, %v863
      %vm912 = vcmp.eq.s32.totalorder %v141, %v864
      %vm913 = vcmp.eq.s32.totalorder %v141, %v865
      %vm914 = vcmp.eq.s32.totalorder %v141, %v866
      %vm915 = vcmp.eq.s32.totalorder %v142, %v863
      %vm916 = vcmp.eq.s32.totalorder %v142, %v864
      %vm917 = vcmp.eq.s32.totalorder %v142, %v865
      %vm918 = vcmp.eq.s32.totalorder %v142, %v866
      %vm919 = vcmp.eq.s32.totalorder %v143, %v863
      %vm920 = vcmp.eq.s32.totalorder %v143, %v864
      %vm921 = vcmp.eq.s32.totalorder %v143, %v865
      %vm922 = vcmp.eq.s32.totalorder %v143, %v866
      %vm923 = vcmp.eq.s32.totalorder %v144, %v863
      %vm924 = vcmp.eq.s32.totalorder %v144, %v864
      %vm925 = vcmp.eq.s32.totalorder %v144, %v865
      %vm926 = vcmp.eq.s32.totalorder %v144, %v866
      %vm927 = vcmp.eq.s32.totalorder %v145, %v863
      %vm928 = vcmp.eq.s32.totalorder %v145, %v864
      %vm929 = vcmp.eq.s32.totalorder %v145, %v865
      %vm930 = vcmp.eq.s32.totalorder %v145, %v866
      %v931 = vsel %vm867, 1, 0
      %v932 = vsel %vm868, 1, 0
      %v933 = vsel %vm869, 1, 0
      %v934 = vsel %vm870, 1, 0
      %v935 = vsel %vm871, 1, 0
      %v936 = vsel %vm872, 1, 0
      %v937 = vsel %vm873, 1, 0
      %v938 = vsel %vm874, 1, 0
      %v939 = vsel %vm875, 1, 0
      %v940 = vsel %vm876, 1, 0
      %v941 = vsel %vm877, 1, 0
      %v942 = vsel %vm878, 1, 0
      %v943 = vsel %vm879, 1, 0
      %v944 = vsel %vm880, 1, 0
      %v945 = vsel %vm881, 1, 0
      %v946 = vsel %vm882, 1, 0
      %v947 = vsel %vm883, 1, 0
      %v948 = vsel %vm884, 1, 0
      %v949 = vsel %vm885, 1, 0
      %v950 = vsel %vm886, 1, 0
      %v951 = vsel %vm887, 1, 0
      %v952 = vsel %vm888, 1, 0
      %v953 = vsel %vm889, 1, 0
      %v954 = vsel %vm890, 1, 0
      %v955 = vsel %vm891, 1, 0
      %v956 = vsel %vm892, 1, 0
      %v957 = vsel %vm893, 1, 0
      %v958 = vsel %vm894, 1, 0
      %v959 = vsel %vm895, 1, 0
      %v960 = vsel %vm896, 1, 0
      %v961 = vsel %vm897, 1, 0
      %v962 = vsel %vm898, 1, 0
      %v963 = vsel %vm899, 1, 0
      %v964 = vsel %vm900, 1, 0
      %v965 = vsel %vm901, 1, 0
      %v966 = vsel %vm902, 1, 0
      %v967 = vsel %vm903, 1, 0
      %v968 = vsel %vm904, 1, 0
      %v969 = vsel %vm905, 1, 0
      %v970 = vsel %vm906, 1, 0
      %v971 = vsel %vm907, 1, 0
      %v972 = vsel %vm908, 1, 0
      %v973 = vsel %vm909, 1, 0
      %v974 = vsel %vm910, 1, 0
      %v975 = vsel %vm911, 1, 0
      %v976 = vsel %vm912, 1, 0
      %v977 = vsel %vm913, 1, 0
      %v978 = vsel %vm914, 1, 0
      %v979 = vsel %vm915, 1, 0
      %v980 = vsel %vm916, 1, 0
      %v981 = vsel %vm917, 1, 0
      %v982 = vsel %vm918, 1, 0
      %v983 = vsel %vm919, 1, 0
      %v984 = vsel %vm920, 1, 0
      %v985 = vsel %vm921, 1, 0
      %v986 = vsel %vm922, 1, 0
      %v987 = vsel %vm923, 1, 0
      %v988 = vsel %vm924, 1, 0
      %v989 = vsel %vm925, 1, 0
      %v990 = vsel %vm926, 1, 0
      %v991 = vsel %vm927, 1, 0
      %v992 = vsel %vm928, 1, 0
      %v993 = vsel %vm929, 1, 0
      %v994 = vsel %vm930, 1, 0
      %v995 = vcvt.s32.f32 %v931
      %v996 = vcvt.s32.f32 %v932
      %v997 = vcvt.s32.f32 %v933
      %v998 = vcvt.s32.f32 %v934
      %v999 = vcvt.s32.f32 %v935
      %v1000 = vcvt.s32.f32 %v936
      %v1001 = vcvt.s32.f32 %v937
      %v1002 = vcvt.s32.f32 %v938
      %v1003 = vcvt.s32.f32 %v939
      %v1004 = vcvt.s32.f32 %v940
      %v1005 = vcvt.s32.f32 %v941
      %v1006 = vcvt.s32.f32 %v942
      %v1007 = vcvt.s32.f32 %v943
      %v1008 = vcvt.s32.f32 %v944
      %v1009 = vcvt.s32.f32 %v945
      %v1010 = vcvt.s32.f32 %v946
      %v1011 = vcvt.s32.f32 %v947
      %v1012 = vcvt.s32.f32 %v948
      %v1013 = vcvt.s32.f32 %v949
      %v1014 = vcvt.s32.f32 %v950
      %v1015 = vcvt.s32.f32 %v951
      %v1016 = vcvt.s32.f32 %v952
      %v1017 = vcvt.s32.f32 %v953
      %v1018 = vcvt.s32.f32 %v954
      %v1019 = vcvt.s32.f32 %v955
      %v1020 = vcvt.s32.f32 %v956
      %v1021 = vcvt.s32.f32 %v957
      %v1022 = vcvt.s32.f32 %v958
      %v1023 = vcvt.s32.f32 %v959
      %v1024 = vcvt.s32.f32 %v960
      %v1025 = vcvt.s32.f32 %v961
      %v1026 = vcvt.s32.f32 %v962
      %v1027 = vcvt.s32.f32 %v963
      %v1028 = vcvt.s32.f32 %v964
      %v1029 = vcvt.s32.f32 %v965
      %v1030 = vcvt.s32.f32 %v966
      %v1031 = vcvt.s32.f32 %v967
      %v1032 = vcvt.s32.f32 %v968
      %v1033 = vcvt.s32.f32 %v969
      %v1034 = vcvt.s32.f32 %v970
      %v1035 = vcvt.s32.f32 %v971
      %v1036 = vcvt.s32.f32 %v972
      %v1037 = vcvt.s32.f32 %v973
      %v1038 = vcvt.s32.f32 %v974
      %v1039 = vcvt.s32.f32 %v975
      %v1040 = vcvt.s32.f32 %v976
      %v1041 = vcvt.s32.f32 %v977
      %v1042 = vcvt.s32.f32 %v978
      %v1043 = vcvt.s32.f32 %v979
      %v1044 = vcvt.s32.f32 %v980
      %v1045 = vcvt.s32.f32 %v981
      %v1046 = vcvt.s32.f32 %v982
      %v1047 = vcvt.s32.f32 %v983
      %v1048 = vcvt.s32.f32 %v984
      %v1049 = vcvt.s32.f32 %v985
      %v1050 = vcvt.s32.f32 %v986
      %v1051 = vcvt.s32.f32 %v987
      %v1052 = vcvt.s32.f32 %v988
      %v1053 = vcvt.s32.f32 %v989
      %v1054 = vcvt.s32.f32 %v990
      %v1055 = vcvt.s32.f32 %v991
      %v1056 = vcvt.s32.f32 %v992
      %v1057 = vcvt.s32.f32 %v993
      %v1058 = vcvt.s32.f32 %v994
      %v1059 = vpack.c.bf16 %v999, %v995
      %v1060 = vpack.c.bf16 %v1000, %v996
      %v1061 = vpack.c.bf16 %v1001, %v997
      %v1062 = vpack.c.bf16 %v1002, %v998
      %v1063 = vpack.c.bf16 %v1007, %v1003
      %v1064 = vpack.c.bf16 %v1008, %v1004
      %v1065 = vpack.c.bf16 %v1009, %v1005
      %v1066 = vpack.c.bf16 %v1010, %v1006
      %v1067 = vpack.c.bf16 %v1015, %v1011
      %v1068 = vpack.c.bf16 %v1016, %v1012
      %v1069 = vpack.c.bf16 %v1017, %v1013
      %v1070 = vpack.c.bf16 %v1018, %v1014
      %v1071 = vpack.c.bf16 %v1023, %v1019
      %v1072 = vpack.c.bf16 %v1024, %v1020
      %v1073 = vpack.c.bf16 %v1025, %v1021
      %v1074 = vpack.c.bf16 %v1026, %v1022
      %v1075 = vpack.c.bf16 %v1031, %v1027
      %v1076 = vpack.c.bf16 %v1032, %v1028
      %v1077 = vpack.c.bf16 %v1033, %v1029
      %v1078 = vpack.c.bf16 %v1034, %v1030
      %v1079 = vpack.c.bf16 %v1039, %v1035
      %v1080 = vpack.c.bf16 %v1040, %v1036
      %v1081 = vpack.c.bf16 %v1041, %v1037
      %v1082 = vpack.c.bf16 %v1042, %v1038
      %v1083 = vpack.c.bf16 %v1047, %v1043
      %v1084 = vpack.c.bf16 %v1048, %v1044
      %v1085 = vpack.c.bf16 %v1049, %v1045
      %v1086 = vpack.c.bf16 %v1050, %v1046
      %v1087 = vpack.c.bf16 %v1055, %v1051
      %v1088 = vpack.c.bf16 %v1056, %v1052
      %v1089 = vpack.c.bf16 %v1057, %v1053
      %v1090 = vpack.c.bf16 %v1058, %v1054
      %s1091 = scalar_lea.vmem [#allocation5], 8
      %v1092 = vld [vmem:[%s1091] sm:$0xf]
      %1093 = vmatpush.bf16.msra.mxu0 %v1087
      %1094 = vmatpush.bf16.msra.mxu0 %v1083
      %1095 = vmatpush.bf16.msra.mxu0 %v1079
      %1096 = vmatpush.bf16.msra.mxu0 %v1075
      %1097 = vmatpush.bf16.msra.mxu0 %v1071
      %1098 = vmatpush.bf16.msra.mxu0 %v1067
      %1099 = vmatpush.bf16.msra.mxu0 %v1063
      %1100 = vmatpush.bf16.msra.mxu0 %v1059
      %1101 = vmatmul.bf16.gmra.mxu0 %v1092
      %v1102 = vpop.f32.mrf.mxu0
      %v1103 = vadd.f32 0.0, %v1102
      %v1104 = vpop.f32.mrf.mxu0
      %1105 = vdwg.mxu0
      %1106 = vmatpush.bf16.msra.mxu0 %v1088
      %1107 = vmatpush.bf16.msra.mxu0 %v1084
      %1108 = vmatpush.bf16.msra.mxu0 %v1080
      %1109 = vmatpush.bf16.msra.mxu0 %v1076
      %1110 = vmatpush.bf16.msra.mxu0 %v1072
      %1111 = vmatpush.bf16.msra.mxu0 %v1068
      %1112 = vmatpush.bf16.msra.mxu0 %v1064
      %1113 = vmatpush.bf16.msra.mxu0 %v1060
      %1114 = vmatmul.bf16.gmra.mxu0 %v1092
      %v1115 = vpop.f32.mrf.mxu0
      %v1116 = vadd.f32 0.0, %v1115
      %v1117 = vpop.f32.mrf.mxu0
      %1118 = vdwg.mxu0
      %1119 = vmatpush.bf16.msra.mxu0 %v1089
      %1120 = vmatpush.bf16.msra.mxu0 %v1085
      %1121 = vmatpush.bf16.msra.mxu0 %v1081
      %1122 = vmatpush.bf16.msra.mxu0 %v1077
      %1123 = vmatpush.bf16.msra.mxu0 %v1073
      %1124 = vmatpush.bf16.msra.mxu0 %v1069
      %1125 = vmatpush.bf16.msra.mxu0 %v1065
      %1126 = vmatpush.bf16.msra.mxu0 %v1061
      %1127 = vmatmul.bf16.gmra.mxu0 %v1092
      %v1128 = vpop.f32.mrf.mxu0
      %v1129 = vadd.f32 0.0, %v1128
      %v1130 = vpop.f32.mrf.mxu0
      %1131 = vdwg.mxu0
      %1132 = vmatpush.bf16.msra.mxu0 %v1090
      %1133 = vmatpush.bf16.msra.mxu0 %v1086
      %1134 = vmatpush.bf16.msra.mxu0 %v1082
      %1135 = vmatpush.bf16.msra.mxu0 %v1078
      %1136 = vmatpush.bf16.msra.mxu0 %v1074
      %1137 = vmatpush.bf16.msra.mxu0 %v1070
      %1138 = vmatpush.bf16.msra.mxu0 %v1066
      %1139 = vmatpush.bf16.msra.mxu0 %v1062
      %1140 = vmatmul.bf16.gmra.mxu0 %v1092
      %v1141 = vpop.f32.mrf.mxu0
      %v1142 = vadd.f32 0.0, %v1141
      %v1143 = vpop.f32.mrf.mxu0
      %1144 = vdwg.mxu0
      %v1145 = vadd.f32 %v852, %v1103
      %v1146 = vadd.f32 %v853, %v1116
      %v1147 = vadd.f32 %v854, %v1129
      %v1148 = vadd.f32 %v855, %v1142
      %s1149 = scalar_lea.vmem [#allocation5], 24
      %v1150 = vld [vmem:[%s1149] sm:$0xf]
      %1151 = vmatpush.bf16.msra.mxu0 %v1087
      %1152 = vmatpush.bf16.msra.mxu0 %v1083
      %1153 = vmatpush.bf16.msra.mxu0 %v1079
      %1154 = vmatpush.bf16.msra.mxu0 %v1075
      %1155 = vmatpush.bf16.msra.mxu0 %v1071
      %1156 = vmatpush.bf16.msra.mxu0 %v1067
      %1157 = vmatpush.bf16.msra.mxu0 %v1063
      %1158 = vmatpush.bf16.msra.mxu0 %v1059
      %1159 = vmatmul.bf16.gmra.mxu0 %v1150
      %v1160 = vpop.f32.mrf.mxu0
      %v1161 = vadd.f32 0.0, %v1160
      %v1162 = vpop.f32.mrf.mxu0
      %1163 = vdwg.mxu0
      %1164 = vmatpush.bf16.msra.mxu0 %v1088
      %1165 = vmatpush.bf16.msra.mxu0 %v1084
      %1166 = vmatpush.bf16.msra.mxu0 %v1080
      %1167 = vmatpush.bf16.msra.mxu0 %v1076
      %1168 = vmatpush.bf16.msra.mxu0 %v1072
      %1169 = vmatpush.bf16.msra.mxu0 %v1068
      %1170 = vmatpush.bf16.msra.mxu0 %v1064
      %1171 = vmatpush.bf16.msra.mxu0 %v1060
      %1172 = vmatmul.bf16.gmra.mxu0 %v1150
      %v1173 = vpop.f32.mrf.mxu0
      %v1174 = vadd.f32 0.0, %v1173
      %v1175 = vpop.f32.mrf.mxu0
      %1176 = vdwg.mxu0
      %1177 = vmatpush.bf16.msra.mxu0 %v1089
      %1178 = vmatpush.bf16.msra.mxu0 %v1085
      %1179 = vmatpush.bf16.msra.mxu0 %v1081
      %1180 = vmatpush.bf16.msra.mxu0 %v1077
      %1181 = vmatpush.bf16.msra.mxu0 %v1073
      %1182 = vmatpush.bf16.msra.mxu0 %v1069
      %1183 = vmatpush.bf16.msra.mxu0 %v1065
      %1184 = vmatpush.bf16.msra.mxu0 %v1061
      %1185 = vmatmul.bf16.gmra.mxu0 %v1150
      %v1186 = vpop.f32.mrf.mxu0
      %v1187 = vadd.f32 0.0, %v1186
      %v1188 = vpop.f32.mrf.mxu0
      %1189 = vdwg.mxu0
      %1190 = vmatpush.bf16.msra.mxu0 %v1090
      %1191 = vmatpush.bf16.msra.mxu0 %v1086
      %1192 = vmatpush.bf16.msra.mxu0 %v1082
      %1193 = vmatpush.bf16.msra.mxu0 %v1078
      %1194 = vmatpush.bf16.msra.mxu0 %v1074
      %1195 = vmatpush.bf16.msra.mxu0 %v1070
      %1196 = vmatpush.bf16.msra.mxu0 %v1066
      %1197 = vmatpush.bf16.msra.mxu0 %v1062
      %1198 = vmatmul.bf16.gmra.mxu0 %v1150
      %v1199 = vpop.f32.mrf.mxu0
      %v1200 = vadd.f32 0.0, %v1199
      %v1201 = vpop.f32.mrf.mxu0
      %1202 = vdwg.mxu0
      %v1203 = vadd.f32 %v1145, %v1161
      %v1204 = vadd.f32 %v1146, %v1174
      %v1205 = vadd.f32 %v1147, %v1187
      %v1206 = vadd.f32 %v1148, %v1200
    $region37: #{tpu_custom_call.1} parent=1 // pred_fallthru
      %v1207 = vphi 0, %v1203
      %v1208 = vphi 0, %v1204
      %v1209 = vphi 0, %v1205
      %v1210 = vphi 0, %v1206
    // Predicated region
    $region38: #{tpu_custom_call.1} parent=1 // pred_check
      %p1211 = pneg %p858
    $region39: #{tpu_custom_call.1} parent=1 // pred_check_branch
      %1213 = sbr.rel (%p1211) target = $region41
    $region40: #{tpu_custom_call.1} parent=1 // pred_region
      _
    $region41: #{tpu_custom_call.1} parent=1 // pred_fallthru
      %v1214 = vphi %v1207, %v852
      %v1215 = vphi %v1208, %v853
      %v1216 = vphi %v1209, %v854
      %v1217 = vphi %v1210, %v855
    %p1218 = scmp.ge.s32.totalorder %s128, 384
    %p1219 = scmp.lt.s32.totalorder %s94, 512
    %p1220 = pnand %p1218, %p1219
    %p1221 = pneg %p1220
    // Predicated region
    $region42: #{tpu_custom_call.1} parent=1 // pred_check
      _
    $region43: #{tpu_custom_call.1} parent=1 // pred_check_branch
      %1223 = sbr.rel (%p1220) target = $region45
    $region44: #{tpu_custom_call.1} parent=1 // pred_region
      %v1224 = vsub.s32 %v55, 384
      %v1225 = vperm.slane %v1224, 0
      %v1226 = vperm.slane %v1224, 1
      %v1227 = vperm.slane %v1224, 2
      %v1228 = vperm.slane %v1224, 3
      %vm1229 = vcmp.eq.s32.totalorder %v130, %v1225
      %vm1230 = vcmp.eq.s32.totalorder %v130, %v1226
      %vm1231 = vcmp.eq.s32.totalorder %v130, %v1227
      %vm1232 = vcmp.eq.s32.totalorder %v130, %v1228
      %vm1233 = vcmp.eq.s32.totalorder %v131, %v1225
      %vm1234 = vcmp.eq.s32.totalorder %v131, %v1226
      %vm1235 = vcmp.eq.s32.totalorder %v131, %v1227
      %vm1236 = vcmp.eq.s32.totalorder %v131, %v1228
      %vm1237 = vcmp.eq.s32.totalorder %v132, %v1225
      %vm1238 = vcmp.eq.s32.totalorder %v132, %v1226
      %vm1239 = vcmp.eq.s32.totalorder %v132, %v1227
      %vm1240 = vcmp.eq.s32.totalorder %v132, %v1228
      %vm1241 = vcmp.eq.s32.totalorder %v133, %v1225
      %vm1242 = vcmp.eq.s32.totalorder %v133, %v1226
      %vm1243 = vcmp.eq.s32.totalorder %v133, %v1227
      %vm1244 = vcmp.eq.s32.totalorder %v133, %v1228
      %vm1245 = vcmp.eq.s32.totalorder %v134, %v1225
      %vm1246 = vcmp.eq.s32.totalorder %v134, %v1226
      %vm1247 = vcmp.eq.s32.totalorder %v134, %v1227
      %vm1248 = vcmp.eq.s32.totalorder %v134, %v1228
      %vm1249 = vcmp.eq.s32.totalorder %v135, %v1225
      %vm1250 = vcmp.eq.s32.totalorder %v135, %v1226
      %vm1251 = vcmp.eq.s32.totalorder %v135, %v1227
      %vm1252 = vcmp.eq.s32.totalorder %v135, %v1228
      %vm1253 = vcmp.eq.s32.totalorder %v136, %v1225
      %vm1254 = vcmp.eq.s32.totalorder %v136, %v1226
      %vm1255 = vcmp.eq.s32.totalorder %v136, %v1227
      %vm1256 = vcmp.eq.s32.totalorder %v136, %v1228
      %vm1257 = vcmp.eq.s32.totalorder %v137, %v1225
      %vm1258 = vcmp.eq.s32.totalorder %v137, %v1226
      %vm1259 = vcmp.eq.s32.totalorder %v137, %v1227
      %vm1260 = vcmp.eq.s32.totalorder %v137, %v1228
      %vm1261 = vcmp.eq.s32.totalorder %v138, %v1225
      %vm1262 = vcmp.eq.s32.totalorder %v138, %v1226
      %vm1263 = vcmp.eq.s32.totalorder %v138, %v1227
      %vm1264 = vcmp.eq.s32.totalorder %v138, %v1228
      %vm1265 = vcmp.eq.s32.totalorder %v139, %v1225
      %vm1266 = vcmp.eq.s32.totalorder %v139, %v1226
      %vm1267 = vcmp.eq.s32.totalorder %v139, %v1227
      %vm1268 = vcmp.eq.s32.totalorder %v139, %v1228
      %vm1269 = vcmp.eq.s32.totalorder %v140, %v1225
      %vm1270 = vcmp.eq.s32.totalorder %v140, %v1226
      %vm1271 = vcmp.eq.s32.totalorder %v140, %v1227
      %vm1272 = vcmp.eq.s32.totalorder %v140, %v1228
      %vm1273 = vcmp.eq.s32.totalorder %v141, %v1225
      %vm1274 = vcmp.eq.s32.totalorder %v141, %v1226
      %vm1275 = vcmp.eq.s32.totalorder %v141, %v1227
      %vm1276 = vcmp.eq.s32.totalorder %v141, %v1228
      %vm1277 = vcmp.eq.s32.totalorder %v142, %v1225
      %vm1278 = vcmp.eq.s32.totalorder %v142, %v1226
      %vm1279 = vcmp.eq.s32.totalorder %v142, %v1227
      %vm1280 = vcmp.eq.s32.totalorder %v142, %v1228
      %vm1281 = vcmp.eq.s32.totalorder %v143, %v1225
      %vm1282 = vcmp.eq.s32.totalorder %v143, %v1226
      %vm1283 = vcmp.eq.s32.totalorder %v143, %v1227
      %vm1284 = vcmp.eq.s32.totalorder %v143, %v1228
      %vm1285 = vcmp.eq.s32.totalorder %v144, %v1225
      %vm1286 = vcmp.eq.s32.totalorder %v144, %v1226
      %vm1287 = vcmp.eq.s32.totalorder %v144, %v1227
      %vm1288 = vcmp.eq.s32.totalorder %v144, %v1228
      %vm1289 = vcmp.eq.s32.totalorder %v145, %v1225
      %vm1290 = vcmp.eq.s32.totalorder %v145, %v1226
      %vm1291 = vcmp.eq.s32.totalorder %v145, %v1227
      %vm1292 = vcmp.eq.s32.totalorder %v145, %v1228
      %v1293 = vsel %vm1229, 1, 0
      %v1294 = vsel %vm1230, 1, 0
      %v1295 = vsel %vm1231, 1, 0
      %v1296 = vsel %vm1232, 1, 0
      %v1297 = vsel %vm1233, 1, 0
      %v1298 = vsel %vm1234, 1, 0
      %v1299 = vsel %vm1235, 1, 0
      %v1300 = vsel %vm1236, 1, 0
      %v1301 = vsel %vm1237, 1, 0
      %v1302 = vsel %vm1238, 1, 0
      %v1303 = vsel %vm1239, 1, 0
      %v1304 = vsel %vm1240, 1, 0
      %v1305 = vsel %vm1241, 1, 0
      %v1306 = vsel %vm1242, 1, 0
      %v1307 = vsel %vm1243, 1, 0
      %v1308 = vsel %vm1244, 1, 0
      %v1309 = vsel %vm1245, 1, 0
      %v1310 = vsel %vm1246, 1, 0
      %v1311 = vsel %vm1247, 1, 0
      %v1312 = vsel %vm1248, 1, 0
      %v1313 = vsel %vm1249, 1, 0
      %v1314 = vsel %vm1250, 1, 0
      %v1315 = vsel %vm1251, 1, 0
      %v1316 = vsel %vm1252, 1, 0
      %v1317 = vsel %vm1253, 1, 0
      %v1318 = vsel %vm1254, 1, 0
      %v1319 = vsel %vm1255, 1, 0
      %v1320 = vsel %vm1256, 1, 0
      %v1321 = vsel %vm1257, 1, 0
      %v1322 = vsel %vm1258, 1, 0
      %v1323 = vsel %vm1259, 1, 0
      %v1324 = vsel %vm1260, 1, 0
      %v1325 = vsel %vm1261, 1, 0
      %v1326 = vsel %vm1262, 1, 0
      %v1327 = vsel %vm1263, 1, 0
      %v1328 = vsel %vm1264, 1, 0
      %v1329 = vsel %vm1265, 1, 0
      %v1330 = vsel %vm1266, 1, 0
      %v1331 = vsel %vm1267, 1, 0
      %v1332 = vsel %vm1268, 1, 0
      %v1333 = vsel %vm1269, 1, 0
      %v1334 = vsel %vm1270, 1, 0
      %v1335 = vsel %vm1271, 1, 0
      %v1336 = vsel %vm1272, 1, 0
      %v1337 = vsel %vm1273, 1, 0
      %v1338 = vsel %vm1274, 1, 0
      %v1339 = vsel %vm1275, 1, 0
      %v1340 = vsel %vm1276, 1, 0
      %v1341 = vsel %vm1277, 1, 0
      %v1342 = vsel %vm1278, 1, 0
      %v1343 = vsel %vm1279, 1, 0
      %v1344 = vsel %vm1280, 1, 0
      %v1345 = vsel %vm1281, 1, 0
      %v1346 = vsel %vm1282, 1, 0
      %v1347 = vsel %vm1283, 1, 0
      %v1348 = vsel %vm1284, 1, 0
      %v1349 = vsel %vm1285, 1, 0
      %v1350 = vsel %vm1286, 1, 0
      %v1351 = vsel %vm1287, 1, 0
      %v1352 = vsel %vm1288, 1, 0
      %v1353 = vsel %vm1289, 1, 0
      %v1354 = vsel %vm1290, 1, 0
      %v1355 = vsel %vm1291, 1, 0
      %v1356 = vsel %vm1292, 1, 0
      %v1357 = vcvt.s32.f32 %v1293
      %v1358 = vcvt.s32.f32 %v1294
      %v1359 = vcvt.s32.f32 %v1295
      %v1360 = vcvt.s32.f32 %v1296
      %v1361 = vcvt.s32.f32 %v1297
      %v1362 = vcvt.s32.f32 %v1298
      %v1363 = vcvt.s32.f32 %v1299
      %v1364 = vcvt.s32.f32 %v1300
      %v1365 = vcvt.s32.f32 %v1301
      %v1366 = vcvt.s32.f32 %v1302
      %v1367 = vcvt.s32.f32 %v1303
      %v1368 = vcvt.s32.f32 %v1304
      %v1369 = vcvt.s32.f32 %v1305
      %v1370 = vcvt.s32.f32 %v1306
      %v1371 = vcvt.s32.f32 %v1307
      %v1372 = vcvt.s32.f32 %v1308
      %v1373 = vcvt.s32.f32 %v1309
      %v1374 = vcvt.s32.f32 %v1310
      %v1375 = vcvt.s32.f32 %v1311
      %v1376 = vcvt.s32.f32 %v1312
      %v1377 = vcvt.s32.f32 %v1313
      %v1378 = vcvt.s32.f32 %v1314
      %v1379 = vcvt.s32.f32 %v1315
      %v1380 = vcvt.s32.f32 %v1316
      %v1381 = vcvt.s32.f32 %v1317
      %v1382 = vcvt.s32.f32 %v1318
      %v1383 = vcvt.s32.f32 %v1319
      %v1384 = vcvt.s32.f32 %v1320
      %v1385 = vcvt.s32.f32 %v1321
      %v1386 = vcvt.s32.f32 %v1322
      %v1387 = vcvt.s32.f32 %v1323
      %v1388 = vcvt.s32.f32 %v1324
      %v1389 = vcvt.s32.f32 %v1325
      %v1390 = vcvt.s32.f32 %v1326
      %v1391 = vcvt.s32.f32 %v1327
      %v1392 = vcvt.s32.f32 %v1328
      %v1393 = vcvt.s32.f32 %v1329
      %v1394 = vcvt.s32.f32 %v1330
      %v1395 = vcvt.s32.f32 %v1331
      %v1396 = vcvt.s32.f32 %v1332
      %v1397 = vcvt.s32.f32 %v1333
      %v1398 = vcvt.s32.f32 %v1334
      %v1399 = vcvt.s32.f32 %v1335
      %v1400 = vcvt.s32.f32 %v1336
      %v1401 = vcvt.s32.f32 %v1337
      %v1402 = vcvt.s32.f32 %v1338
      %v1403 = vcvt.s32.f32 %v1339
      %v1404 = vcvt.s32.f32 %v1340
      %v1405 = vcvt.s32.f32 %v1341
      %v1406 = vcvt.s32.f32 %v1342
      %v1407 = vcvt.s32.f32 %v1343
      %v1408 = vcvt.s32.f32 %v1344
      %v1409 = vcvt.s32.f32 %v1345
      %v1410 = vcvt.s32.f32 %v1346
      %v1411 = vcvt.s32.f32 %v1347
      %v1412 = vcvt.s32.f32 %v1348
      %v1413 = vcvt.s32.f32 %v1349
      %v1414 = vcvt.s32.f32 %v1350
      %v1415 = vcvt.s32.f32 %v1351
      %v1416 = vcvt.s32.f32 %v1352
      %v1417 = vcvt.s32.f32 %v1353
      %v1418 = vcvt.s32.f32 %v1354
      %v1419 = vcvt.s32.f32 %v1355
      %v1420 = vcvt.s32.f32 %v1356
      %v1421 = vpack.c.bf16 %v1361, %v1357
      %v1422 = vpack.c.bf16 %v1362, %v1358
      %v1423 = vpack.c.bf16 %v1363, %v1359
      %v1424 = vpack.c.bf16 %v1364, %v1360
      %v1425 = vpack.c.bf16 %v1369, %v1365
      %v1426 = vpack.c.bf16 %v1370, %v1366
      %v1427 = vpack.c.bf16 %v1371, %v1367
      %v1428 = vpack.c.bf16 %v1372, %v1368
      %v1429 = vpack.c.bf16 %v1377, %v1373
      %v1430 = vpack.c.bf16 %v1378, %v1374
      %v1431 = vpack.c.bf16 %v1379, %v1375
      %v1432 = vpack.c.bf16 %v1380, %v1376
      %v1433 = vpack.c.bf16 %v1385, %v1381
      %v1434 = vpack.c.bf16 %v1386, %v1382
      %v1435 = vpack.c.bf16 %v1387, %v1383
      %v1436 = vpack.c.bf16 %v1388, %v1384
      %v1437 = vpack.c.bf16 %v1393, %v1389
      %v1438 = vpack.c.bf16 %v1394, %v1390
      %v1439 = vpack.c.bf16 %v1395, %v1391
      %v1440 = vpack.c.bf16 %v1396, %v1392
      %v1441 = vpack.c.bf16 %v1401, %v1397
      %v1442 = vpack.c.bf16 %v1402, %v1398
      %v1443 = vpack.c.bf16 %v1403, %v1399
      %v1444 = vpack.c.bf16 %v1404, %v1400
      %v1445 = vpack.c.bf16 %v1409, %v1405
      %v1446 = vpack.c.bf16 %v1410, %v1406
      %v1447 = vpack.c.bf16 %v1411, %v1407
      %v1448 = vpack.c.bf16 %v1412, %v1408
      %v1449 = vpack.c.bf16 %v1417, %v1413
      %v1450 = vpack.c.bf16 %v1418, %v1414
      %v1451 = vpack.c.bf16 %v1419, %v1415
      %v1452 = vpack.c.bf16 %v1420, %v1416
      %s1453 = scalar_lea.vmem [#allocation5], 12
      %v1454 = vld [vmem:[%s1453] sm:$0xf]
      %1455 = vmatpush.bf16.msra.mxu0 %v1449
      %1456 = vmatpush.bf16.msra.mxu0 %v1445
      %1457 = vmatpush.bf16.msra.mxu0 %v1441
      %1458 = vmatpush.bf16.msra.mxu0 %v1437
      %1459 = vmatpush.bf16.msra.mxu0 %v1433
      %1460 = vmatpush.bf16.msra.mxu0 %v1429
      %1461 = vmatpush.bf16.msra.mxu0 %v1425
      %1462 = vmatpush.bf16.msra.mxu0 %v1421
      %1463 = vmatmul.bf16.gmra.mxu0 %v1454
      %v1464 = vpop.f32.mrf.mxu0
      %v1465 = vadd.f32 0.0, %v1464
      %v1466 = vpop.f32.mrf.mxu0
      %1467 = vdwg.mxu0
      %1468 = vmatpush.bf16.msra.mxu0 %v1450
      %1469 = vmatpush.bf16.msra.mxu0 %v1446
      %1470 = vmatpush.bf16.msra.mxu0 %v1442
      %1471 = vmatpush.bf16.msra.mxu0 %v1438
      %1472 = vmatpush.bf16.msra.mxu0 %v1434
      %1473 = vmatpush.bf16.msra.mxu0 %v1430
      %1474 = vmatpush.bf16.msra.mxu0 %v1426
      %1475 = vmatpush.bf16.msra.mxu0 %v1422
      %1476 = vmatmul.bf16.gmra.mxu0 %v1454
      %v1477 = vpop.f32.mrf.mxu0
      %v1478 = vadd.f32 0.0, %v1477
      %v1479 = vpop.f32.mrf.mxu0
      %1480 = vdwg.mxu0
      %1481 = vmatpush.bf16.msra.mxu0 %v1451
      %1482 = vmatpush.bf16.msra.mxu0 %v1447
      %1483 = vmatpush.bf16.msra.mxu0 %v1443
      %1484 = vmatpush.bf16.msra.mxu0 %v1439
      %1485 = vmatpush.bf16.msra.mxu0 %v1435
      %1486 = vmatpush.bf16.msra.mxu0 %v1431
      %1487 = vmatpush.bf16.msra.mxu0 %v1427
      %1488 = vmatpush.bf16.msra.mxu0 %v1423
      %1489 = vmatmul.bf16.gmra.mxu0 %v1454
      %v1490 = vpop.f32.mrf.mxu0
      %v1491 = vadd.f32 0.0, %v1490
      %v1492 = vpop.f32.mrf.mxu0
      %1493 = vdwg.mxu0
      %1494 = vmatpush.bf16.msra.mxu0 %v1452
      %1495 = vmatpush.bf16.msra.mxu0 %v1448
      %1496 = vmatpush.bf16.msra.mxu0 %v1444
      %1497 = vmatpush.bf16.msra.mxu0 %v1440
      %1498 = vmatpush.bf16.msra.mxu0 %v1436
      %1499 = vmatpush.bf16.msra.mxu0 %v1432
      %1500 = vmatpush.bf16.msra.mxu0 %v1428
      %1501 = vmatpush.bf16.msra.mxu0 %v1424
      %1502 = vmatmul.bf16.gmra.mxu0 %v1454
      %v1503 = vpop.f32.mrf.mxu0
      %v1504 = vadd.f32 0.0, %v1503
      %v1505 = vpop.f32.mrf.mxu0
      %1506 = vdwg.mxu0
      %v1507 = vadd.f32 %v1214, %v1465
      %v1508 = vadd.f32 %v1215, %v1478
      %v1509 = vadd.f32 %v1216, %v1491
      %v1510 = vadd.f32 %v1217, %v1504
      %s1511 = scalar_lea.vmem [#allocation5], 28
      %v1512 = vld [vmem:[%s1511] sm:$0xf]
      %1513 = vmatpush.bf16.msra.mxu0 %v1449
      %1514 = vmatpush.bf16.msra.mxu0 %v1445
      %1515 = vmatpush.bf16.msra.mxu0 %v1441
      %1516 = vmatpush.bf16.msra.mxu0 %v1437
      %1517 = vmatpush.bf16.msra.mxu0 %v1433
      %1518 = vmatpush.bf16.msra.mxu0 %v1429
      %1519 = vmatpush.bf16.msra.mxu0 %v1425
      %1520 = vmatpush.bf16.msra.mxu0 %v1421
      %1521 = vmatmul.bf16.gmra.mxu0 %v1512
      %v1522 = vpop.f32.mrf.mxu0
      %v1523 = vadd.f32 0.0, %v1522
      %v1524 = vpop.f32.mrf.mxu0
      %1525 = vdwg.mxu0
      %1526 = vmatpush.bf16.msra.mxu0 %v1450
      %1527 = vmatpush.bf16.msra.mxu0 %v1446
      %1528 = vmatpush.bf16.msra.mxu0 %v1442
      %1529 = vmatpush.bf16.msra.mxu0 %v1438
      %1530 = vmatpush.bf16.msra.mxu0 %v1434
      %1531 = vmatpush.bf16.msra.mxu0 %v1430
      %1532 = vmatpush.bf16.msra.mxu0 %v1426
      %1533 = vmatpush.bf16.msra.mxu0 %v1422
      %1534 = vmatmul.bf16.gmra.mxu0 %v1512
      %v1535 = vpop.f32.mrf.mxu0
      %v1536 = vadd.f32 0.0, %v1535
      %v1537 = vpop.f32.mrf.mxu0
      %1538 = vdwg.mxu0
      %1539 = vmatpush.bf16.msra.mxu0 %v1451
      %1540 = vmatpush.bf16.msra.mxu0 %v1447
      %1541 = vmatpush.bf16.msra.mxu0 %v1443
      %1542 = vmatpush.bf16.msra.mxu0 %v1439
      %1543 = vmatpush.bf16.msra.mxu0 %v1435
      %1544 = vmatpush.bf16.msra.mxu0 %v1431
      %1545 = vmatpush.bf16.msra.mxu0 %v1427
      %1546 = vmatpush.bf16.msra.mxu0 %v1423
      %1547 = vmatmul.bf16.gmra.mxu0 %v1512
      %v1548 = vpop.f32.mrf.mxu0
      %v1549 = vadd.f32 0.0, %v1548
      %v1550 = vpop.f32.mrf.mxu0
      %1551 = vdwg.mxu0
      %1552 = vmatpush.bf16.msra.mxu0 %v1452
      %1553 = vmatpush.bf16.msra.mxu0 %v1448
      %1554 = vmatpush.bf16.msra.mxu0 %v1444
      %1555 = vmatpush.bf16.msra.mxu0 %v1440
      %1556 = vmatpush.bf16.msra.mxu0 %v1436
      %1557 = vmatpush.bf16.msra.mxu0 %v1432
      %1558 = vmatpush.bf16.msra.mxu0 %v1428
      %1559 = vmatpush.bf16.msra.mxu0 %v1424
      %1560 = vmatmul.bf16.gmra.mxu0 %v1512
      %v1561 = vpop.f32.mrf.mxu0
      %v1562 = vadd.f32 0.0, %v1561
      %v1563 = vpop.f32.mrf.mxu0
      %1564 = vdwg.mxu0
      %v1565 = vadd.f32 %v1507, %v1523
      %v1566 = vadd.f32 %v1508, %v1536
      %v1567 = vadd.f32 %v1509, %v1549
      %v1568 = vadd.f32 %v1510, %v1562
    $region45: #{tpu_custom_call.1} parent=1 // pred_fallthru
      %v1569 = vphi 0, %v1565
      %v1570 = vphi 0, %v1566
      %v1571 = vphi 0, %v1567
      %v1572 = vphi 0, %v1568
    // Predicated region
    $region46: #{tpu_custom_call.1} parent=1 // pred_check
      %p1573 = pneg %p1220
    $region47: #{tpu_custom_call.1} parent=1 // pred_check_branch
      %1575 = sbr.rel (%p1573) target = $region49
    $region48: #{tpu_custom_call.1} parent=1 // pred_region
      _
    $region49: #{tpu_custom_call.1} parent=1 // pred_fallthru
      %v1576 = vphi %v1569, %v1214
      %v1577 = vphi %v1570, %v1215
      %v1578 = vphi %v1571, %v1216
      %v1579 = vphi %v1572, %v1217
    %1580 = vst [vmem:[#allocation7] sm:$0xff] %v1576
    %1581 = vst [vmem:[#allocation7 + $0x8] sm:$0xff] %v1577
    %1582 = vst [vmem:[#allocation7 + $0x10] sm:$0xff] %v1578
    %1583 = vst [vmem:[#allocation7 + $0x18] sm:$0xff] %v1579
    // Predicated region
    $region50: #{tpu_custom_call.1} parent=1 // pred_check
      _
    $region51: #{tpu_custom_call.1} parent=1 // pred_check_branch
      %1585 = sbr.rel (0) target = $region53
    $region52: #{tpu_custom_call.1} parent=1 // pred_region
      %1587 = vsyncadd [#allocation4], 0
      %s1589 = sshll.u32 [#allocation7], 4
      %s1590 = int_to_ptr.vmem [resolvable:$true] %s1589
      %s1591 = sshll.u32 %s2, 4
      %s1592 = int_to_ptr.hbm [resolvable:$true] %s1591
      %1594 = dma.vmem_to_hbm [thread:$0]  %s1590, 512, %s1592, [#allocation4]
    $region53: #{tpu_custom_call.1} parent=1 // pred_fallthru
      _
    // Predicated region
    $region54: #{tpu_custom_call.1} parent=1 // pred_check
      _
    $region55: #{tpu_custom_call.1} parent=1 // pred_check_branch
      %1596 = sbr.rel (0) target = $region57
    $region56: #{tpu_custom_call.1} parent=1 // pred_region
      %1598 = dma.done [#allocation4], 512
    $region57: #{tpu_custom_call.1} parent=1 // pred_fallthru
      _
    %1599 = vsyncpa [#allocation3], 1
    %1600 = vsyncpa [#allocation6], 1
    %1601 = vsyncpa [#allocation4], 1

</llo_original>
